<compile_context>
chip_gen: v7x
topology: tpu7x:2x2x1
jax: 0.10.0
libtpu: 0.0.40
codegen_flags: <defaults>
</compile_context>

<pallas_src>
import functools

import jax
import jax.numpy as jnp
from jax.experimental import pallas as pl
from jax.experimental.pallas import tpu as pltpu

# ----------------------------- config (small, consistent with module) -----------------------------
EMBED_DIM = 32
IMAGE_RES = 16
VISION_LAYERS = 2
VISION_WIDTH = 64
PATCH = 8
CTX_LEN = 8
VOCAB = 100
TXT_WIDTH = 64
TXT_HEADS = 2
TXT_LAYERS = 2
VISION_HEADS = max(VISION_WIDTH // 64, 1)   # matches `vision_heads = vision_width // 64`
LN_EPS = 1e-5


# ----------------------------- in-kernel helpers -----------------------------
def _ln(x, g, b):
    mu = jnp.mean(x, axis=-1, keepdims=True)
    c = x - mu
    var = jnp.mean(c * c, axis=-1, keepdims=True)
    return c * jax.lax.rsqrt(var + LN_EPS) * g + b


def _tower(x, *, layers, heads, width, mask,
           ln1g, ln1b, wqkv, bqkv, wo, bo, ln2g, ln2b, wfc, bfc, wpj, bpj, qkv_s):
    """Stack of ResidualAttentionBlocks on a batch-folded (B*S, W) activation slab.

    `mask` is a (B*S, B*S) additive mask that is block-diagonal (-inf across batches) and
    carries the causal mask inside each block for the text tower, so folding the batch into
    the sublane dimension is numerically identical to per-batch attention.
    """
    W = width
    hd = W // heads
    scale = hd ** -0.5
    for l in range(layers):                                    # tiny static layer count -> unrolled
        h = _ln(x, ln1g[l], ln1b[l])
        # fused QKV matmul; stage through VMEM scratch so per-head slices are plain ref reads
        qkv_s[...] = jnp.dot(h, wqkv[l], preferred_element_type=jnp.float32) + bqkv[l]
        wo_l = wo[l]                                           # (W, W) fused out-proj weight
        attn = None
        for hh in range(heads):                                # heads <= 2 -> unrolled
            q = qkv_s[:, pl.ds(hh * hd, hd)]
            k = qkv_s[:, pl.ds(W + hh * hd, hd)]
            v = qkv_s[:, pl.ds(2 * W + hh * hd, hd)]
            s = jax.lax.dot_general(q * scale, k, (((1,), (1,)), ((), ())),
                                    preferred_element_type=jnp.float32) + mask
            s = s - jnp.max(s, axis=-1, keepdims=True)
            p = jnp.exp(s)
            p = p * pl.reciprocal(jnp.sum(p, axis=-1, keepdims=True), approx=True)
            o_h = jnp.dot(p, v, preferred_element_type=jnp.float32)
            contrib = jnp.dot(o_h, wo_l[hh * hd:(hh + 1) * hd, :],
                              preferred_element_type=jnp.float32)
            attn = contrib if attn is None else attn + contrib
        x = x + attn + bo[l]
        h2 = _ln(x, ln2g[l], ln2b[l])
        f = jnp.dot(h2, wfc[l], preferred_element_type=jnp.float32) + bfc[l]
        f = f * jax.nn.sigmoid(1.702 * f)                      # QuickGELU
        x = x + jnp.dot(f, wpj[l], preferred_element_type=jnp.float32) + bpj[l]
    return x


# ----------------------------- the single fused kernel -----------------------------
def supfad_kernel(
    # vision embedding
    patches, v_wpatch, v_place, v_posbias, v_lnpre_g, v_lnpre_b,
    # vision resblocks (weights stacked over layers)
    v_ln1g, v_ln1b, v_wqkv, v_bqkv, v_wo, v_bo,
    v_ln2g, v_ln2b, v_wfc, v_bfc, v_wpj, v_bpj,
    v_mask, v_cls_sel, v_proj,
    # text tower
    x_txt, t_ln1g, t_ln1b, t_wqkv, t_bqkv, t_wo, t_bo,
    t_ln2g, t_ln2b, t_wfc, t_bfc, t_wpj, t_bpj,
    t_mask, t_lnf_g, t_lnf_b, t_sel, t_proj, scale_ref,
    # output
    logits_ref,
    # scratch
    qkv_sv, qkv_st,
    *, vis_layers, vis_heads, vis_width, txt_layers, txt_heads, txt_width):
    # ---- vision tower: conv1-as-matmul + cls/pos + ln_pre + resblocks + cls proj ----
    tok = jnp.dot(patches[...], v_wpatch[...], preferred_element_type=jnp.float32)   # (B*NP, W)
    xv = jnp.dot(v_place[...], tok, preferred_element_type=jnp.float32) + v_posbias[...]  # (B*S, W)
    xv = _ln(xv, v_lnpre_g[...], v_lnpre_b[...])
    xv = _tower(xv, layers=vis_layers, heads=vis_heads, width=vis_width, mask=v_mask[...],
                ln1g=v_ln1g, ln1b=v_ln1b, wqkv=v_wqkv, bqkv=v_bqkv, wo=v_wo, bo=v_bo,
                ln2g=v_ln2g, ln2b=v_ln2b, wfc=v_wfc, bfc=v_bfc, wpj=v_wpj, bpj=v_bpj,
                qkv_s=qkv_sv)
    # x_ori[0, :, :] @ proj  (no ln_post on the cls path, matching the reference)
    img = jnp.dot(jnp.dot(v_cls_sel[...], xv, preferred_element_type=jnp.float32),
                  v_proj[...], preferred_element_type=jnp.float32)                    # (B, E)

    # ---- text tower: resblocks + ln_final + EOT select + text_projection ----
    xt = _tower(x_txt[...], layers=txt_layers, heads=txt_heads, width=txt_width, mask=t_mask[...],
                ln1g=t_ln1g, ln1b=t_ln1b, wqkv=t_wqkv, bqkv=t_bqkv, wo=t_wo, bo=t_bo,
                ln2g=t_ln2g, ln2b=t_ln2b, wfc=t_wfc, bfc=t_bfc, wpj=t_wpj, bpj=t_bpj,
                qkv_s=qkv_st)
    xt = _ln(xt, t_lnf_g[...], t_lnf_b[...])
    txt = jnp.dot(jnp.dot(t_sel[...], xt, preferred_element_type=jnp.float32),
                  t_proj[...], preferred_element_type=jnp.float32)                    # (B, E)

    # ---- CLIP head: L2 normalize (no epsilon, as in the reference) + scaled similarity ----
    img = img * jax.lax.rsqrt(jnp.sum(img * img, axis=-1, keepdims=True))
    txt = txt * jax.lax.rsqrt(jnp.sum(txt * txt, axis=-1, keepdims=True))
    logits = jax.lax.dot_general(img, txt, (((1,), (1,)), ((), ())),
                                 preferred_element_type=jnp.float32)
    logits_ref[...] = jnp.exp(scale_ref[...]) * logits


# ----------------------------- forward wrapper (one pallas_call) -----------------------------
@jax.jit
def supfad_forward(image, text, vp, tp):
    # TODO(synk): compute_attention_mask uses .item() control flow and its output is discarded
    #             when DPAM_layer is None (ori_CLIP_with_patch_forward ignores it) -> skipped.
    # TODO(synk): TextureAwareWindowAttention is not provided in the reference source ->
    #             treated as identity on the token sequence.
    B = image.shape[0]
    gh = IMAGE_RES // PATCH
    NP = gh * gh
    Sv = NP + 1
    Lt = text.shape[1]
    Wv, Wt = VISION_WIDTH, TXT_WIDTH
    Nv, Nt = B * Sv, B * Lt
    neg = jnp.float32(-jnp.inf)

    # patch extraction (pure layout) + conv weight flatten -> stride==kernel conv as matmul
    patches = image.reshape(B, 3, gh, PATCH, gh, PATCH)
    patches = patches.transpose(0, 2, 4, 1, 3, 5).reshape(B * NP, 3 * PATCH * PATCH)
    wpatch = vp['conv1_w'].reshape(Wv, 3 * PATCH * PATCH).T

    # class-token + positional-embedding bias slab and token placement matrix
    posb = vp['pos_emb'].at[0].add(vp['class_emb'])                    # (Sv, Wv)
    v_posbias = jnp.tile(posb, (B, 1))                                 # (Nv, Wv)
    rows = (jnp.arange(B)[:, None] * Sv + jnp.arange(1, Sv)[None, :]).reshape(-1)
    cols = jnp.arange(B * NP)
    v_place = jnp.zeros((Nv, B * NP), jnp.float32).at[rows, cols].set(1.0)

    # block-diagonal additive masks: keep folded batches independent (+ causal for text)
    eyeB = jnp.eye(B, dtype=jnp.float32)
    v_blk = jnp.kron(eyeB, jnp.ones((Sv, Sv), jnp.float32))
    v_mask = jnp.where(v_blk > 0, 0.0, neg).astype(jnp.float32)
    causal = jnp.where(jnp.triu(jnp.ones((Lt, Lt), dtype=bool), 1), neg, 0.0).astype(jnp.float32)
    t_blk = jnp.kron(eyeB, jnp.ones((Lt, Lt), jnp.float32))
    t_mask = jnp.where(t_blk > 0, jnp.tile(causal, (B, B)), neg).astype(jnp.float32)

    # row-selection matrices: cls token per batch / EOT (argmax) token per batch
    v_cls_sel = jax.nn.one_hot(jnp.arange(B) * Sv, Nv, dtype=jnp.float32)
    eot = jnp.argmax(text, axis=-1)
    t_sel = jax.nn.one_hot(jnp.arange(B) * Lt + eot, Nt, dtype=jnp.float32)

    # token embedding gather + positional embedding stay in XLA glue
    x_txt = (tp['token_emb'][text] + tp['pos_emb'][None, :, :]).reshape(Nt, Wt)

    vb, tb = vp['blocks'], tp['blocks']
    scale = jnp.reshape(tp['logit_scale'].astype(jnp.float32), (1, 1))

    kernel = functools.partial(
        supfad_kernel,
        vis_layers=VISION_LAYERS, vis_heads=VISION_HEADS, vis_width=Wv,
        txt_layers=TXT_LAYERS, txt_heads=TXT_HEADS, txt_width=Wt)

    logits_per_image = pl.pallas_call(
        kernel,
        out_shape=jax.ShapeDtypeStruct((B, B), jnp.float32),
        scratch_shapes=[pltpu.VMEM((Nv, 3 * Wv), jnp.float32),
                        pltpu.VMEM((Nt, 3 * Wt), jnp.float32)],
    )(
        patches, wpatch, v_place, v_posbias, vp['ln_pre_g'], vp['ln_pre_b'],
        vb['ln1_g'], vb['ln1_b'], vb['wqkv'], vb['bqkv'], vb['wo'], vb['bo'],
        vb['ln2_g'], vb['ln2_b'], vb['wfc'], vb['bfc'], vb['wpj'], vb['bpj'],
        v_mask, v_cls_sel, vp['proj'],
        x_txt,
        tb['ln1_g'], tb['ln1_b'], tb['wqkv'], tb['bqkv'], tb['wo'], tb['bo'],
        tb['ln2_g'], tb['ln2_b'], tb['wfc'], tb['bfc'], tb['wpj'], tb['bpj'],
        t_mask, tp['ln_final_g'], tp['ln_final_b'], t_sel, tp['text_projection'],
        scale,
    )
    return logits_per_image, logits_per_image.T


# ----------------------------- parameter init (deterministic, synthetic) -----------------------------
def init_block_stack(key, width, layers):
    W = width

    def one(k):
        ks = jax.random.split(k, 8)
        attn_std = W ** -0.5
        in_w = attn_std * jax.random.normal(ks[0], (3 * W, W), jnp.float32)
        in_b = 0.01 * jax.random.normal(ks[1], (3 * W,), jnp.float32)
        out_w = attn_std * jax.random.normal(ks[2], (W, W), jnp.float32)
        out_b = 0.01 * jax.random.normal(ks[3], (W,), jnp.float32)
        fc_w = (2 * W) ** -0.5 * jax.random.normal(ks[4], (4 * W, W), jnp.float32)
        fc_b = 0.01 * jax.random.normal(ks[5], (4 * W,), jnp.float32)
        pj_w = attn_std * jax.random.normal(ks[6], (W, 4 * W), jnp.float32)
        pj_b = 0.01 * jax.random.normal(ks[7], (W,), jnp.float32)
        # kernel layout: fused x @ W.T style right-matrices (columns: [q | k | v], heads contiguous)
        return dict(
            ln1_g=jnp.ones((1, W), jnp.float32), ln1_b=jnp.zeros((1, W), jnp.float32),
            wqkv=in_w.T, bqkv=in_b.reshape(1, 3 * W),
            wo=out_w.T, bo=out_b.reshape(1, W),
            ln2_g=jnp.ones((1, W), jnp.float32), ln2_b=jnp.zeros((1, W), jnp.float32),
            wfc=fc_w.T, bfc=fc_b.reshape(1, 4 * W),
            wpj=pj_w.T, bpj=pj_b.reshape(1, W))

    blocks = [one(k) for k in jax.random.split(key, layers)]
    return {name: jnp.stack([b[name] for b in blocks], axis=0) for name in blocks[0]}


def init_vision(key):
    ks = jax.random.split(key, 5)
    scale = VISION_WIDTH ** -0.5
    n_tok = (IMAGE_RES // PATCH) ** 2 + 1
    return dict(
        conv1_w=0.02 * jax.random.normal(ks[0], (VISION_WIDTH, 3, PATCH, PATCH), jnp.float32),
        class_emb=scale * jax.random.normal(ks[1], (VISION_WIDTH,), jnp.float32),
        pos_emb=scale * jax.random.normal(ks[2], (n_tok, VISION_WIDTH), jnp.float32),
        ln_pre_g=jnp.ones((1, VISION_WIDTH), jnp.float32),
        ln_pre_b=jnp.zeros((1, VISION_WIDTH), jnp.float32),
        proj=scale * jax.random.normal(ks[3], (VISION_WIDTH, EMBED_DIM), jnp.float32),
        blocks=init_block_stack(ks[4], VISION_WIDTH, VISION_LAYERS),
    )


def init_text(key):
    ks = jax.random.split(key, 4)
    return dict(
        token_emb=0.02 * jax.random.normal(ks[0], (VOCAB, TXT_WIDTH), jnp.float32),
        pos_emb=0.01 * jax.random.normal(ks[1], (CTX_LEN, TXT_WIDTH), jnp.float32),
        ln_final_g=jnp.ones((1, TXT_WIDTH), jnp.float32),
        ln_final_b=jnp.zeros((1, TXT_WIDTH), jnp.float32),
        text_projection=(TXT_WIDTH ** -0.5) * jax.random.normal(ks[2], (TXT_WIDTH, EMBED_DIM), jnp.float32),
        blocks=init_block_stack(ks[3], TXT_WIDTH, TXT_LAYERS),
        logit_scale=jnp.log(jnp.asarray(1.0 / 0.07, jnp.float32)),
    )


# ----------------------------- main -----------------------------
if __name__ == "__main__":
    key = jax.random.PRNGKey(0)
    k_v, k_t, k_img, k_txt = jax.random.split(key, 4)
    vision_params = init_vision(k_v)
    text_params = init_text(k_t)

    image = jax.random.normal(k_img, (2, 3, IMAGE_RES, IMAGE_RES), jnp.float32)  # NCHW
    text = jax.random.randint(k_txt, (2, CTX_LEN), 0, VOCAB, dtype=jnp.int32)

    logits_per_image, logits_per_text = supfad_forward(image, text, vision_params, text_params)
    jax.block_until_ready((logits_per_image, logits_per_text))
    assert logits_per_image.shape == (2, 2) and logits_per_text.shape == (2, 2)
    assert bool(jnp.all(jnp.isfinite(logits_per_image)))
    print("KERNEL_OK")
</pallas_src>

<mosaic_0001>
module attributes {stable_mosaic.version = 11 : i64} {
  func.func @supfad_kernel(%arg0: memref<8x192xf32, #tpu.memory_space<vmem>>, %arg1: memref<192x64xf32, #tpu.memory_space<vmem>>, %arg2: memref<10x8xf32, #tpu.memory_space<vmem>>, %arg3: memref<10x64xf32, #tpu.memory_space<vmem>>, %arg4: memref<1x64xf32, #tpu.memory_space<vmem>>, %arg5: memref<1x64xf32, #tpu.memory_space<vmem>>, %arg6: memref<2x1x64xf32, #tpu.memory_space<vmem>>, %arg7: memref<2x1x64xf32, #tpu.memory_space<vmem>>, %arg8: memref<2x64x192xf32, #tpu.memory_space<vmem>>, %arg9: memref<2x1x192xf32, #tpu.memory_space<vmem>>, %arg10: memref<2x64x64xf32, #tpu.memory_space<vmem>>, %arg11: memref<2x1x64xf32, #tpu.memory_space<vmem>>, %arg12: memref<2x1x64xf32, #tpu.memory_space<vmem>>, %arg13: memref<2x1x64xf32, #tpu.memory_space<vmem>>, %arg14: memref<2x64x256xf32, #tpu.memory_space<vmem>>, %arg15: memref<2x1x256xf32, #tpu.memory_space<vmem>>, %arg16: memref<2x256x64xf32, #tpu.memory_space<vmem>>, %arg17: memref<2x1x64xf32, #tpu.memory_space<vmem>>, %arg18: memref<10x10xf32, #tpu.memory_space<vmem>>, %arg19: memref<2x10xf32, #tpu.memory_space<vmem>>, %arg20: memref<64x32xf32, #tpu.memory_space<vmem>>, %arg21: memref<16x64xf32, #tpu.memory_space<vmem>>, %arg22: memref<2x1x64xf32, #tpu.memory_space<vmem>>, %arg23: memref<2x1x64xf32, #tpu.memory_space<vmem>>, %arg24: memref<2x64x192xf32, #tpu.memory_space<vmem>>, %arg25: memref<2x1x192xf32, #tpu.memory_space<vmem>>, %arg26: memref<2x64x64xf32, #tpu.memory_space<vmem>>, %arg27: memref<2x1x64xf32, #tpu.memory_space<vmem>>, %arg28: memref<2x1x64xf32, #tpu.memory_space<vmem>>, %arg29: memref<2x1x64xf32, #tpu.memory_space<vmem>>, %arg30: memref<2x64x256xf32, #tpu.memory_space<vmem>>, %arg31: memref<2x1x256xf32, #tpu.memory_space<vmem>>, %arg32: memref<2x256x64xf32, #tpu.memory_space<vmem>>, %arg33: memref<2x1x64xf32, #tpu.memory_space<vmem>>, %arg34: memref<16x16xf32, #tpu.memory_space<vmem>>, %arg35: memref<1x64xf32, #tpu.memory_space<vmem>>, %arg36: memref<1x64xf32, #tpu.memory_space<vmem>>, %arg37: memref<2x16xf32, #tpu.memory_space<vmem>>, %arg38: memref<64x32xf32, #tpu.memory_space<vmem>>, %arg39: memref<1x1xf32, #tpu.memory_space<vmem>>, %arg40: memref<2x2xf32, #tpu.memory_space<vmem>>, %arg41: memref<10x192xf32, #tpu.memory_space<vmem>>, %arg42: memref<16x192xf32, #tpu.memory_space<vmem>>) attributes {dimension_semantics = [], scalar_prefetch = 0 : i64, scratch_operands = 2 : i64, tpu.core_type = #tpu.core_type<tc>} {
    %c0 = arith.constant 0 : index
    %c0_0 = arith.constant 0 : index
    %0 = vector.load %arg0[%c0, %c0_0] : memref<8x192xf32, #tpu.memory_space<vmem>>, vector<8x192xf32>
    %c0_1 = arith.constant 0 : index
    %c0_2 = arith.constant 0 : index
    %1 = vector.load %arg1[%c0_1, %c0_2] : memref<192x64xf32, #tpu.memory_space<vmem>>, vector<192x64xf32>
    %cst = arith.constant dense<0.000000e+00> : vector<8x64xf32>
    %2 = tpu.matmul %0, %1, %cst {dimension_numbers = #tpu.dot_dimension_numbers<[1], [0], [0], [1], [0, 0, 1, 1], [], []>} : vector<8x192xf32>, vector<192x64xf32>, vector<8x64xf32> -> vector<8x64xf32>
    %c0_3 = arith.constant 0 : index
    %c0_4 = arith.constant 0 : index
    %3 = vector.load %arg2[%c0_3, %c0_4] : memref<10x8xf32, #tpu.memory_space<vmem>>, vector<10x8xf32>
    %cst_5 = arith.constant dense<0.000000e+00> : vector<10x64xf32>
    %4 = tpu.matmul %3, %2, %cst_5 {dimension_numbers = #tpu.dot_dimension_numbers<[1], [0], [0], [1], [0, 0, 1, 1], [], []>} : vector<10x8xf32>, vector<8x64xf32>, vector<10x64xf32> -> vector<10x64xf32>
    %c0_6 = arith.constant 0 : index
    %c0_7 = arith.constant 0 : index
    %5 = vector.load %arg3[%c0_6, %c0_7] : memref<10x64xf32, #tpu.memory_space<vmem>>, vector<10x64xf32>
    %6 = arith.addf %4, %5 : vector<10x64xf32>
    %c0_8 = arith.constant 0 : index
    %c0_9 = arith.constant 0 : index
    %7 = vector.load %arg4[%c0_8, %c0_9] : memref<1x64xf32, #tpu.memory_space<vmem>>, vector<1x64xf32>
    %c0_10 = arith.constant 0 : index
    %c0_11 = arith.constant 0 : index
    %8 = vector.load %arg5[%c0_10, %c0_11] : memref<1x64xf32, #tpu.memory_space<vmem>>, vector<1x64xf32>
    %cst_12 = arith.constant dense<0.000000e+00> : vector<10xf32>
    %9 = vector.multi_reduction <add>, %6, %cst_12 [1] : vector<10x64xf32> to vector<10xf32>
    %10 = vector.shape_cast %9 : vector<10xf32> to vector<10x1xf32>
    %cst_13 = arith.constant 6.400000e+01 : f32
    %11 = vector.broadcast %cst_13 : f32 to vector<10x1xf32>
    %12 = arith.divf %10, %11 : vector<10x1xf32>
    %13 = vector.broadcast %12 : vector<10x1xf32> to vector<10x64xf32>
    %14 = arith.subf %6, %13 : vector<10x64xf32>
    %15 = arith.mulf %14, %14 : vector<10x64xf32>
    %cst_14 = arith.constant dense<0.000000e+00> : vector<10xf32>
    %16 = vector.multi_reduction <add>, %15, %cst_14 [1] : vector<10x64xf32> to vector<10xf32>
    %17 = vector.shape_cast %16 : vector<10xf32> to vector<10x1xf32>
    %cst_15 = arith.constant 6.400000e+01 : f32
    %18 = vector.broadcast %cst_15 : f32 to vector<10x1xf32>
    %19 = arith.divf %17, %18 : vector<10x1xf32>
    %cst_16 = arith.constant 9.99999974E-6 : f32
    %20 = vector.broadcast %cst_16 : f32 to vector<10x1xf32>
    %21 = arith.addf %19, %20 : vector<10x1xf32>
    %22 = math.rsqrt %21 : vector<10x1xf32>
    %23 = vector.broadcast %22 : vector<10x1xf32> to vector<10x64xf32>
    %24 = arith.mulf %14, %23 : vector<10x64xf32>
    %25 = vector.broadcast %7 : vector<1x64xf32> to vector<10x64xf32>
    %26 = arith.mulf %24, %25 : vector<10x64xf32>
    %27 = vector.broadcast %8 : vector<1x64xf32> to vector<10x64xf32>
    %28 = arith.addf %26, %27 : vector<10x64xf32>
    %c0_17 = arith.constant 0 : index
    %c0_18 = arith.constant 0 : index
    %29 = vector.load %arg18[%c0_17, %c0_18] : memref<10x10xf32, #tpu.memory_space<vmem>>, vector<10x10xf32>
    %c0_19 = arith.constant 0 : index
    %c0_20 = arith.constant 0 : index
    %c0_21 = arith.constant 0 : index
    %30 = vector.load %arg6[%c0_19, %c0_20, %c0_21] : memref<2x1x64xf32, #tpu.memory_space<vmem>>, vector<1x1x64xf32>
    %31 = vector.shape_cast %30 : vector<1x1x64xf32> to vector<1x64xf32>
    %c0_22 = arith.constant 0 : index
    %c0_23 = arith.constant 0 : index
    %c0_24 = arith.constant 0 : index
    %32 = vector.load %arg7[%c0_22, %c0_23, %c0_24] : memref<2x1x64xf32, #tpu.memory_space<vmem>>, vector<1x1x64xf32>
    %33 = vector.shape_cast %32 : vector<1x1x64xf32> to vector<1x64xf32>
    %cst_25 = arith.constant dense<0.000000e+00> : vector<10xf32>
    %34 = vector.multi_reduction <add>, %28, %cst_25 [1] : vector<10x64xf32> to vector<10xf32>
    %35 = vector.shape_cast %34 : vector<10xf32> to vector<10x1xf32>
    %cst_26 = arith.constant 6.400000e+01 : f32
    %36 = vector.broadcast %cst_26 : f32 to vector<10x1xf32>
    %37 = arith.divf %35, %36 : vector<10x1xf32>
    %38 = vector.broadcast %37 : vector<10x1xf32> to vector<10x64xf32>
    %39 = arith.subf %28, %38 : vector<10x64xf32>
    %40 = arith.mulf %39, %39 : vector<10x64xf32>
    %cst_27 = arith.constant dense<0.000000e+00> : vector<10xf32>
    %41 = vector.multi_reduction <add>, %40, %cst_27 [1] : vector<10x64xf32> to vector<10xf32>
    %42 = vector.shape_cast %41 : vector<10xf32> to vector<10x1xf32>
    %cst_28 = arith.constant 6.400000e+01 : f32
    %43 = vector.broadcast %cst_28 : f32 to vector<10x1xf32>
    %44 = arith.divf %42, %43 : vector<10x1xf32>
    %cst_29 = arith.constant 9.99999974E-6 : f32
    %45 = vector.broadcast %cst_29 : f32 to vector<10x1xf32>
    %46 = arith.addf %44, %45 : vector<10x1xf32>
    %47 = math.rsqrt %46 : vector<10x1xf32>
    %48 = vector.broadcast %47 : vector<10x1xf32> to vector<10x64xf32>
    %49 = arith.mulf %39, %48 : vector<10x64xf32>
    %50 = vector.broadcast %31 : vector<1x64xf32> to vector<10x64xf32>
    %51 = arith.mulf %49, %50 : vector<10x64xf32>
    %52 = vector.broadcast %33 : vector<1x64xf32> to vector<10x64xf32>
    %53 = arith.addf %51, %52 : vector<10x64xf32>
    %c0_30 = arith.constant 0 : index
    %c0_31 = arith.constant 0 : index
    %c0_32 = arith.constant 0 : index
    %54 = vector.load %arg8[%c0_30, %c0_31, %c0_32] : memref<2x64x192xf32, #tpu.memory_space<vmem>>, vector<1x64x192xf32>
    %55 = vector.shape_cast %54 : vector<1x64x192xf32> to vector<64x192xf32>
    %cst_33 = arith.constant dense<0.000000e+00> : vector<10x192xf32>
    %56 = tpu.matmul %53, %55, %cst_33 {dimension_numbers = #tpu.dot_dimension_numbers<[1], [0], [0], [1], [0, 0, 1, 1], [], []>} : vector<10x64xf32>, vector<64x192xf32>, vector<10x192xf32> -> vector<10x192xf32>
    %c0_34 = arith.constant 0 : index
    %c0_35 = arith.constant 0 : index
    %c0_36 = arith.constant 0 : index
    %57 = vector.load %arg9[%c0_34, %c0_35, %c0_36] : memref<2x1x192xf32, #tpu.memory_space<vmem>>, vector<1x1x192xf32>
    %58 = vector.shape_cast %57 : vector<1x1x192xf32> to vector<1x192xf32>
    %59 = vector.broadcast %58 : vector<1x192xf32> to vector<10x192xf32>
    %60 = arith.addf %56, %59 : vector<10x192xf32>
    %c0_37 = arith.constant 0 : index
    %c0_38 = arith.constant 0 : index
    %61 = vector.load %arg41[%c0_37, %c0_38] : memref<10x192xf32, #tpu.memory_space<vmem>>, vector<10x192xf32>
    tpu.vector_store %arg41[%c0_37, %c0_38], %60 {strides = array<i32>} : memref<10x192xf32, #tpu.memory_space<vmem>>, vector<10x192xf32>,
    %c0_39 = arith.constant 0 : index
    %c0_40 = arith.constant 0 : index
    %c0_41 = arith.constant 0 : index
    %62 = vector.load %arg10[%c0_39, %c0_40, %c0_41] : memref<2x64x64xf32, #tpu.memory_space<vmem>>, vector<1x64x64xf32>
    %63 = vector.shape_cast %62 : vector<1x64x64xf32> to vector<64x64xf32>
    %c0_42 = arith.constant 0 : index
    %c0_43 = arith.constant 0 : index
    %64 = vector.load %arg41[%c0_42, %c0_43] : memref<10x192xf32, #tpu.memory_space<vmem>>, vector<10x64xf32>
    %c0_44 = arith.constant 0 : index
    %c64 = arith.constant 64 : index
    %65 = vector.load %arg41[%c0_44, %c64] : memref<10x192xf32, #tpu.memory_space<vmem>>, vector<10x64xf32>
    %c0_45 = arith.constant 0 : index
    %c128 = arith.constant 128 : index
    %66 = vector.load %arg41[%c0_45, %c128] : memref<10x192xf32, #tpu.memory_space<vmem>>, vector<10x64xf32>
    %cst_46 = arith.constant 1.250000e-01 : f32
    %67 = vector.broadcast %cst_46 : f32 to vector<10x64xf32>
    %68 = arith.mulf %64, %67 : vector<10x64xf32>
    %cst_47 = arith.constant dense<0.000000e+00> : vector<10x10xf32>
    %69 = tpu.matmul %68, %65, %cst_47 {dimension_numbers = #tpu.dot_dimension_numbers<[1], [1], [0], [0], [0, 0, 1, 0], [], []>} : vector<10x64xf32>, vector<10x64xf32>, vector<10x10xf32> -> vector<10x10xf32>
    %70 = arith.addf %69, %29 : vector<10x10xf32>
    %cst_48 = arith.constant dense<0xFF800000> : vector<10xf32>
    %71 = vector.multi_reduction <maximumf>, %70, %cst_48 [1] : vector<10x10xf32> to vector<10xf32>
    %72 = vector.shape_cast %71 : vector<10xf32> to vector<10x1xf32>
    %73 = vector.broadcast %72 : vector<10x1xf32> to vector<10x10xf32>
    %74 = arith.subf %70, %73 : vector<10x10xf32>
    %75 = math.exp %74 : vector<10x10xf32>
    %cst_49 = arith.constant dense<0.000000e+00> : vector<10xf32>
    %76 = vector.multi_reduction <add>, %75, %cst_49 [1] : vector<10x10xf32> to vector<10xf32>
    %77 = vector.shape_cast %76 : vector<10xf32> to vector<10x1xf32>
    %78 = tpu.reciprocal %77 {approx = true} : vector<10x1xf32> -> vector<10x1xf32>
    %79 = vector.broadcast %78 : vector<10x1xf32> to vector<10x10xf32>
    %80 = arith.mulf %75, %79 : vector<10x10xf32>
    %cst_50 = arith.constant dense<0.000000e+00> : vector<10x64xf32>
    %81 = tpu.matmul %80, %66, %cst_50 {dimension_numbers = #tpu.dot_dimension_numbers<[1], [0], [0], [1], [0, 0, 1, 1], [], []>} : vector<10x10xf32>, vector<10x64xf32>, vector<10x64xf32> -> vector<10x64xf32>
    %cst_51 = arith.constant dense<0.000000e+00> : vector<10x64xf32>
    %82 = tpu.matmul %81, %63, %cst_51 {dimension_numbers = #tpu.dot_dimension_numbers<[1], [0], [0], [1], [0, 0, 1, 1], [], []>} : vector<10x64xf32>, vector<64x64xf32>, vector<10x64xf32> -> vector<10x64xf32>
    %83 = arith.addf %28, %82 : vector<10x64xf32>
    %c0_52 = arith.constant 0 : index
    %c0_53 = arith.constant 0 : index
    %c0_54 = arith.constant 0 : index
    %84 = vector.load %arg11[%c0_52, %c0_53, %c0_54] : memref<2x1x64xf32, #tpu.memory_space<vmem>>, vector<1x1x64xf32>
    %85 = vector.shape_cast %84 : vector<1x1x64xf32> to vector<1x64xf32>
    %86 = vector.broadcast %85 : vector<1x64xf32> to vector<10x64xf32>
    %87 = arith.addf %83, %86 : vector<10x64xf32>
    %c0_55 = arith.constant 0 : index
    %c0_56 = arith.constant 0 : index
    %c0_57 = arith.constant 0 : index
    %88 = vector.load %arg12[%c0_55, %c0_56, %c0_57] : memref<2x1x64xf32, #tpu.memory_space<vmem>>, vector<1x1x64xf32>
    %89 = vector.shape_cast %88 : vector<1x1x64xf32> to vector<1x64xf32>
    %c0_58 = arith.constant 0 : index
    %c0_59 = arith.constant 0 : index
    %c0_60 = arith.constant 0 : index
    %90 = vector.load %arg13[%c0_58, %c0_59, %c0_60] : memref<2x1x64xf32, #tpu.memory_space<vmem>>, vector<1x1x64xf32>
    %91 = vector.shape_cast %90 : vector<1x1x64xf32> to vector<1x64xf32>
    %cst_61 = arith.constant dense<0.000000e+00> : vector<10xf32>
    %92 = vector.multi_reduction <add>, %87, %cst_61 [1] : vector<10x64xf32> to vector<10xf32>
    %93 = vector.shape_cast %92 : vector<10xf32> to vector<10x1xf32>
    %cst_62 = arith.constant 6.400000e+01 : f32
    %94 = vector.broadcast %cst_62 : f32 to vector<10x1xf32>
    %95 = arith.divf %93, %94 : vector<10x1xf32>
    %96 = vector.broadcast %95 : vector<10x1xf32> to vector<10x64xf32>
    %97 = arith.subf %87, %96 : vector<10x64xf32>
    %98 = arith.mulf %97, %97 : vector<10x64xf32>
    %cst_63 = arith.constant dense<0.000000e+00> : vector<10xf32>
    %99 = vector.multi_reduction <add>, %98, %cst_63 [1] : vector<10x64xf32> to vector<10xf32>
    %100 = vector.shape_cast %99 : vector<10xf32> to vector<10x1xf32>
    %cst_64 = arith.constant 6.400000e+01 : f32
    %101 = vector.broadcast %cst_64 : f32 to vector<10x1xf32>
    %102 = arith.divf %100, %101 : vector<10x1xf32>
    %cst_65 = arith.constant 9.99999974E-6 : f32
    %103 = vector.broadcast %cst_65 : f32 to vector<10x1xf32>
    %104 = arith.addf %102, %103 : vector<10x1xf32>
    %105 = math.rsqrt %104 : vector<10x1xf32>
    %106 = vector.broadcast %105 : vector<10x1xf32> to vector<10x64xf32>
    %107 = arith.mulf %97, %106 : vector<10x64xf32>
    %108 = vector.broadcast %89 : vector<1x64xf32> to vector<10x64xf32>
    %109 = arith.mulf %107, %108 : vector<10x64xf32>
    %110 = vector.broadcast %91 : vector<1x64xf32> to vector<10x64xf32>
    %111 = arith.addf %109, %110 : vector<10x64xf32>
    %c0_66 = arith.constant 0 : index
    %c0_67 = arith.constant 0 : index
    %c0_68 = arith.constant 0 : index
    %112 = vector.load %arg14[%c0_66, %c0_67, %c0_68] : memref<2x64x256xf32, #tpu.memory_space<vmem>>, vector<1x64x256xf32>
    %113 = vector.shape_cast %112 : vector<1x64x256xf32> to vector<64x256xf32>
    %cst_69 = arith.constant dense<0.000000e+00> : vector<10x256xf32>
    %114 = tpu.matmul %111, %113, %cst_69 {dimension_numbers = #tpu.dot_dimension_numbers<[1], [0], [0], [1], [0, 0, 1, 1], [], []>} : vector<10x64xf32>, vector<64x256xf32>, vector<10x256xf32> -> vector<10x256xf32>
    %c0_70 = arith.constant 0 : index
    %c0_71 = arith.constant 0 : index
    %c0_72 = arith.constant 0 : index
    %115 = vector.load %arg15[%c0_70, %c0_71, %c0_72] : memref<2x1x256xf32, #tpu.memory_space<vmem>>, vector<1x1x256xf32>
    %116 = vector.shape_cast %115 : vector<1x1x256xf32> to vector<1x256xf32>
    %117 = vector.broadcast %116 : vector<1x256xf32> to vector<10x256xf32>
    %118 = arith.addf %114, %117 : vector<10x256xf32>
    %cst_73 = arith.constant 1.702000e+00 : f32
    %119 = vector.broadcast %cst_73 : f32 to vector<10x256xf32>
    %120 = arith.mulf %119, %118 : vector<10x256xf32>
    %121 = arith.negf %120 : vector<10x256xf32>
    %122 = math.exp %121 : vector<10x256xf32>
    %cst_74 = arith.constant 1.000000e+00 : f32
    %123 = vector.broadcast %cst_74 : f32 to vector<10x256xf32>
    %124 = arith.addf %123, %122 : vector<10x256xf32>
    %125 = arith.divf %123, %124 : vector<10x256xf32>
    %126 = arith.mulf %118, %125 : vector<10x256xf32>
    %c0_75 = arith.constant 0 : index
    %c0_76 = arith.constant 0 : index
    %c0_77 = arith.constant 0 : index
    %127 = vector.load %arg16[%c0_75, %c0_76, %c0_77] : memref<2x256x64xf32, #tpu.memory_space<vmem>>, vector<1x256x64xf32>
    %128 = vector.shape_cast %127 : vector<1x256x64xf32> to vector<256x64xf32>
    %cst_78 = arith.constant dense<0.000000e+00> : vector<10x64xf32>
    %129 = tpu.matmul %126, %128, %cst_78 {dimension_numbers = #tpu.dot_dimension_numbers<[1], [0], [0], [1], [0, 0, 1, 1], [], []>} : vector<10x256xf32>, vector<256x64xf32>, vector<10x64xf32> -> vector<10x64xf32>
    %130 = arith.addf %87, %129 : vector<10x64xf32>
    %c0_79 = arith.constant 0 : index
    %c0_80 = arith.constant 0 : index
    %c0_81 = arith.constant 0 : index
    %131 = vector.load %arg17[%c0_79, %c0_80, %c0_81] : memref<2x1x64xf32, #tpu.memory_space<vmem>>, vector<1x1x64xf32>
    %132 = vector.shape_cast %131 : vector<1x1x64xf32> to vector<1x64xf32>
    %133 = vector.broadcast %132 : vector<1x64xf32> to vector<10x64xf32>
    %134 = arith.addf %130, %133 : vector<10x64xf32>
    %c1 = arith.constant 1 : index
    %c0_82 = arith.constant 0 : index
    %c0_83 = arith.constant 0 : index
    %135 = vector.load %arg6[%c1, %c0_82, %c0_83] : memref<2x1x64xf32, #tpu.memory_space<vmem>>, vector<1x1x64xf32>
    %136 = vector.shape_cast %135 : vector<1x1x64xf32> to vector<1x64xf32>
    %c1_84 = arith.constant 1 : index
    %c0_85 = arith.constant 0 : index
    %c0_86 = arith.constant 0 : index
    %137 = vector.load %arg7[%c1_84, %c0_85, %c0_86] : memref<2x1x64xf32, #tpu.memory_space<vmem>>, vector<1x1x64xf32>
    %138 = vector.shape_cast %137 : vector<1x1x64xf32> to vector<1x64xf32>
    %cst_87 = arith.constant dense<0.000000e+00> : vector<10xf32>
    %139 = vector.multi_reduction <add>, %134, %cst_87 [1] : vector<10x64xf32> to vector<10xf32>
    %140 = vector.shape_cast %139 : vector<10xf32> to vector<10x1xf32>
    %cst_88 = arith.constant 6.400000e+01 : f32
    %141 = vector.broadcast %cst_88 : f32 to vector<10x1xf32>
    %142 = arith.divf %140, %141 : vector<10x1xf32>
    %143 = vector.broadcast %142 : vector<10x1xf32> to vector<10x64xf32>
    %144 = arith.subf %134, %143 : vector<10x64xf32>
    %145 = arith.mulf %144, %144 : vector<10x64xf32>
    %cst_89 = arith.constant dense<0.000000e+00> : vector<10xf32>
    %146 = vector.multi_reduction <add>, %145, %cst_89 [1] : vector<10x64xf32> to vector<10xf32>
    %147 = vector.shape_cast %146 : vector<10xf32> to vector<10x1xf32>
    %cst_90 = arith.constant 6.400000e+01 : f32
    %148 = vector.broadcast %cst_90 : f32 to vector<10x1xf32>
    %149 = arith.divf %147, %148 : vector<10x1xf32>
    %cst_91 = arith.constant 9.99999974E-6 : f32
    %150 = vector.broadcast %cst_91 : f32 to vector<10x1xf32>
    %151 = arith.addf %149, %150 : vector<10x1xf32>
    %152 = math.rsqrt %151 : vector<10x1xf32>
    %153 = vector.broadcast %152 : vector<10x1xf32> to vector<10x64xf32>
    %154 = arith.mulf %144, %153 : vector<10x64xf32>
    %155 = vector.broadcast %136 : vector<1x64xf32> to vector<10x64xf32>
    %156 = arith.mulf %154, %155 : vector<10x64xf32>
    %157 = vector.broadcast %138 : vector<1x64xf32> to vector<10x64xf32>
    %158 = arith.addf %156, %157 : vector<10x64xf32>
    %c1_92 = arith.constant 1 : index
    %c0_93 = arith.constant 0 : index
    %c0_94 = arith.constant 0 : index
    %159 = vector.load %arg8[%c1_92, %c0_93, %c0_94] : memref<2x64x192xf32, #tpu.memory_space<vmem>>, vector<1x64x192xf32>
    %160 = vector.shape_cast %159 : vector<1x64x192xf32> to vector<64x192xf32>
    %cst_95 = arith.constant dense<0.000000e+00> : vector<10x192xf32>
    %161 = tpu.matmul %158, %160, %cst_95 {dimension_numbers = #tpu.dot_dimension_numbers<[1], [0], [0], [1], [0, 0, 1, 1], [], []>} : vector<10x64xf32>, vector<64x192xf32>, vector<10x192xf32> -> vector<10x192xf32>
    %c1_96 = arith.constant 1 : index
    %c0_97 = arith.constant 0 : index
    %c0_98 = arith.constant 0 : index
    %162 = vector.load %arg9[%c1_96, %c0_97, %c0_98] : memref<2x1x192xf32, #tpu.memory_space<vmem>>, vector<1x1x192xf32>
    %163 = vector.shape_cast %162 : vector<1x1x192xf32> to vector<1x192xf32>
    %164 = vector.broadcast %163 : vector<1x192xf32> to vector<10x192xf32>
    %165 = arith.addf %161, %164 : vector<10x192xf32>
    %c0_99 = arith.constant 0 : index
    %c0_100 = arith.constant 0 : index
    %166 = vector.load %arg41[%c0_99, %c0_100] : memref<10x192xf32, #tpu.memory_space<vmem>>, vector<10x192xf32>
    tpu.vector_store %arg41[%c0_99, %c0_100], %165 {strides = array<i32>} : memref<10x192xf32, #tpu.memory_space<vmem>>, vector<10x192xf32>,
    %c1_101 = arith.constant 1 : index
    %c0_102 = arith.constant 0 : index
    %c0_103 = arith.constant 0 : index
    %167 = vector.load %arg10[%c1_101, %c0_102, %c0_103] : memref<2x64x64xf32, #tpu.memory_space<vmem>>, vector<1x64x64xf32>
    %168 = vector.shape_cast %167 : vector<1x64x64xf32> to vector<64x64xf32>
    %c0_104 = arith.constant 0 : index
    %c0_105 = arith.constant 0 : index
    %169 = vector.load %arg41[%c0_104, %c0_105] : memref<10x192xf32, #tpu.memory_space<vmem>>, vector<10x64xf32>
    %c0_106 = arith.constant 0 : index
    %c64_107 = arith.constant 64 : index
    %170 = vector.load %arg41[%c0_106, %c64_107] : memref<10x192xf32, #tpu.memory_space<vmem>>, vector<10x64xf32>
    %c0_108 = arith.constant 0 : index
    %c128_109 = arith.constant 128 : index
    %171 = vector.load %arg41[%c0_108, %c128_109] : memref<10x192xf32, #tpu.memory_space<vmem>>, vector<10x64xf32>
    %cst_110 = arith.constant 1.250000e-01 : f32
    %172 = vector.broadcast %cst_110 : f32 to vector<10x64xf32>
    %173 = arith.mulf %169, %172 : vector<10x64xf32>
    %cst_111 = arith.constant dense<0.000000e+00> : vector<10x10xf32>
    %174 = tpu.matmul %173, %170, %cst_111 {dimension_numbers = #tpu.dot_dimension_numbers<[1], [1], [0], [0], [0, 0, 1, 0], [], []>} : vector<10x64xf32>, vector<10x64xf32>, vector<10x10xf32> -> vector<10x10xf32>
    %175 = arith.addf %174, %29 : vector<10x10xf32>
    %cst_112 = arith.constant dense<0xFF800000> : vector<10xf32>
    %176 = vector.multi_reduction <maximumf>, %175, %cst_112 [1] : vector<10x10xf32> to vector<10xf32>
    %177 = vector.shape_cast %176 : vector<10xf32> to vector<10x1xf32>
    %178 = vector.broadcast %177 : vector<10x1xf32> to vector<10x10xf32>
    %179 = arith.subf %175, %178 : vector<10x10xf32>
    %180 = math.exp %179 : vector<10x10xf32>
    %cst_113 = arith.constant dense<0.000000e+00> : vector<10xf32>
    %181 = vector.multi_reduction <add>, %180, %cst_113 [1] : vector<10x10xf32> to vector<10xf32>
    %182 = vector.shape_cast %181 : vector<10xf32> to vector<10x1xf32>
    %183 = tpu.reciprocal %182 {approx = true} : vector<10x1xf32> -> vector<10x1xf32>
    %184 = vector.broadcast %183 : vector<10x1xf32> to vector<10x10xf32>
    %185 = arith.mulf %180, %184 : vector<10x10xf32>
    %cst_114 = arith.constant dense<0.000000e+00> : vector<10x64xf32>
    %186 = tpu.matmul %185, %171, %cst_114 {dimension_numbers = #tpu.dot_dimension_numbers<[1], [0], [0], [1], [0, 0, 1, 1], [], []>} : vector<10x10xf32>, vector<10x64xf32>, vector<10x64xf32> -> vector<10x64xf32>
    %cst_115 = arith.constant dense<0.000000e+00> : vector<10x64xf32>
    %187 = tpu.matmul %186, %168, %cst_115 {dimension_numbers = #tpu.dot_dimension_numbers<[1], [0], [0], [1], [0, 0, 1, 1], [], []>} : vector<10x64xf32>, vector<64x64xf32>, vector<10x64xf32> -> vector<10x64xf32>
    %188 = arith.addf %134, %187 : vector<10x64xf32>
    %c1_116 = arith.constant 1 : index
    %c0_117 = arith.constant 0 : index
    %c0_118 = arith.constant 0 : index
    %189 = vector.load %arg11[%c1_116, %c0_117, %c0_118] : memref<2x1x64xf32, #tpu.memory_space<vmem>>, vector<1x1x64xf32>
    %190 = vector.shape_cast %189 : vector<1x1x64xf32> to vector<1x64xf32>
    %191 = vector.broadcast %190 : vector<1x64xf32> to vector<10x64xf32>
    %192 = arith.addf %188, %191 : vector<10x64xf32>
    %c1_119 = arith.constant 1 : index
    %c0_120 = arith.constant 0 : index
    %c0_121 = arith.constant 0 : index
    %193 = vector.load %arg12[%c1_119, %c0_120, %c0_121] : memref<2x1x64xf32, #tpu.memory_space<vmem>>, vector<1x1x64xf32>
    %194 = vector.shape_cast %193 : vector<1x1x64xf32> to vector<1x64xf32>
    %c1_122 = arith.constant 1 : index
    %c0_123 = arith.constant 0 : index
    %c0_124 = arith.constant 0 : index
    %195 = vector.load %arg13[%c1_122, %c0_123, %c0_124] : memref<2x1x64xf32, #tpu.memory_space<vmem>>, vector<1x1x64xf32>
    %196 = vector.shape_cast %195 : vector<1x1x64xf32> to vector<1x64xf32>
    %cst_125 = arith.constant dense<0.000000e+00> : vector<10xf32>
    %197 = vector.multi_reduction <add>, %192, %cst_125 [1] : vector<10x64xf32> to vector<10xf32>
    %198 = vector.shape_cast %197 : vector<10xf32> to vector<10x1xf32>
    %cst_126 = arith.constant 6.400000e+01 : f32
    %199 = vector.broadcast %cst_126 : f32 to vector<10x1xf32>
    %200 = arith.divf %198, %199 : vector<10x1xf32>
    %201 = vector.broadcast %200 : vector<10x1xf32> to vector<10x64xf32>
    %202 = arith.subf %192, %201 : vector<10x64xf32>
    %203 = arith.mulf %202, %202 : vector<10x64xf32>
    %cst_127 = arith.constant dense<0.000000e+00> : vector<10xf32>
    %204 = vector.multi_reduction <add>, %203, %cst_127 [1] : vector<10x64xf32> to vector<10xf32>
    %205 = vector.shape_cast %204 : vector<10xf32> to vector<10x1xf32>
    %cst_128 = arith.constant 6.400000e+01 : f32
    %206 = vector.broadcast %cst_128 : f32 to vector<10x1xf32>
    %207 = arith.divf %205, %206 : vector<10x1xf32>
    %cst_129 = arith.constant 9.99999974E-6 : f32
    %208 = vector.broadcast %cst_129 : f32 to vector<10x1xf32>
    %209 = arith.addf %207, %208 : vector<10x1xf32>
    %210 = math.rsqrt %209 : vector<10x1xf32>
    %211 = vector.broadcast %210 : vector<10x1xf32> to vector<10x64xf32>
    %212 = arith.mulf %202, %211 : vector<10x64xf32>
    %213 = vector.broadcast %194 : vector<1x64xf32> to vector<10x64xf32>
    %214 = arith.mulf %212, %213 : vector<10x64xf32>
    %215 = vector.broadcast %196 : vector<1x64xf32> to vector<10x64xf32>
    %216 = arith.addf %214, %215 : vector<10x64xf32>
    %c1_130 = arith.constant 1 : index
    %c0_131 = arith.constant 0 : index
    %c0_132 = arith.constant 0 : index
    %217 = vector.load %arg14[%c1_130, %c0_131, %c0_132] : memref<2x64x256xf32, #tpu.memory_space<vmem>>, vector<1x64x256xf32>
    %218 = vector.shape_cast %217 : vector<1x64x256xf32> to vector<64x256xf32>
    %cst_133 = arith.constant dense<0.000000e+00> : vector<10x256xf32>
    %219 = tpu.matmul %216, %218, %cst_133 {dimension_numbers = #tpu.dot_dimension_numbers<[1], [0], [0], [1], [0, 0, 1, 1], [], []>} : vector<10x64xf32>, vector<64x256xf32>, vector<10x256xf32> -> vector<10x256xf32>
    %c1_134 = arith.constant 1 : index
    %c0_135 = arith.constant 0 : index
    %c0_136 = arith.constant 0 : index
    %220 = vector.load %arg15[%c1_134, %c0_135, %c0_136] : memref<2x1x256xf32, #tpu.memory_space<vmem>>, vector<1x1x256xf32>
    %221 = vector.shape_cast %220 : vector<1x1x256xf32> to vector<1x256xf32>
    %222 = vector.broadcast %221 : vector<1x256xf32> to vector<10x256xf32>
    %223 = arith.addf %219, %222 : vector<10x256xf32>
    %cst_137 = arith.constant 1.702000e+00 : f32
    %224 = vector.broadcast %cst_137 : f32 to vector<10x256xf32>
    %225 = arith.mulf %224, %223 : vector<10x256xf32>
    %226 = arith.negf %225 : vector<10x256xf32>
    %227 = math.exp %226 : vector<10x256xf32>
    %cst_138 = arith.constant 1.000000e+00 : f32
    %228 = vector.broadcast %cst_138 : f32 to vector<10x256xf32>
    %229 = arith.addf %228, %227 : vector<10x256xf32>
    %230 = arith.divf %228, %229 : vector<10x256xf32>
    %231 = arith.mulf %223, %230 : vector<10x256xf32>
    %c1_139 = arith.constant 1 : index
    %c0_140 = arith.constant 0 : index
    %c0_141 = arith.constant 0 : index
    %232 = vector.load %arg16[%c1_139, %c0_140, %c0_141] : memref<2x256x64xf32, #tpu.memory_space<vmem>>, vector<1x256x64xf32>
    %233 = vector.shape_cast %232 : vector<1x256x64xf32> to vector<256x64xf32>
    %cst_142 = arith.constant dense<0.000000e+00> : vector<10x64xf32>
    %234 = tpu.matmul %231, %233, %cst_142 {dimension_numbers = #tpu.dot_dimension_numbers<[1], [0], [0], [1], [0, 0, 1, 1], [], []>} : vector<10x256xf32>, vector<256x64xf32>, vector<10x64xf32> -> vector<10x64xf32>
    %235 = arith.addf %192, %234 : vector<10x64xf32>
    %c1_143 = arith.constant 1 : index
    %c0_144 = arith.constant 0 : index
    %c0_145 = arith.constant 0 : index
    %236 = vector.load %arg17[%c1_143, %c0_144, %c0_145] : memref<2x1x64xf32, #tpu.memory_space<vmem>>, vector<1x1x64xf32>
    %237 = vector.shape_cast %236 : vector<1x1x64xf32> to vector<1x64xf32>
    %238 = vector.broadcast %237 : vector<1x64xf32> to vector<10x64xf32>
    %239 = arith.addf %235, %238 : vector<10x64xf32>
    %c0_146 = arith.constant 0 : index
    %c0_147 = arith.constant 0 : index
    %240 = vector.load %arg19[%c0_146, %c0_147] : memref<2x10xf32, #tpu.memory_space<vmem>>, vector<2x10xf32>
    %cst_148 = arith.constant dense<0.000000e+00> : vector<2x64xf32>
    %241 = tpu.matmul %240, %239, %cst_148 {dimension_numbers = #tpu.dot_dimension_numbers<[1], [0], [0], [1], [0, 0, 1, 1], [], []>} : vector<2x10xf32>, vector<10x64xf32>, vector<2x64xf32> -> vector<2x64xf32>
    %c0_149 = arith.constant 0 : index
    %c0_150 = arith.constant 0 : index
    %242 = vector.load %arg20[%c0_149, %c0_150] : memref<64x32xf32, #tpu.memory_space<vmem>>, vector<64x32xf32>
    %cst_151 = arith.constant dense<0.000000e+00> : vector<2x32xf32>
    %243 = tpu.matmul %241, %242, %cst_151 {dimension_numbers = #tpu.dot_dimension_numbers<[1], [0], [0], [1], [0, 0, 1, 1], [], []>} : vector<2x64xf32>, vector<64x32xf32>, vector<2x32xf32> -> vector<2x32xf32>
    %c0_152 = arith.constant 0 : index
    %c0_153 = arith.constant 0 : index
    %244 = vector.load %arg21[%c0_152, %c0_153] : memref<16x64xf32, #tpu.memory_space<vmem>>, vector<16x64xf32>
    %c0_154 = arith.constant 0 : index
    %c0_155 = arith.constant 0 : index
    %245 = vector.load %arg34[%c0_154, %c0_155] : memref<16x16xf32, #tpu.memory_space<vmem>>, vector<16x16xf32>
    %c0_156 = arith.constant 0 : index
    %c0_157 = arith.constant 0 : index
    %c0_158 = arith.constant 0 : index
    %246 = vector.load %arg22[%c0_156, %c0_157, %c0_158] : memref<2x1x64xf32, #tpu.memory_space<vmem>>, vector<1x1x64xf32>
    %247 = vector.shape_cast %246 : vector<1x1x64xf32> to vector<1x64xf32>
    %c0_159 = arith.constant 0 : index
    %c0_160 = arith.constant 0 : index
    %c0_161 = arith.constant 0 : index
    %248 = vector.load %arg23[%c0_159, %c0_160, %c0_161] : memref<2x1x64xf32, #tpu.memory_space<vmem>>, vector<1x1x64xf32>
    %249 = vector.shape_cast %248 : vector<1x1x64xf32> to vector<1x64xf32>
    %cst_162 = arith.constant dense<0.000000e+00> : vector<16xf32>
    %250 = vector.multi_reduction <add>, %244, %cst_162 [1] : vector<16x64xf32> to vector<16xf32>
    %251 = vector.shape_cast %250 : vector<16xf32> to vector<16x1xf32>
    %cst_163 = arith.constant 6.400000e+01 : f32
    %252 = vector.broadcast %cst_163 : f32 to vector<16x1xf32>
    %253 = arith.divf %251, %252 : vector<16x1xf32>
    %254 = vector.broadcast %253 : vector<16x1xf32> to vector<16x64xf32>
    %255 = arith.subf %244, %254 : vector<16x64xf32>
    %256 = arith.mulf %255, %255 : vector<16x64xf32>
    %cst_164 = arith.constant dense<0.000000e+00> : vector<16xf32>
    %257 = vector.multi_reduction <add>, %256, %cst_164 [1] : vector<16x64xf32> to vector<16xf32>
    %258 = vector.shape_cast %257 : vector<16xf32> to vector<16x1xf32>
    %cst_165 = arith.constant 6.400000e+01 : f32
    %259 = vector.broadcast %cst_165 : f32 to vector<16x1xf32>
    %260 = arith.divf %258, %259 : vector<16x1xf32>
    %cst_166 = arith.constant 9.99999974E-6 : f32
    %261 = vector.broadcast %cst_166 : f32 to vector<16x1xf32>
    %262 = arith.addf %260, %261 : vector<16x1xf32>
    %263 = math.rsqrt %262 : vector<16x1xf32>
    %264 = vector.broadcast %263 : vector<16x1xf32> to vector<16x64xf32>
    %265 = arith.mulf %255, %264 : vector<16x64xf32>
    %266 = vector.broadcast %247 : vector<1x64xf32> to vector<16x64xf32>
    %267 = arith.mulf %265, %266 : vector<16x64xf32>
    %268 = vector.broadcast %249 : vector<1x64xf32> to vector<16x64xf32>
    %269 = arith.addf %267, %268 : vector<16x64xf32>
    %c0_167 = arith.constant 0 : index
    %c0_168 = arith.constant 0 : index
    %c0_169 = arith.constant 0 : index
    %270 = vector.load %arg24[%c0_167, %c0_168, %c0_169] : memref<2x64x192xf32, #tpu.memory_space<vmem>>, vector<1x64x192xf32>
    %271 = vector.shape_cast %270 : vector<1x64x192xf32> to vector<64x192xf32>
    %cst_170 = arith.constant dense<0.000000e+00> : vector<16x192xf32>
    %272 = tpu.matmul %269, %271, %cst_170 {dimension_numbers = #tpu.dot_dimension_numbers<[1], [0], [0], [1], [0, 0, 1, 1], [], []>} : vector<16x64xf32>, vector<64x192xf32>, vector<16x192xf32> -> vector<16x192xf32>
    %c0_171 = arith.constant 0 : index
    %c0_172 = arith.constant 0 : index
    %c0_173 = arith.constant 0 : index
    %273 = vector.load %arg25[%c0_171, %c0_172, %c0_173] : memref<2x1x192xf32, #tpu.memory_space<vmem>>, vector<1x1x192xf32>
    %274 = vector.shape_cast %273 : vector<1x1x192xf32> to vector<1x192xf32>
    %275 = vector.broadcast %274 : vector<1x192xf32> to vector<16x192xf32>
    %276 = arith.addf %272, %275 : vector<16x192xf32>
    %c0_174 = arith.constant 0 : index
    %c0_175 = arith.constant 0 : index
    %277 = vector.load %arg42[%c0_174, %c0_175] : memref<16x192xf32, #tpu.memory_space<vmem>>, vector<16x192xf32>
    tpu.vector_store %arg42[%c0_174, %c0_175], %276 {strides = array<i32>} : memref<16x192xf32, #tpu.memory_space<vmem>>, vector<16x192xf32>,
    %c0_176 = arith.constant 0 : index
    %c0_177 = arith.constant 0 : index
    %c0_178 = arith.constant 0 : index
    %278 = vector.load %arg26[%c0_176, %c0_177, %c0_178] : memref<2x64x64xf32, #tpu.memory_space<vmem>>, vector<1x64x64xf32>
    %279 = vector.shape_cast %278 : vector<1x64x64xf32> to vector<64x64xf32>
    %c0_179 = arith.constant 0 : index
    %c0_180 = arith.constant 0 : index
    %280 = vector.load %arg42[%c0_179, %c0_180] : memref<16x192xf32, #tpu.memory_space<vmem>>, vector<16x32xf32>
    %c0_181 = arith.constant 0 : index
    %c64_182 = arith.constant 64 : index
    %281 = vector.load %arg42[%c0_181, %c64_182] : memref<16x192xf32, #tpu.memory_space<vmem>>, vector<16x32xf32>
    %c0_183 = arith.constant 0 : index
    %c128_184 = arith.constant 128 : index
    %282 = vector.load %arg42[%c0_183, %c128_184] : memref<16x192xf32, #tpu.memory_space<vmem>>, vector<16x32xf32>
    %cst_185 = arith.constant 0.176776692 : f32
    %283 = vector.broadcast %cst_185 : f32 to vector<16x32xf32>
    %284 = arith.mulf %280, %283 : vector<16x32xf32>
    %cst_186 = arith.constant dense<0.000000e+00> : vector<16x16xf32>
    %285 = tpu.matmul %284, %281, %cst_186 {dimension_numbers = #tpu.dot_dimension_numbers<[1], [1], [0], [0], [0, 0, 1, 0], [], []>} : vector<16x32xf32>, vector<16x32xf32>, vector<16x16xf32> -> vector<16x16xf32>
    %286 = arith.addf %285, %245 : vector<16x16xf32>
    %cst_187 = arith.constant dense<0xFF800000> : vector<16xf32>
    %287 = vector.multi_reduction <maximumf>, %286, %cst_187 [1] : vector<16x16xf32> to vector<16xf32>
    %288 = vector.shape_cast %287 : vector<16xf32> to vector<16x1xf32>
    %289 = vector.broadcast %288 : vector<16x1xf32> to vector<16x16xf32>
    %290 = arith.subf %286, %289 : vector<16x16xf32>
    %291 = math.exp %290 : vector<16x16xf32>
    %cst_188 = arith.constant dense<0.000000e+00> : vector<16xf32>
    %292 = vector.multi_reduction <add>, %291, %cst_188 [1] : vector<16x16xf32> to vector<16xf32>
    %293 = vector.shape_cast %292 : vector<16xf32> to vector<16x1xf32>
    %294 = tpu.reciprocal %293 {approx = true} : vector<16x1xf32> -> vector<16x1xf32>
    %295 = vector.broadcast %294 : vector<16x1xf32> to vector<16x16xf32>
    %296 = arith.mulf %291, %295 : vector<16x16xf32>
    %cst_189 = arith.constant dense<0.000000e+00> : vector<16x32xf32>
    %297 = tpu.matmul %296, %282, %cst_189 {dimension_numbers = #tpu.dot_dimension_numbers<[1], [0], [0], [1], [0, 0, 1, 1], [], []>} : vector<16x16xf32>, vector<16x32xf32>, vector<16x32xf32> -> vector<16x32xf32>
    %298 = vector.extract_strided_slice %279 {offsets = [0, 0], sizes = [32, 64], strides = [1, 1]} : vector<64x64xf32> to vector<32x64xf32>
    %cst_190 = arith.constant dense<0.000000e+00> : vector<16x64xf32>
    %299 = tpu.matmul %297, %298, %cst_190 {dimension_numbers = #tpu.dot_dimension_numbers<[1], [0], [0], [1], [0, 0, 1, 1], [], []>} : vector<16x32xf32>, vector<32x64xf32>, vector<16x64xf32> -> vector<16x64xf32>
    %c0_191 = arith.constant 0 : index
    %c32 = arith.constant 32 : index
    %300 = vector.load %arg42[%c0_191, %c32] : memref<16x192xf32, #tpu.memory_space<vmem>>, vector<16x32xf32>
    %c0_192 = arith.constant 0 : index
    %c96 = arith.constant 96 : index
    %301 = vector.load %arg42[%c0_192, %c96] : memref<16x192xf32, #tpu.memory_space<vmem>>, vector<16x32xf32>
    %c0_193 = arith.constant 0 : index
    %c160 = arith.constant 160 : index
    %302 = vector.load %arg42[%c0_193, %c160] : memref<16x192xf32, #tpu.memory_space<vmem>>, vector<16x32xf32>
    %cst_194 = arith.constant 0.176776692 : f32
    %303 = vector.broadcast %cst_194 : f32 to vector<16x32xf32>
    %304 = arith.mulf %300, %303 : vector<16x32xf32>
    %cst_195 = arith.constant dense<0.000000e+00> : vector<16x16xf32>
    %305 = tpu.matmul %304, %301, %cst_195 {dimension_numbers = #tpu.dot_dimension_numbers<[1], [1], [0], [0], [0, 0, 1, 0], [], []>} : vector<16x32xf32>, vector<16x32xf32>, vector<16x16xf32> -> vector<16x16xf32>
    %306 = arith.addf %305, %245 : vector<16x16xf32>
    %cst_196 = arith.constant dense<0xFF800000> : vector<16xf32>
    %307 = vector.multi_reduction <maximumf>, %306, %cst_196 [1] : vector<16x16xf32> to vector<16xf32>
    %308 = vector.shape_cast %307 : vector<16xf32> to vector<16x1xf32>
    %309 = vector.broadcast %308 : vector<16x1xf32> to vector<16x16xf32>
    %310 = arith.subf %306, %309 : vector<16x16xf32>
    %311 = math.exp %310 : vector<16x16xf32>
    %cst_197 = arith.constant dense<0.000000e+00> : vector<16xf32>
    %312 = vector.multi_reduction <add>, %311, %cst_197 [1] : vector<16x16xf32> to vector<16xf32>
    %313 = vector.shape_cast %312 : vector<16xf32> to vector<16x1xf32>
    %314 = tpu.reciprocal %313 {approx = true} : vector<16x1xf32> -> vector<16x1xf32>
    %315 = vector.broadcast %314 : vector<16x1xf32> to vector<16x16xf32>
    %316 = arith.mulf %311, %315 : vector<16x16xf32>
    %cst_198 = arith.constant dense<0.000000e+00> : vector<16x32xf32>
    %317 = tpu.matmul %316, %302, %cst_198 {dimension_numbers = #tpu.dot_dimension_numbers<[1], [0], [0], [1], [0, 0, 1, 1], [], []>} : vector<16x16xf32>, vector<16x32xf32>, vector<16x32xf32> -> vector<16x32xf32>
    %318 = vector.extract_strided_slice %279 {offsets = [32, 0], sizes = [32, 64], strides = [1, 1]} : vector<64x64xf32> to vector<32x64xf32>
    %cst_199 = arith.constant dense<0.000000e+00> : vector<16x64xf32>
    %319 = tpu.matmul %317, %318, %cst_199 {dimension_numbers = #tpu.dot_dimension_numbers<[1], [0], [0], [1], [0, 0, 1, 1], [], []>} : vector<16x32xf32>, vector<32x64xf32>, vector<16x64xf32> -> vector<16x64xf32>
    %320 = arith.addf %299, %319 : vector<16x64xf32>
    %321 = arith.addf %244, %320 : vector<16x64xf32>
    %c0_200 = arith.constant 0 : index
    %c0_201 = arith.constant 0 : index
    %c0_202 = arith.constant 0 : index
    %322 = vector.load %arg27[%c0_200, %c0_201, %c0_202] : memref<2x1x64xf32, #tpu.memory_space<vmem>>, vector<1x1x64xf32>
    %323 = vector.shape_cast %322 : vector<1x1x64xf32> to vector<1x64xf32>
    %324 = vector.broadcast %323 : vector<1x64xf32> to vector<16x64xf32>
    %325 = arith.addf %321, %324 : vector<16x64xf32>
    %c0_203 = arith.constant 0 : index
    %c0_204 = arith.constant 0 : index
    %c0_205 = arith.constant 0 : index
    %326 = vector.load %arg28[%c0_203, %c0_204, %c0_205] : memref<2x1x64xf32, #tpu.memory_space<vmem>>, vector<1x1x64xf32>
    %327 = vector.shape_cast %326 : vector<1x1x64xf32> to vector<1x64xf32>
    %c0_206 = arith.constant 0 : index
    %c0_207 = arith.constant 0 : index
    %c0_208 = arith.constant 0 : index
    %328 = vector.load %arg29[%c0_206, %c0_207, %c0_208] : memref<2x1x64xf32, #tpu.memory_space<vmem>>, vector<1x1x64xf32>
    %329 = vector.shape_cast %328 : vector<1x1x64xf32> to vector<1x64xf32>
    %cst_209 = arith.constant dense<0.000000e+00> : vector<16xf32>
    %330 = vector.multi_reduction <add>, %325, %cst_209 [1] : vector<16x64xf32> to vector<16xf32>
    %331 = vector.shape_cast %330 : vector<16xf32> to vector<16x1xf32>
    %cst_210 = arith.constant 6.400000e+01 : f32
    %332 = vector.broadcast %cst_210 : f32 to vector<16x1xf32>
    %333 = arith.divf %331, %332 : vector<16x1xf32>
    %334 = vector.broadcast %333 : vector<16x1xf32> to vector<16x64xf32>
    %335 = arith.subf %325, %334 : vector<16x64xf32>
    %336 = arith.mulf %335, %335 : vector<16x64xf32>
    %cst_211 = arith.constant dense<0.000000e+00> : vector<16xf32>
    %337 = vector.multi_reduction <add>, %336, %cst_211 [1] : vector<16x64xf32> to vector<16xf32>
    %338 = vector.shape_cast %337 : vector<16xf32> to vector<16x1xf32>
    %cst_212 = arith.constant 6.400000e+01 : f32
    %339 = vector.broadcast %cst_212 : f32 to vector<16x1xf32>
    %340 = arith.divf %338, %339 : vector<16x1xf32>
    %cst_213 = arith.constant 9.99999974E-6 : f32
    %341 = vector.broadcast %cst_213 : f32 to vector<16x1xf32>
    %342 = arith.addf %340, %341 : vector<16x1xf32>
    %343 = math.rsqrt %342 : vector<16x1xf32>
    %344 = vector.broadcast %343 : vector<16x1xf32> to vector<16x64xf32>
    %345 = arith.mulf %335, %344 : vector<16x64xf32>
    %346 = vector.broadcast %327 : vector<1x64xf32> to vector<16x64xf32>
    %347 = arith.mulf %345, %346 : vector<16x64xf32>
    %348 = vector.broadcast %329 : vector<1x64xf32> to vector<16x64xf32>
    %349 = arith.addf %347, %348 : vector<16x64xf32>
    %c0_214 = arith.constant 0 : index
    %c0_215 = arith.constant 0 : index
    %c0_216 = arith.constant 0 : index
    %350 = vector.load %arg30[%c0_214, %c0_215, %c0_216] : memref<2x64x256xf32, #tpu.memory_space<vmem>>, vector<1x64x256xf32>
    %351 = vector.shape_cast %350 : vector<1x64x256xf32> to vector<64x256xf32>
    %cst_217 = arith.constant dense<0.000000e+00> : vector<16x256xf32>
    %352 = tpu.matmul %349, %351, %cst_217 {dimension_numbers = #tpu.dot_dimension_numbers<[1], [0], [0], [1], [0, 0, 1, 1], [], []>} : vector<16x64xf32>, vector<64x256xf32>, vector<16x256xf32> -> vector<16x256xf32>
    %c0_218 = arith.constant 0 : index
    %c0_219 = arith.constant 0 : index
    %c0_220 = arith.constant 0 : index
    %353 = vector.load %arg31[%c0_218, %c0_219, %c0_220] : memref<2x1x256xf32, #tpu.memory_space<vmem>>, vector<1x1x256xf32>
    %354 = vector.shape_cast %353 : vector<1x1x256xf32> to vector<1x256xf32>
    %355 = vector.broadcast %354 : vector<1x256xf32> to vector<16x256xf32>
    %356 = arith.addf %352, %355 : vector<16x256xf32>
    %cst_221 = arith.constant 1.702000e+00 : f32
    %357 = vector.broadcast %cst_221 : f32 to vector<16x256xf32>
    %358 = arith.mulf %357, %356 : vector<16x256xf32>
    %359 = arith.negf %358 : vector<16x256xf32>
    %360 = math.exp %359 : vector<16x256xf32>
    %cst_222 = arith.constant 1.000000e+00 : f32
    %361 = vector.broadcast %cst_222 : f32 to vector<16x256xf32>
    %362 = arith.addf %361, %360 : vector<16x256xf32>
    %363 = arith.divf %361, %362 : vector<16x256xf32>
    %364 = arith.mulf %356, %363 : vector<16x256xf32>
    %c0_223 = arith.constant 0 : index
    %c0_224 = arith.constant 0 : index
    %c0_225 = arith.constant 0 : index
    %365 = vector.load %arg32[%c0_223, %c0_224, %c0_225] : memref<2x256x64xf32, #tpu.memory_space<vmem>>, vector<1x256x64xf32>
    %366 = vector.shape_cast %365 : vector<1x256x64xf32> to vector<256x64xf32>
    %cst_226 = arith.constant dense<0.000000e+00> : vector<16x64xf32>
    %367 = tpu.matmul %364, %366, %cst_226 {dimension_numbers = #tpu.dot_dimension_numbers<[1], [0], [0], [1], [0, 0, 1, 1], [], []>} : vector<16x256xf32>, vector<256x64xf32>, vector<16x64xf32> -> vector<16x64xf32>
    %368 = arith.addf %325, %367 : vector<16x64xf32>
    %c0_227 = arith.constant 0 : index
    %c0_228 = arith.constant 0 : index
    %c0_229 = arith.constant 0 : index
    %369 = vector.load %arg33[%c0_227, %c0_228, %c0_229] : memref<2x1x64xf32, #tpu.memory_space<vmem>>, vector<1x1x64xf32>
    %370 = vector.shape_cast %369 : vector<1x1x64xf32> to vector<1x64xf32>
    %371 = vector.broadcast %370 : vector<1x64xf32> to vector<16x64xf32>
    %372 = arith.addf %368, %371 : vector<16x64xf32>
    %c1_230 = arith.constant 1 : index
    %c0_231 = arith.constant 0 : index
    %c0_232 = arith.constant 0 : index
    %373 = vector.load %arg22[%c1_230, %c0_231, %c0_232] : memref<2x1x64xf32, #tpu.memory_space<vmem>>, vector<1x1x64xf32>
    %374 = vector.shape_cast %373 : vector<1x1x64xf32> to vector<1x64xf32>
    %c1_233 = arith.constant 1 : index
    %c0_234 = arith.constant 0 : index
    %c0_235 = arith.constant 0 : index
    %375 = vector.load %arg23[%c1_233, %c0_234, %c0_235] : memref<2x1x64xf32, #tpu.memory_space<vmem>>, vector<1x1x64xf32>
    %376 = vector.shape_cast %375 : vector<1x1x64xf32> to vector<1x64xf32>
    %cst_236 = arith.constant dense<0.000000e+00> : vector<16xf32>
    %377 = vector.multi_reduction <add>, %372, %cst_236 [1] : vector<16x64xf32> to vector<16xf32>
    %378 = vector.shape_cast %377 : vector<16xf32> to vector<16x1xf32>
    %cst_237 = arith.constant 6.400000e+01 : f32
    %379 = vector.broadcast %cst_237 : f32 to vector<16x1xf32>
    %380 = arith.divf %378, %379 : vector<16x1xf32>
    %381 = vector.broadcast %380 : vector<16x1xf32> to vector<16x64xf32>
    %382 = arith.subf %372, %381 : vector<16x64xf32>
    %383 = arith.mulf %382, %382 : vector<16x64xf32>
    %cst_238 = arith.constant dense<0.000000e+00> : vector<16xf32>
    %384 = vector.multi_reduction <add>, %383, %cst_238 [1] : vector<16x64xf32> to vector<16xf32>
    %385 = vector.shape_cast %384 : vector<16xf32> to vector<16x1xf32>
    %cst_239 = arith.constant 6.400000e+01 : f32
    %386 = vector.broadcast %cst_239 : f32 to vector<16x1xf32>
    %387 = arith.divf %385, %386 : vector<16x1xf32>
    %cst_240 = arith.constant 9.99999974E-6 : f32
    %388 = vector.broadcast %cst_240 : f32 to vector<16x1xf32>
    %389 = arith.addf %387, %388 : vector<16x1xf32>
    %390 = math.rsqrt %389 : vector<16x1xf32>
    %391 = vector.broadcast %390 : vector<16x1xf32> to vector<16x64xf32>
    %392 = arith.mulf %382, %391 : vector<16x64xf32>
    %393 = vector.broadcast %374 : vector<1x64xf32> to vector<16x64xf32>
    %394 = arith.mulf %392, %393 : vector<16x64xf32>
    %395 = vector.broadcast %376 : vector<1x64xf32> to vector<16x64xf32>
    %396 = arith.addf %394, %395 : vector<16x64xf32>
    %c1_241 = arith.constant 1 : index
    %c0_242 = arith.constant 0 : index
    %c0_243 = arith.constant 0 : index
    %397 = vector.load %arg24[%c1_241, %c0_242, %c0_243] : memref<2x64x192xf32, #tpu.memory_space<vmem>>, vector<1x64x192xf32>
    %398 = vector.shape_cast %397 : vector<1x64x192xf32> to vector<64x192xf32>
    %cst_244 = arith.constant dense<0.000000e+00> : vector<16x192xf32>
    %399 = tpu.matmul %396, %398, %cst_244 {dimension_numbers = #tpu.dot_dimension_numbers<[1], [0], [0], [1], [0, 0, 1, 1], [], []>} : vector<16x64xf32>, vector<64x192xf32>, vector<16x192xf32> -> vector<16x192xf32>
    %c1_245 = arith.constant 1 : index
    %c0_246 = arith.constant 0 : index
    %c0_247 = arith.constant 0 : index
    %400 = vector.load %arg25[%c1_245, %c0_246, %c0_247] : memref<2x1x192xf32, #tpu.memory_space<vmem>>, vector<1x1x192xf32>
    %401 = vector.shape_cast %400 : vector<1x1x192xf32> to vector<1x192xf32>
    %402 = vector.broadcast %401 : vector<1x192xf32> to vector<16x192xf32>
    %403 = arith.addf %399, %402 : vector<16x192xf32>
    %c0_248 = arith.constant 0 : index
    %c0_249 = arith.constant 0 : index
    %404 = vector.load %arg42[%c0_248, %c0_249] : memref<16x192xf32, #tpu.memory_space<vmem>>, vector<16x192xf32>
    tpu.vector_store %arg42[%c0_248, %c0_249], %403 {strides = array<i32>} : memref<16x192xf32, #tpu.memory_space<vmem>>, vector<16x192xf32>,
    %c1_250 = arith.constant 1 : index
    %c0_251 = arith.constant 0 : index
    %c0_252 = arith.constant 0 : index
    %405 = vector.load %arg26[%c1_250, %c0_251, %c0_252] : memref<2x64x64xf32, #tpu.memory_space<vmem>>, vector<1x64x64xf32>
    %406 = vector.shape_cast %405 : vector<1x64x64xf32> to vector<64x64xf32>
    %c0_253 = arith.constant 0 : index
    %c0_254 = arith.constant 0 : index
    %407 = vector.load %arg42[%c0_253, %c0_254] : memref<16x192xf32, #tpu.memory_space<vmem>>, vector<16x32xf32>
    %c0_255 = arith.constant 0 : index
    %c64_256 = arith.constant 64 : index
    %408 = vector.load %arg42[%c0_255, %c64_256] : memref<16x192xf32, #tpu.memory_space<vmem>>, vector<16x32xf32>
    %c0_257 = arith.constant 0 : index
    %c128_258 = arith.constant 128 : index
    %409 = vector.load %arg42[%c0_257, %c128_258] : memref<16x192xf32, #tpu.memory_space<vmem>>, vector<16x32xf32>
    %cst_259 = arith.constant 0.176776692 : f32
    %410 = vector.broadcast %cst_259 : f32 to vector<16x32xf32>
    %411 = arith.mulf %407, %410 : vector<16x32xf32>
    %cst_260 = arith.constant dense<0.000000e+00> : vector<16x16xf32>
    %412 = tpu.matmul %411, %408, %cst_260 {dimension_numbers = #tpu.dot_dimension_numbers<[1], [1], [0], [0], [0, 0, 1, 0], [], []>} : vector<16x32xf32>, vector<16x32xf32>, vector<16x16xf32> -> vector<16x16xf32>
    %413 = arith.addf %412, %245 : vector<16x16xf32>
    %cst_261 = arith.constant dense<0xFF800000> : vector<16xf32>
    %414 = vector.multi_reduction <maximumf>, %413, %cst_261 [1] : vector<16x16xf32> to vector<16xf32>
    %415 = vector.shape_cast %414 : vector<16xf32> to vector<16x1xf32>
    %416 = vector.broadcast %415 : vector<16x1xf32> to vector<16x16xf32>
    %417 = arith.subf %413, %416 : vector<16x16xf32>
    %418 = math.exp %417 : vector<16x16xf32>
    %cst_262 = arith.constant dense<0.000000e+00> : vector<16xf32>
    %419 = vector.multi_reduction <add>, %418, %cst_262 [1] : vector<16x16xf32> to vector<16xf32>
    %420 = vector.shape_cast %419 : vector<16xf32> to vector<16x1xf32>
    %421 = tpu.reciprocal %420 {approx = true} : vector<16x1xf32> -> vector<16x1xf32>
    %422 = vector.broadcast %421 : vector<16x1xf32> to vector<16x16xf32>
    %423 = arith.mulf %418, %422 : vector<16x16xf32>
    %cst_263 = arith.constant dense<0.000000e+00> : vector<16x32xf32>
    %424 = tpu.matmul %423, %409, %cst_263 {dimension_numbers = #tpu.dot_dimension_numbers<[1], [0], [0], [1], [0, 0, 1, 1], [], []>} : vector<16x16xf32>, vector<16x32xf32>, vector<16x32xf32> -> vector<16x32xf32>
    %425 = vector.extract_strided_slice %406 {offsets = [0, 0], sizes = [32, 64], strides = [1, 1]} : vector<64x64xf32> to vector<32x64xf32>
    %cst_264 = arith.constant dense<0.000000e+00> : vector<16x64xf32>
    %426 = tpu.matmul %424, %425, %cst_264 {dimension_numbers = #tpu.dot_dimension_numbers<[1], [0], [0], [1], [0, 0, 1, 1], [], []>} : vector<16x32xf32>, vector<32x64xf32>, vector<16x64xf32> -> vector<16x64xf32>
    %c0_265 = arith.constant 0 : index
    %c32_266 = arith.constant 32 : index
    %427 = vector.load %arg42[%c0_265, %c32_266] : memref<16x192xf32, #tpu.memory_space<vmem>>, vector<16x32xf32>
    %c0_267 = arith.constant 0 : index
    %c96_268 = arith.constant 96 : index
    %428 = vector.load %arg42[%c0_267, %c96_268] : memref<16x192xf32, #tpu.memory_space<vmem>>, vector<16x32xf32>
    %c0_269 = arith.constant 0 : index
    %c160_270 = arith.constant 160 : index
    %429 = vector.load %arg42[%c0_269, %c160_270] : memref<16x192xf32, #tpu.memory_space<vmem>>, vector<16x32xf32>
    %cst_271 = arith.constant 0.176776692 : f32
    %430 = vector.broadcast %cst_271 : f32 to vector<16x32xf32>
    %431 = arith.mulf %427, %430 : vector<16x32xf32>
    %cst_272 = arith.constant dense<0.000000e+00> : vector<16x16xf32>
    %432 = tpu.matmul %431, %428, %cst_272 {dimension_numbers = #tpu.dot_dimension_numbers<[1], [1], [0], [0], [0, 0, 1, 0], [], []>} : vector<16x32xf32>, vector<16x32xf32>, vector<16x16xf32> -> vector<16x16xf32>
    %433 = arith.addf %432, %245 : vector<16x16xf32>
    %cst_273 = arith.constant dense<0xFF800000> : vector<16xf32>
    %434 = vector.multi_reduction <maximumf>, %433, %cst_273 [1] : vector<16x16xf32> to vector<16xf32>
    %435 = vector.shape_cast %434 : vector<16xf32> to vector<16x1xf32>
    %436 = vector.broadcast %435 : vector<16x1xf32> to vector<16x16xf32>
    %437 = arith.subf %433, %436 : vector<16x16xf32>
    %438 = math.exp %437 : vector<16x16xf32>
    %cst_274 = arith.constant dense<0.000000e+00> : vector<16xf32>
    %439 = vector.multi_reduction <add>, %438, %cst_274 [1] : vector<16x16xf32> to vector<16xf32>
    %440 = vector.shape_cast %439 : vector<16xf32> to vector<16x1xf32>
    %441 = tpu.reciprocal %440 {approx = true} : vector<16x1xf32> -> vector<16x1xf32>
    %442 = vector.broadcast %441 : vector<16x1xf32> to vector<16x16xf32>
    %443 = arith.mulf %438, %442 : vector<16x16xf32>
    %cst_275 = arith.constant dense<0.000000e+00> : vector<16x32xf32>
    %444 = tpu.matmul %443, %429, %cst_275 {dimension_numbers = #tpu.dot_dimension_numbers<[1], [0], [0], [1], [0, 0, 1, 1], [], []>} : vector<16x16xf32>, vector<16x32xf32>, vector<16x32xf32> -> vector<16x32xf32>
    %445 = vector.extract_strided_slice %406 {offsets = [32, 0], sizes = [32, 64], strides = [1, 1]} : vector<64x64xf32> to vector<32x64xf32>
    %cst_276 = arith.constant dense<0.000000e+00> : vector<16x64xf32>
    %446 = tpu.matmul %444, %445, %cst_276 {dimension_numbers = #tpu.dot_dimension_numbers<[1], [0], [0], [1], [0, 0, 1, 1], [], []>} : vector<16x32xf32>, vector<32x64xf32>, vector<16x64xf32> -> vector<16x64xf32>
    %447 = arith.addf %426, %446 : vector<16x64xf32>
    %448 = arith.addf %372, %447 : vector<16x64xf32>
    %c1_277 = arith.constant 1 : index
    %c0_278 = arith.constant 0 : index
    %c0_279 = arith.constant 0 : index
    %449 = vector.load %arg27[%c1_277, %c0_278, %c0_279] : memref<2x1x64xf32, #tpu.memory_space<vmem>>, vector<1x1x64xf32>
    %450 = vector.shape_cast %449 : vector<1x1x64xf32> to vector<1x64xf32>
    %451 = vector.broadcast %450 : vector<1x64xf32> to vector<16x64xf32>
    %452 = arith.addf %448, %451 : vector<16x64xf32>
    %c1_280 = arith.constant 1 : index
    %c0_281 = arith.constant 0 : index
    %c0_282 = arith.constant 0 : index
    %453 = vector.load %arg28[%c1_280, %c0_281, %c0_282] : memref<2x1x64xf32, #tpu.memory_space<vmem>>, vector<1x1x64xf32>
    %454 = vector.shape_cast %453 : vector<1x1x64xf32> to vector<1x64xf32>
    %c1_283 = arith.constant 1 : index
    %c0_284 = arith.constant 0 : index
    %c0_285 = arith.constant 0 : index
    %455 = vector.load %arg29[%c1_283, %c0_284, %c0_285] : memref<2x1x64xf32, #tpu.memory_space<vmem>>, vector<1x1x64xf32>
    %456 = vector.shape_cast %455 : vector<1x1x64xf32> to vector<1x64xf32>
    %cst_286 = arith.constant dense<0.000000e+00> : vector<16xf32>
    %457 = vector.multi_reduction <add>, %452, %cst_286 [1] : vector<16x64xf32> to vector<16xf32>
    %458 = vector.shape_cast %457 : vector<16xf32> to vector<16x1xf32>
    %cst_287 = arith.constant 6.400000e+01 : f32
    %459 = vector.broadcast %cst_287 : f32 to vector<16x1xf32>
    %460 = arith.divf %458, %459 : vector<16x1xf32>
    %461 = vector.broadcast %460 : vector<16x1xf32> to vector<16x64xf32>
    %462 = arith.subf %452, %461 : vector<16x64xf32>
    %463 = arith.mulf %462, %462 : vector<16x64xf32>
    %cst_288 = arith.constant dense<0.000000e+00> : vector<16xf32>
    %464 = vector.multi_reduction <add>, %463, %cst_288 [1] : vector<16x64xf32> to vector<16xf32>
    %465 = vector.shape_cast %464 : vector<16xf32> to vector<16x1xf32>
    %cst_289 = arith.constant 6.400000e+01 : f32
    %466 = vector.broadcast %cst_289 : f32 to vector<16x1xf32>
    %467 = arith.divf %465, %466 : vector<16x1xf32>
    %cst_290 = arith.constant 9.99999974E-6 : f32
    %468 = vector.broadcast %cst_290 : f32 to vector<16x1xf32>
    %469 = arith.addf %467, %468 : vector<16x1xf32>
    %470 = math.rsqrt %469 : vector<16x1xf32>
    %471 = vector.broadcast %470 : vector<16x1xf32> to vector<16x64xf32>
    %472 = arith.mulf %462, %471 : vector<16x64xf32>
    %473 = vector.broadcast %454 : vector<1x64xf32> to vector<16x64xf32>
    %474 = arith.mulf %472, %473 : vector<16x64xf32>
    %475 = vector.broadcast %456 : vector<1x64xf32> to vector<16x64xf32>
    %476 = arith.addf %474, %475 : vector<16x64xf32>
    %c1_291 = arith.constant 1 : index
    %c0_292 = arith.constant 0 : index
    %c0_293 = arith.constant 0 : index
    %477 = vector.load %arg30[%c1_291, %c0_292, %c0_293] : memref<2x64x256xf32, #tpu.memory_space<vmem>>, vector<1x64x256xf32>
    %478 = vector.shape_cast %477 : vector<1x64x256xf32> to vector<64x256xf32>
    %cst_294 = arith.constant dense<0.000000e+00> : vector<16x256xf32>
    %479 = tpu.matmul %476, %478, %cst_294 {dimension_numbers = #tpu.dot_dimension_numbers<[1], [0], [0], [1], [0, 0, 1, 1], [], []>} : vector<16x64xf32>, vector<64x256xf32>, vector<16x256xf32> -> vector<16x256xf32>
    %c1_295 = arith.constant 1 : index
    %c0_296 = arith.constant 0 : index
    %c0_297 = arith.constant 0 : index
    %480 = vector.load %arg31[%c1_295, %c0_296, %c0_297] : memref<2x1x256xf32, #tpu.memory_space<vmem>>, vector<1x1x256xf32>
    %481 = vector.shape_cast %480 : vector<1x1x256xf32> to vector<1x256xf32>
    %482 = vector.broadcast %481 : vector<1x256xf32> to vector<16x256xf32>
    %483 = arith.addf %479, %482 : vector<16x256xf32>
    %cst_298 = arith.constant 1.702000e+00 : f32
    %484 = vector.broadcast %cst_298 : f32 to vector<16x256xf32>
    %485 = arith.mulf %484, %483 : vector<16x256xf32>
    %486 = arith.negf %485 : vector<16x256xf32>
    %487 = math.exp %486 : vector<16x256xf32>
    %cst_299 = arith.constant 1.000000e+00 : f32
    %488 = vector.broadcast %cst_299 : f32 to vector<16x256xf32>
    %489 = arith.addf %488, %487 : vector<16x256xf32>
    %490 = arith.divf %488, %489 : vector<16x256xf32>
    %491 = arith.mulf %483, %490 : vector<16x256xf32>
    %c1_300 = arith.constant 1 : index
    %c0_301 = arith.constant 0 : index
    %c0_302 = arith.constant 0 : index
    %492 = vector.load %arg32[%c1_300, %c0_301, %c0_302] : memref<2x256x64xf32, #tpu.memory_space<vmem>>, vector<1x256x64xf32>
    %493 = vector.shape_cast %492 : vector<1x256x64xf32> to vector<256x64xf32>
    %cst_303 = arith.constant dense<0.000000e+00> : vector<16x64xf32>
    %494 = tpu.matmul %491, %493, %cst_303 {dimension_numbers = #tpu.dot_dimension_numbers<[1], [0], [0], [1], [0, 0, 1, 1], [], []>} : vector<16x256xf32>, vector<256x64xf32>, vector<16x64xf32> -> vector<16x64xf32>
    %495 = arith.addf %452, %494 : vector<16x64xf32>
    %c1_304 = arith.constant 1 : index
    %c0_305 = arith.constant 0 : index
    %c0_306 = arith.constant 0 : index
    %496 = vector.load %arg33[%c1_304, %c0_305, %c0_306] : memref<2x1x64xf32, #tpu.memory_space<vmem>>, vector<1x1x64xf32>
    %497 = vector.shape_cast %496 : vector<1x1x64xf32> to vector<1x64xf32>
    %498 = vector.broadcast %497 : vector<1x64xf32> to vector<16x64xf32>
    %499 = arith.addf %495, %498 : vector<16x64xf32>
    %c0_307 = arith.constant 0 : index
    %c0_308 = arith.constant 0 : index
    %500 = vector.load %arg35[%c0_307, %c0_308] : memref<1x64xf32, #tpu.memory_space<vmem>>, vector<1x64xf32>
    %c0_309 = arith.constant 0 : index
    %c0_310 = arith.constant 0 : index
    %501 = vector.load %arg36[%c0_309, %c0_310] : memref<1x64xf32, #tpu.memory_space<vmem>>, vector<1x64xf32>
    %cst_311 = arith.constant dense<0.000000e+00> : vector<16xf32>
    %502 = vector.multi_reduction <add>, %499, %cst_311 [1] : vector<16x64xf32> to vector<16xf32>
    %503 = vector.shape_cast %502 : vector<16xf32> to vector<16x1xf32>
    %cst_312 = arith.constant 6.400000e+01 : f32
    %504 = vector.broadcast %cst_312 : f32 to vector<16x1xf32>
    %505 = arith.divf %503, %504 : vector<16x1xf32>
    %506 = vector.broadcast %505 : vector<16x1xf32> to vector<16x64xf32>
    %507 = arith.subf %499, %506 : vector<16x64xf32>
    %508 = arith.mulf %507, %507 : vector<16x64xf32>
    %cst_313 = arith.constant dense<0.000000e+00> : vector<16xf32>
    %509 = vector.multi_reduction <add>, %508, %cst_313 [1] : vector<16x64xf32> to vector<16xf32>
    %510 = vector.shape_cast %509 : vector<16xf32> to vector<16x1xf32>
    %cst_314 = arith.constant 6.400000e+01 : f32
    %511 = vector.broadcast %cst_314 : f32 to vector<16x1xf32>
    %512 = arith.divf %510, %511 : vector<16x1xf32>
    %cst_315 = arith.constant 9.99999974E-6 : f32
    %513 = vector.broadcast %cst_315 : f32 to vector<16x1xf32>
    %514 = arith.addf %512, %513 : vector<16x1xf32>
    %515 = math.rsqrt %514 : vector<16x1xf32>
    %516 = vector.broadcast %515 : vector<16x1xf32> to vector<16x64xf32>
    %517 = arith.mulf %507, %516 : vector<16x64xf32>
    %518 = vector.broadcast %500 : vector<1x64xf32> to vector<16x64xf32>
    %519 = arith.mulf %517, %518 : vector<16x64xf32>
    %520 = vector.broadcast %501 : vector<1x64xf32> to vector<16x64xf32>
    %521 = arith.addf %519, %520 : vector<16x64xf32>
    %c0_316 = arith.constant 0 : index
    %c0_317 = arith.constant 0 : index
    %522 = vector.load %arg37[%c0_316, %c0_317] : memref<2x16xf32, #tpu.memory_space<vmem>>, vector<2x16xf32>
    %cst_318 = arith.constant dense<0.000000e+00> : vector<2x64xf32>
    %523 = tpu.matmul %522, %521, %cst_318 {dimension_numbers = #tpu.dot_dimension_numbers<[1], [0], [0], [1], [0, 0, 1, 1], [], []>} : vector<2x16xf32>, vector<16x64xf32>, vector<2x64xf32> -> vector<2x64xf32>
    %c0_319 = arith.constant 0 : index
    %c0_320 = arith.constant 0 : index
    %524 = vector.load %arg38[%c0_319, %c0_320] : memref<64x32xf32, #tpu.memory_space<vmem>>, vector<64x32xf32>
    %cst_321 = arith.constant dense<0.000000e+00> : vector<2x32xf32>
    %525 = tpu.matmul %523, %524, %cst_321 {dimension_numbers = #tpu.dot_dimension_numbers<[1], [0], [0], [1], [0, 0, 1, 1], [], []>} : vector<2x64xf32>, vector<64x32xf32>, vector<2x32xf32> -> vector<2x32xf32>
    %526 = arith.mulf %243, %243 : vector<2x32xf32>
    %cst_322 = arith.constant dense<0.000000e+00> : vector<2xf32>
    %527 = vector.multi_reduction <add>, %526, %cst_322 [1] : vector<2x32xf32> to vector<2xf32>
    %528 = vector.shape_cast %527 : vector<2xf32> to vector<2x1xf32>
    %529 = math.rsqrt %528 : vector<2x1xf32>
    %530 = vector.broadcast %529 : vector<2x1xf32> to vector<2x32xf32>
    %531 = arith.mulf %243, %530 : vector<2x32xf32>
    %532 = arith.mulf %525, %525 : vector<2x32xf32>
    %cst_323 = arith.constant dense<0.000000e+00> : vector<2xf32>
    %533 = vector.multi_reduction <add>, %532, %cst_323 [1] : vector<2x32xf32> to vector<2xf32>
    %534 = vector.shape_cast %533 : vector<2xf32> to vector<2x1xf32>
    %535 = math.rsqrt %534 : vector<2x1xf32>
    %536 = vector.broadcast %535 : vector<2x1xf32> to vector<2x32xf32>
    %537 = arith.mulf %525, %536 : vector<2x32xf32>
    %cst_324 = arith.constant dense<0.000000e+00> : vector<2x2xf32>
    %538 = tpu.matmul %531, %537, %cst_324 {dimension_numbers = #tpu.dot_dimension_numbers<[1], [1], [0], [0], [0, 0, 1, 0], [], []>} : vector<2x32xf32>, vector<2x32xf32>, vector<2x2xf32> -> vector<2x2xf32>
    %c0_325 = arith.constant 0 : index
    %c0_326 = arith.constant 0 : index
    %539 = vector.load %arg39[%c0_325, %c0_326] : memref<1x1xf32, #tpu.memory_space<vmem>>, vector<1x1xf32>
    %540 = math.exp %539 : vector<1x1xf32>
    %541 = vector.broadcast %540 : vector<1x1xf32> to vector<2x2xf32>
    %542 = arith.mulf %541, %538 : vector<2x2xf32>
    %c0_327 = arith.constant 0 : index
    %c0_328 = arith.constant 0 : index
    %543 = vector.load %arg40[%c0_327, %c0_328] : memref<2x2xf32, #tpu.memory_space<vmem>>, vector<2x2xf32>
    tpu.vector_store %arg40[%c0_327, %c0_328], %542 {strides = array<i32>} : memref<2x2xf32, #tpu.memory_space<vmem>>, vector<2x2xf32>,
    return
  }
}

</mosaic_0001>

<llo_original>
// kernel: tile.14
$region0: #{tile.14}
  %s0 = inlined_call_operand.vmem [shape: f32[2,5,64], index: 0, kind: input, shape index: {}]
  %s1 = inlined_call_operand.vmem [shape: f32[10,64], index: 1, kind: output, shape index: {}]
  %v2 = vld [vmem:[%s0] sm:$0x1f]
  %vm3 = vcmask 523264
  %4 = vst.msk [vmem:[%s1] sm:$0x1f] %vm3, %v2
  %s5 = scalar_lea.vmem %s0, 8
  %v6 = vld [vmem:[%s5] sm:$0x1f]
  %vm7 = vcmask 523264
  %s8 = scalar_lea.vmem %s1, 5
  %9 = vst.msk [vmem:[%s8] sm:$0x1f] %vm7, %v6

// kernel: supfad_forward.1
$region0: #{supfad_forward.1}
  #allocation0 [shape = 'u32[]', space=smem, size = 0x4, offset = 0x4, fixed_abs, tag = 'smem constant byte address 0x4 - core index']
  #allocation1 [shape = 'u32[144,128]{1,0:T(1,128)}', space=vmem, size = 0x12000, scoped, tag = 'internal scratch']
  #allocation2 [shape = 'f32[10,192]{1,0:T(8,128)}', space=vmem, size = 0x4000, scoped, tag = 'scratch operand']
  #allocation3 [shape = 'f32[16,192]{1,0:T(8,128)}', space=vmem, size = 0x4000, scoped, tag = 'scratch operand']
  #allocation4 [shape = 'f32[1,1]{1,0:T(1,128)S(1)}', space=vmem, size = 0x200, scoped, tag = 'scoped memory for supfad_forward.1']
  %s0 = inlined_call_operand.smem [shape: u32[41], index: -1, kind: input, shape index: {}]
  %s1 = sld [smem:[%s0]]
  %s2 = scalar_lea.smem %s0, 1
  %s3 = sld [smem:[%s2]]
  %s4 = scalar_lea.smem %s0, 2
  %s5 = sld [smem:[%s4]]
  %s6 = scalar_lea.smem %s0, 3
  %s7 = sld [smem:[%s6]]
  %s8 = scalar_lea.smem %s0, 4
  %s9 = sld [smem:[%s8]]
  %s10 = scalar_lea.smem %s0, 5
  %s11 = sld [smem:[%s10]]
  %s12 = scalar_lea.smem %s0, 6
  %s13 = sld [smem:[%s12]]
  %s14 = scalar_lea.smem %s0, 7
  %s15 = sld [smem:[%s14]]
  %s16 = scalar_lea.smem %s0, 8
  %s17 = sld [smem:[%s16]]
  %s18 = scalar_lea.smem %s0, 9
  %s19 = sld [smem:[%s18]]
  %s20 = scalar_lea.smem %s0, 10
  %s21 = sld [smem:[%s20]]
  %s22 = scalar_lea.smem %s0, 11
  %s23 = sld [smem:[%s22]]
  %s24 = scalar_lea.smem %s0, 12
  %s25 = sld [smem:[%s24]]
  %s26 = scalar_lea.smem %s0, 13
  %s27 = sld [smem:[%s26]]
  %s28 = scalar_lea.smem %s0, 14
  %s29 = sld [smem:[%s28]]
  %s30 = scalar_lea.smem %s0, 15
  %s31 = sld [smem:[%s30]]
  %s32 = scalar_lea.smem %s0, 16
  %s33 = sld [smem:[%s32]]
  %s34 = scalar_lea.smem %s0, 17
  %s35 = sld [smem:[%s34]]
  %s36 = scalar_lea.smem %s0, 18
  %s37 = sld [smem:[%s36]]
  %s38 = scalar_lea.smem %s0, 19
  %s39 = sld [smem:[%s38]]
  %s40 = scalar_lea.smem %s0, 20
  %s41 = sld [smem:[%s40]]
  %s42 = scalar_lea.smem %s0, 21
  %s43 = sld [smem:[%s42]]
  %s44 = scalar_lea.smem %s0, 22
  %s45 = sld [smem:[%s44]]
  %s46 = scalar_lea.smem %s0, 23
  %s47 = sld [smem:[%s46]]
  %s48 = scalar_lea.smem %s0, 24
  %s49 = sld [smem:[%s48]]
  %s50 = scalar_lea.smem %s0, 25
  %s51 = sld [smem:[%s50]]
  %s52 = scalar_lea.smem %s0, 26
  %s53 = sld [smem:[%s52]]
  %s54 = scalar_lea.smem %s0, 27
  %s55 = sld [smem:[%s54]]
  %s56 = scalar_lea.smem %s0, 28
  %s57 = sld [smem:[%s56]]
  %s58 = scalar_lea.smem %s0, 29
  %s59 = sld [smem:[%s58]]
  %s60 = scalar_lea.smem %s0, 30
  %s61 = sld [smem:[%s60]]
  %s62 = scalar_lea.smem %s0, 31
  %s63 = sld [smem:[%s62]]
  %s64 = scalar_lea.smem %s0, 32
  %s65 = sld [smem:[%s64]]
  %s66 = scalar_lea.smem %s0, 33
  %s67 = sld [smem:[%s66]]
  %s68 = scalar_lea.smem %s0, 34
  %s69 = sld [smem:[%s68]]
  %s70 = scalar_lea.smem %s0, 35
  %s71 = sld [smem:[%s70]]
  %s72 = scalar_lea.smem %s0, 36
  %s73 = sld [smem:[%s72]]
  %s74 = scalar_lea.smem %s0, 37
  %s75 = sld [smem:[%s74]]
  %s76 = scalar_lea.smem %s0, 38
  %s77 = sld [smem:[%s76]]
  %s78 = scalar_lea.smem %s0, 39
  %s79 = sld [smem:[%s78]]
  %s80 = scalar_lea.smem %s0, 40
  %s81 = sld [smem:[%s80]]
  %s82 = sld [smem:[#allocation0]]
  $region170: #{supfad_forward.1} parent=0
    _
  %s84 = ssub.s32 1, %s82
  %s85 = scalar_select 0, %s84, %s82
  %v86 = vstv %s79
  %87 = vst [vmem:[#allocation4] sm:$0x1] %v86
  // Predicated region
  $region2: #{supfad_forward.1} parent=0 // pred_check
    _
  $region3: #{supfad_forward.1} parent=0 // pred_check_branch
    %89 = sbr.rel (0) target = $region5
  $region4: #{supfad_forward.1} parent=0 // pred_region
    _
  $region5: #{supfad_forward.1} parent=0 // pred_fallthru
    _
  // Predicated region
  $region6: #{supfad_forward.1} parent=0 // pred_check
    _
  $region7: #{supfad_forward.1} parent=0 // pred_check_branch
    %91 = sbr.rel (0) target = $region9
  $region8: #{supfad_forward.1} parent=0 // pred_region
    _
  $region9: #{supfad_forward.1} parent=0 // pred_fallthru
    _
  // Predicated region
  $region10: #{supfad_forward.1} parent=0 // pred_check
    _
  $region11: #{supfad_forward.1} parent=0 // pred_check_branch
    %93 = sbr.rel (0) target = $region13
  $region12: #{supfad_forward.1} parent=0 // pred_region
    _
  $region13: #{supfad_forward.1} parent=0 // pred_fallthru
    _
  // Predicated region
  $region14: #{supfad_forward.1} parent=0 // pred_check
    _
  $region15: #{supfad_forward.1} parent=0 // pred_check_branch
    %95 = sbr.rel (0) target = $region17
  $region16: #{supfad_forward.1} parent=0 // pred_region
    _
  $region17: #{supfad_forward.1} parent=0 // pred_fallthru
    _
  // Predicated region
  $region18: #{supfad_forward.1} parent=0 // pred_check
    _
  $region19: #{supfad_forward.1} parent=0 // pred_check_branch
    %97 = sbr.rel (0) target = $region21
  $region20: #{supfad_forward.1} parent=0 // pred_region
    _
  $region21: #{supfad_forward.1} parent=0 // pred_fallthru
    _
  // Predicated region
  $region22: #{supfad_forward.1} parent=0 // pred_check
    _
  $region23: #{supfad_forward.1} parent=0 // pred_check_branch
    %99 = sbr.rel (0) target = $region25
  $region24: #{supfad_forward.1} parent=0 // pred_region
    _
  $region25: #{supfad_forward.1} parent=0 // pred_fallthru
    _
  // Predicated region
  $region26: #{supfad_forward.1} parent=0 // pred_check
    _
  $region27: #{supfad_forward.1} parent=0 // pred_check_branch
    %101 = sbr.rel (0) target = $region29
  $region28: #{supfad_forward.1} parent=0 // pred_region
    _
  $region29: #{supfad_forward.1} parent=0 // pred_fallthru
    _
  // Predicated region
  $region30: #{supfad_forward.1} parent=0 // pred_check
    _
  $region31: #{supfad_forward.1} parent=0 // pred_check_branch
    %103 = sbr.rel (0) target = $region33
  $region32: #{supfad_forward.1} parent=0 // pred_region
    _
  $region33: #{supfad_forward.1} parent=0 // pred_fallthru
    _
  // Predicated region
  $region34: #{supfad_forward.1} parent=0 // pred_check
    _
  $region35: #{supfad_forward.1} parent=0 // pred_check_branch
    %105 = sbr.rel (0) target = $region37
  $region36: #{supfad_forward.1} parent=0 // pred_region
    _
  $region37: #{supfad_forward.1} parent=0 // pred_fallthru
    _
  // Predicated region
  $region38: #{supfad_forward.1} parent=0 // pred_check
    _
  $region39: #{supfad_forward.1} parent=0 // pred_check_branch
    %107 = sbr.rel (0) target = $region41
  $region40: #{supfad_forward.1} parent=0 // pred_region
    _
  $region41: #{supfad_forward.1} parent=0 // pred_fallthru
    _
  // Predicated region
  $region42: #{supfad_forward.1} parent=0 // pred_check
    _
  $region43: #{supfad_forward.1} parent=0 // pred_check_branch
    %109 = sbr.rel (0) target = $region45
  $region44: #{supfad_forward.1} parent=0 // pred_region
    _
  $region45: #{supfad_forward.1} parent=0 // pred_fallthru
    _
  // Predicated region
  $region46: #{supfad_forward.1} parent=0 // pred_check
    _
  $region47: #{supfad_forward.1} parent=0 // pred_check_branch
    %111 = sbr.rel (0) target = $region49
  $region48: #{supfad_forward.1} parent=0 // pred_region
    _
  $region49: #{supfad_forward.1} parent=0 // pred_fallthru
    _
  // Predicated region
  $region50: #{supfad_forward.1} parent=0 // pred_check
    _
  $region51: #{supfad_forward.1} parent=0 // pred_check_branch
    %113 = sbr.rel (0) target = $region53
  $region52: #{supfad_forward.1} parent=0 // pred_region
    _
  $region53: #{supfad_forward.1} parent=0 // pred_fallthru
    _
  // Predicated region
  $region54: #{supfad_forward.1} parent=0 // pred_check
    _
  $region55: #{supfad_forward.1} parent=0 // pred_check_branch
    %115 = sbr.rel (0) target = $region57
  $region56: #{supfad_forward.1} parent=0 // pred_region
    _
  $region57: #{supfad_forward.1} parent=0 // pred_fallthru
    _
  // Predicated region
  $region58: #{supfad_forward.1} parent=0 // pred_check
    _
  $region59: #{supfad_forward.1} parent=0 // pred_check_branch
    %117 = sbr.rel (0) target = $region61
  $region60: #{supfad_forward.1} parent=0 // pred_region
    _
  $region61: #{supfad_forward.1} parent=0 // pred_fallthru
    _
  // Predicated region
  $region62: #{supfad_forward.1} parent=0 // pred_check
    _
  $region63: #{supfad_forward.1} parent=0 // pred_check_branch
    %119 = sbr.rel (0) target = $region65
  $region64: #{supfad_forward.1} parent=0 // pred_region
    _
  $region65: #{supfad_forward.1} parent=0 // pred_fallthru
    _
  // Predicated region
  $region66: #{supfad_forward.1} parent=0 // pred_check
    _
  $region67: #{supfad_forward.1} parent=0 // pred_check_branch
    %121 = sbr.rel (0) target = $region69
  $region68: #{supfad_forward.1} parent=0 // pred_region
    _
  $region69: #{supfad_forward.1} parent=0 // pred_fallthru
    _
  // Predicated region
  $region70: #{supfad_forward.1} parent=0 // pred_check
    _
  $region71: #{supfad_forward.1} parent=0 // pred_check_branch
    %123 = sbr.rel (0) target = $region73
  $region72: #{supfad_forward.1} parent=0 // pred_region
    _
  $region73: #{supfad_forward.1} parent=0 // pred_fallthru
    _
  // Predicated region
  $region74: #{supfad_forward.1} parent=0 // pred_check
    _
  $region75: #{supfad_forward.1} parent=0 // pred_check_branch
    %125 = sbr.rel (0) target = $region77
  $region76: #{supfad_forward.1} parent=0 // pred_region
    _
  $region77: #{supfad_forward.1} parent=0 // pred_fallthru
    _
  // Predicated region
  $region78: #{supfad_forward.1} parent=0 // pred_check
    _
  $region79: #{supfad_forward.1} parent=0 // pred_check_branch
    %127 = sbr.rel (0) target = $region81
  $region80: #{supfad_forward.1} parent=0 // pred_region
    _
  $region81: #{supfad_forward.1} parent=0 // pred_fallthru
    _
  // Predicated region
  $region82: #{supfad_forward.1} parent=0 // pred_check
    _
  $region83: #{supfad_forward.1} parent=0 // pred_check_branch
    %129 = sbr.rel (0) target = $region85
  $region84: #{supfad_forward.1} parent=0 // pred_region
    _
  $region85: #{supfad_forward.1} parent=0 // pred_fallthru
    _
  // Predicated region
  $region86: #{supfad_forward.1} parent=0 // pred_check
    _
  $region87: #{supfad_forward.1} parent=0 // pred_check_branch
    %131 = sbr.rel (0) target = $region89
  $region88: #{supfad_forward.1} parent=0 // pred_region
    _
  $region89: #{supfad_forward.1} parent=0 // pred_fallthru
    _
  // Predicated region
  $region90: #{supfad_forward.1} parent=0 // pred_check
    _
  $region91: #{supfad_forward.1} parent=0 // pred_check_branch
    %133 = sbr.rel (0) target = $region93
  $region92: #{supfad_forward.1} parent=0 // pred_region
    _
  $region93: #{supfad_forward.1} parent=0 // pred_fallthru
    _
  // Predicated region
  $region94: #{supfad_forward.1} parent=0 // pred_check
    _
  $region95: #{supfad_forward.1} parent=0 // pred_check_branch
    %135 = sbr.rel (0) target = $region97
  $region96: #{supfad_forward.1} parent=0 // pred_region
    _
  $region97: #{supfad_forward.1} parent=0 // pred_fallthru
    _
  // Predicated region
  $region98: #{supfad_forward.1} parent=0 // pred_check
    _
  $region99: #{supfad_forward.1} parent=0 // pred_check_branch
    %137 = sbr.rel (0) target = $region101
  $region100: #{supfad_forward.1} parent=0 // pred_region
    _
  $region101: #{supfad_forward.1} parent=0 // pred_fallthru
    _
  // Predicated region
  $region102: #{supfad_forward.1} parent=0 // pred_check
    _
  $region103: #{supfad_forward.1} parent=0 // pred_check_branch
    %139 = sbr.rel (0) target = $region105
  $region104: #{supfad_forward.1} parent=0 // pred_region
    _
  $region105: #{supfad_forward.1} parent=0 // pred_fallthru
    _
  // Predicated region
  $region106: #{supfad_forward.1} parent=0 // pred_check
    _
  $region107: #{supfad_forward.1} parent=0 // pred_check_branch
    %141 = sbr.rel (0) target = $region109
  $region108: #{supfad_forward.1} parent=0 // pred_region
    _
  $region109: #{supfad_forward.1} parent=0 // pred_fallthru
    _
  // Predicated region
  $region110: #{supfad_forward.1} parent=0 // pred_check
    _
  $region111: #{supfad_forward.1} parent=0 // pred_check_branch
    %143 = sbr.rel (0) target = $region113
  $region112: #{supfad_forward.1} parent=0 // pred_region
    _
  $region113: #{supfad_forward.1} parent=0 // pred_fallthru
    _
  // Predicated region
  $region114: #{supfad_forward.1} parent=0 // pred_check
    _
  $region115: #{supfad_forward.1} parent=0 // pred_check_branch
    %145 = sbr.rel (0) target = $region117
  $region116: #{supfad_forward.1} parent=0 // pred_region
    _
  $region117: #{supfad_forward.1} parent=0 // pred_fallthru
    _
  // Predicated region
  $region118: #{supfad_forward.1} parent=0 // pred_check
    _
  $region119: #{supfad_forward.1} parent=0 // pred_check_branch
    %147 = sbr.rel (0) target = $region121
  $region120: #{supfad_forward.1} parent=0 // pred_region
    _
  $region121: #{supfad_forward.1} parent=0 // pred_fallthru
    _
  // Predicated region
  $region122: #{supfad_forward.1} parent=0 // pred_check
    _
  $region123: #{supfad_forward.1} parent=0 // pred_check_branch
    %149 = sbr.rel (0) target = $region125
  $region124: #{supfad_forward.1} parent=0 // pred_region
    _
  $region125: #{supfad_forward.1} parent=0 // pred_fallthru
    _
  // Predicated region
  $region126: #{supfad_forward.1} parent=0 // pred_check
    _
  $region127: #{supfad_forward.1} parent=0 // pred_check_branch
    %151 = sbr.rel (0) target = $region129
  $region128: #{supfad_forward.1} parent=0 // pred_region
    _
  $region129: #{supfad_forward.1} parent=0 // pred_fallthru
    _
  // Predicated region
  $region130: #{supfad_forward.1} parent=0 // pred_check
    _
  $region131: #{supfad_forward.1} parent=0 // pred_check_branch
    %153 = sbr.rel (0) target = $region133
  $region132: #{supfad_forward.1} parent=0 // pred_region
    _
  $region133: #{supfad_forward.1} parent=0 // pred_fallthru
    _
  // Predicated region
  $region134: #{supfad_forward.1} parent=0 // pred_check
    _
  $region135: #{supfad_forward.1} parent=0 // pred_check_branch
    %155 = sbr.rel (0) target = $region137
  $region136: #{supfad_forward.1} parent=0 // pred_region
    _
  $region137: #{supfad_forward.1} parent=0 // pred_fallthru
    _
  // Predicated region
  $region138: #{supfad_forward.1} parent=0 // pred_check
    _
  $region139: #{supfad_forward.1} parent=0 // pred_check_branch
    %157 = sbr.rel (0) target = $region141
  $region140: #{supfad_forward.1} parent=0 // pred_region
    _
  $region141: #{supfad_forward.1} parent=0 // pred_fallthru
    _
  // Predicated region
  $region142: #{supfad_forward.1} parent=0 // pred_check
    _
  $region143: #{supfad_forward.1} parent=0 // pred_check_branch
    %159 = sbr.rel (0) target = $region145
  $region144: #{supfad_forward.1} parent=0 // pred_region
    _
  $region145: #{supfad_forward.1} parent=0 // pred_fallthru
    _
  // Predicated region
  $region146: #{supfad_forward.1} parent=0 // pred_check
    _
  $region147: #{supfad_forward.1} parent=0 // pred_check_branch
    %161 = sbr.rel (0) target = $region149
  $region148: #{supfad_forward.1} parent=0 // pred_region
    _
  $region149: #{supfad_forward.1} parent=0 // pred_fallthru
    _
  // Predicated region
  $region150: #{supfad_forward.1} parent=0 // pred_check
    _
  $region151: #{supfad_forward.1} parent=0 // pred_check_branch
    %163 = sbr.rel (0) target = $region153
  $region152: #{supfad_forward.1} parent=0 // pred_region
    _
  $region153: #{supfad_forward.1} parent=0 // pred_fallthru
    _
  // Predicated region
  $region154: #{supfad_forward.1} parent=0 // pred_check
    _
  $region155: #{supfad_forward.1} parent=0 // pred_check_branch
    %165 = sbr.rel (0) target = $region157
  $region156: #{supfad_forward.1} parent=0 // pred_region
    _
  $region157: #{supfad_forward.1} parent=0 // pred_fallthru
    _
  // Predicated region
  $region158: #{supfad_forward.1} parent=0 // pred_check
    _
  $region159: #{supfad_forward.1} parent=0 // pred_check_branch
    %167 = sbr.rel (0) target = $region161
  $region160: #{supfad_forward.1} parent=0 // pred_region
    _
  $region161: #{supfad_forward.1} parent=0 // pred_fallthru
    _
  %v168 = vld [vmem:[%s1] sm:$0xff]
  %v169 = vld [vmem:[%s1 + $0x8] sm:$0xff]
  %v170 = vld [vmem:[%s3] sm:$0xff]
  %v171 = vld [vmem:[%s3 + $0x8] sm:$0xff]
  %v172 = vld [vmem:[%s3 + $0x10] sm:$0xff]
  %v173 = vld [vmem:[%s3 + $0x18] sm:$0xff]
  %v174 = vld [vmem:[%s3 + $0x20] sm:$0xff]
  %v175 = vld [vmem:[%s3 + $0x28] sm:$0xff]
  %v176 = vld [vmem:[%s3 + $0x30] sm:$0xff]
  %v177 = vld [vmem:[%s3 + $0x38] sm:$0xff]
  %v178 = vld [vmem:[%s3 + $0x40] sm:$0xff]
  %v179 = vld [vmem:[%s3 + $0x48] sm:$0xff]
  %v180 = vld [vmem:[%s3 + $0x50] sm:$0xff]
  %v181 = vld [vmem:[%s3 + $0x58] sm:$0xff]
  %v182 = vld [vmem:[%s3 + $0x60] sm:$0xff]
  %v183 = vld [vmem:[%s3 + $0x68] sm:$0xff]
  %v184 = vld [vmem:[%s3 + $0x70] sm:$0xff]
  %v185 = vld [vmem:[%s3 + $0x78] sm:$0xff]
  %v186 = vld [vmem:[%s3 + $0x80] sm:$0xff]
  %v187 = vld [vmem:[%s3 + $0x88] sm:$0xff]
  %v188 = vld [vmem:[%s3 + $0x90] sm:$0xff]
  %v189 = vld [vmem:[%s3 + $0x98] sm:$0xff]
  %v190 = vld [vmem:[%s3 + $0xa0] sm:$0xff]
  %v191 = vld [vmem:[%s3 + $0xa8] sm:$0xff]
  %v192 = vld [vmem:[%s3 + $0xb0] sm:$0xff]
  %v193 = vld [vmem:[%s3 + $0xb8] sm:$0xff]
  %vm194 = vcmask 523264
  %v196 = vsel %vm194, %v169, 0
  %198 = vmatprep.subr.mxu0 0.0
  %199 = vmatpush1.msra.mxu0 %v170
  %200 = vmatprep.subr.mxu0 0.0
  %201 = vmatpush1.msra.mxu0 %v171
  %202 = vmatprep.subr.mxu0 0.0
  %203 = vmatpush1.msra.mxu0 %v172
  %204 = vmatprep.subr.mxu0 0.0
  %205 = vmatpush1.msra.mxu0 %v173
  %206 = vmatprep.subr.mxu0 0.0
  %207 = vmatpush1.msra.mxu0 %v174
  %208 = vmatprep.subr.mxu0 0.0
  %209 = vmatpush1.msra.mxu0 %v175
  %210 = vmatprep.subr.mxu0 0.0
  %211 = vmatpush1.msra.mxu0 %v176
  %212 = vmatprep.subr.mxu0 0.0
  %213 = vmatpush1.msra.mxu0 %v177
  %214 = vmatprep.subr.mxu0 0.0
  %215 = vmatpush1.msra.mxu0 %v178
  %216 = vmatprep.subr.mxu0 0.0
  %217 = vmatpush1.msra.mxu0 %v179
  %218 = vmatprep.subr.mxu0 0.0
  %219 = vmatpush1.msra.mxu0 %v180
  %220 = vmatprep.subr.mxu0 0.0
  %221 = vmatpush1.msra.mxu0 %v181
  %222 = vmatprep.subr.mxu0 0.0
  %223 = vmatpush1.msra.mxu0 %v182
  %224 = vmatprep.subr.mxu0 0.0
  %225 = vmatpush1.msra.mxu0 %v183
  %226 = vmatprep.subr.mxu0 0.0
  %227 = vmatpush1.msra.mxu0 %v184
  %228 = vmatprep.subr.mxu0 0.0
  %229 = vmatpush1.msra.mxu0 %v185
  %230 = vmatprep.subr.mxu0 0.0
  %231 = vmatpush1.msra.mxu0 %v186
  %232 = vmatprep.subr.mxu0 0.0
  %233 = vmatpush1.msra.mxu0 %v187
  %234 = vmatprep.subr.mxu0 0.0
  %235 = vmatpush1.msra.mxu0 %v188
  %236 = vmatprep.subr.mxu0 0.0
  %237 = vmatpush1.msra.mxu0 %v189
  %238 = vmatprep.subr.mxu0 0.0
  %239 = vmatpush1.msra.mxu0 %v190
  %240 = vmatprep.subr.mxu0 0.0
  %241 = vmatpush1.msra.mxu0 %v191
  %242 = vmatprep.subr.mxu0 0.0
  %243 = vmatpush1.msra.mxu0 %v192
  %244 = vmatprep.subr.mxu0 0.0
  %245 = vmatpush1.msra.mxu0 %v193
  %246 = vmatprep.subr.mxu0 0.0
  %247 = vmatpush1.msra.mxu0 0.0
  %248 = vmatprep.subr.mxu0 0.0
  %249 = vmatpush1.msra.mxu0 0.0
  %250 = vmatprep.subr.mxu0 0.0
  %251 = vmatpush1.msra.mxu0 0.0
  %252 = vmatprep.subr.mxu0 0.0
  %253 = vmatpush1.msra.mxu0 0.0
  %254 = vmatprep.subr.mxu0 0.0
  %255 = vmatpush1.msra.mxu0 0.0
  %256 = vmatprep.subr.mxu0 0.0
  %257 = vmatpush1.msra.mxu0 0.0
  %258 = vmatprep.subr.mxu0 0.0
  %259 = vmatpush1.msra.mxu0 0.0
  %260 = vmatprep.subr.mxu0 0.0
  %261 = vmatpush1.msra.mxu0 0.0
  %262 = vmatprep.mubr.f32.mxu0 %v196
  %263 = vmatmul.mubr.f32.gmra.mrb[0].mxu0 %v168
  %v264 = vpop.f32.mrb[0].mxu0
  %v265 = vadd.f32 0.0, %v264
  %v266 = vpop.f32.mrb[0].mxu0
  %267 = vdwg.mxu0
  %v268 = vld [vmem:[%s5] sm:$0xff]
  %v269 = vld [vmem:[%s5 + $0x8] sm:$0x3]
  %v270 = vld [vmem:[%s7] sm:$0xff]
  %v271 = vld [vmem:[%s7 + $0x8] sm:$0x3]
  %vm272 = vcmask 64512
  %v274 = vsel %vm272, %v268, 0
  %v277 = vsel %vm272, %v269, 0
  %279 = vmatprep.subr.mxu0 0.0
  %280 = vmatpush1.msra.mxu0 %v265
  %281 = vmatprep.subr.mxu0 0.0
  %282 = vmatpush1.msra.mxu0 0.0
  %283 = vmatprep.subr.mxu0 0.0
  %284 = vmatpush1.msra.mxu0 0.0
  %285 = vmatprep.subr.mxu0 0.0
  %286 = vmatpush1.msra.mxu0 0.0
  %287 = vmatprep.subr.mxu0 0.0
  %288 = vmatpush1.msra.mxu0 0.0
  %289 = vmatprep.subr.mxu0 0.0
  %290 = vmatpush1.msra.mxu0 0.0
  %291 = vmatprep.subr.mxu0 0.0
  %292 = vmatpush1.msra.mxu0 0.0
  %293 = vmatprep.subr.mxu0 0.0
  %294 = vmatpush1.msra.mxu0 0.0
  %295 = vmatprep.subr.mxu0 0.0
  %296 = vmatpush1.msra.mxu0 0.0
  %297 = vmatprep.subr.mxu0 0.0
  %298 = vmatpush1.msra.mxu0 0.0
  %299 = vmatprep.subr.mxu0 0.0
  %300 = vmatpush1.msra.mxu0 0.0
  %301 = vmatprep.subr.mxu0 0.0
  %302 = vmatpush1.msra.mxu0 0.0
  %303 = vmatprep.subr.mxu0 0.0
  %304 = vmatpush1.msra.mxu0 0.0
  %305 = vmatprep.subr.mxu0 0.0
  %306 = vmatpush1.msra.mxu0 0.0
  %307 = vmatprep.subr.mxu0 0.0
  %308 = vmatpush1.msra.mxu0 0.0
  %309 = vmatprep.subr.mxu0 0.0
  %310 = vmatpush1.msra.mxu0 0.0
  %311 = vmatprep.subr.mxu0 0.0
  %312 = vmatpush1.msra.mxu0 0.0
  %313 = vmatprep.subr.mxu0 0.0
  %314 = vmatpush1.msra.mxu0 0.0
  %315 = vmatprep.subr.mxu0 0.0
  %316 = vmatpush1.msra.mxu0 0.0
  %317 = vmatprep.subr.mxu0 0.0
  %318 = vmatpush1.msra.mxu0 0.0
  %319 = vmatprep.subr.mxu0 0.0
  %320 = vmatpush1.msra.mxu0 0.0
  %321 = vmatprep.subr.mxu0 0.0
  %322 = vmatpush1.msra.mxu0 0.0
  %323 = vmatprep.subr.mxu0 0.0
  %324 = vmatpush1.msra.mxu0 0.0
  %325 = vmatprep.subr.mxu0 0.0
  %326 = vmatpush1.msra.mxu0 0.0
  %327 = vmatprep.subr.mxu0 0.0
  %328 = vmatpush1.msra.mxu0 0.0
  %329 = vmatprep.subr.mxu0 0.0
  %330 = vmatpush1.msra.mxu0 0.0
  %331 = vmatprep.subr.mxu0 0.0
  %332 = vmatpush1.msra.mxu0 0.0
  %333 = vmatprep.subr.mxu0 0.0
  %334 = vmatpush1.msra.mxu0 0.0
  %335 = vmatprep.subr.mxu0 0.0
  %336 = vmatpush1.msra.mxu0 0.0
  %337 = vmatprep.subr.mxu0 0.0
  %338 = vmatpush1.msra.mxu0 0.0
  %339 = vmatprep.subr.mxu0 0.0
  %340 = vmatpush1.msra.mxu0 0.0
  %341 = vmatprep.subr.mxu0 0.0
  %342 = vmatpush1.msra.mxu0 0.0
  %343 = vmatprep.mubr.f32.mxu0 0.0
  %344 = vmatmul.mubr.f32.gmra.mrb[0].mxu0 %v274
  %v345 = vpop.f32.mrb[0].mxu0
  %v346 = vadd.f32 %v270, %v345
  %v347 = vpop.f32.mrb[0].mxu0
  %348 = vmatprep.mubr.f32.mxu0 0.0
  %349 = vmatmul.mubr.f32.gmra.mrb[0].mxu0 %v277
  %v350 = vpop.f32.mrb[0].mxu0
  %v351 = vadd.f32 %v271, %v350
  %v352 = vpop.f32.mrb[0].mxu0
  %353 = vdwg.mxu0
  %v354 = vld [vmem:[%s9] sm:$0x1]
  %v355 = vld [vmem:[%s11] sm:$0x1]
  %v356 = vsel %vm194, %v346, 0.0
  %357 = vadd.xlane.f32.xlu0 %v356
  %v358 = vpop.xlane.xlu0 %357
  %vm359 = vcmask 517120
  %v360 = vsel %vm359, %v351, 0.0
  %361 = vadd.xlane.f32.xlu0 %v360
  %v362 = vpop.xlane.xlu0 %361
  %v363 = vrcp.pop 64.0
  %v364 = vmul.f32 %v358, %v363
  %v365 = vmul.f32 %v362, %v363
  %v366 = vsub.f32 %v346, %v364
  %v367 = vsub.f32 %v351, %v365
  %v368 = vmul.f32 %v366, %v366
  %v369 = vmul.f32 %v367, %v367
  %v370 = vsel %vm194, %v368, 0.0
  %371 = vadd.xlane.f32.xlu0 %v370
  %v372 = vpop.xlane.xlu0 %371
  %v373 = vsel %vm359, %v369, 0.0
  %374 = vadd.xlane.f32.xlu0 %v373
  %v375 = vpop.xlane.xlu0 %374
  %v376 = vmul.f32 %v372, %v363
  %v377 = vmul.f32 %v375, %v363
  %v378 = vadd.f32 %v376, 1e-05
  %v379 = vadd.f32 %v377, 1e-05
  %v380 = vrsqrt.pop %v378
  %v381 = vrsqrt.pop %v379
  %v382 = vmul.f32 %v366, %v380
  %v383 = vmul.f32 %v367, %v381
  %v385 = vlaneseq
  %v386 = vshrl.u32 %v385, 7
  %v387 = vsub.s32 0, %v386
  %v388 = vrot.slane %v354, %v387
  %v390 = vmul.f32 %v382, %v388
  %v391 = vmul.f32 %v383, %v388
  %v393 = vlaneseq
  %v394 = vshrl.u32 %v393, 7
  %v395 = vsub.s32 0, %v394
  %v396 = vrot.slane %v355, %v395
  %v398 = vadd.f32 %v390, %v396
  %v399 = vadd.f32 %v391, %v396
  %v400 = vld [vmem:[%s37] sm:$0xff]
  %v401 = vld [vmem:[%s37 + $0x8] sm:$0x3]
  %v402 = vld [vmem:[%s13] sm:$0x1]
  %v403 = vld [vmem:[%s15] sm:$0x1]
  %v404 = vsel %vm194, %v398, 0.0
  %405 = vadd.xlane.f32.xlu0 %v404
  %v406 = vpop.xlane.xlu0 %405
  %v407 = vsel %vm359, %v399, 0.0
  %408 = vadd.xlane.f32.xlu0 %v407
  %v409 = vpop.xlane.xlu0 %408
  %v410 = vmul.f32 %v406, %v363
  %v411 = vmul.f32 %v409, %v363
  %v412 = vsub.f32 %v398, %v410
  %v413 = vsub.f32 %v399, %v411
  %v414 = vmul.f32 %v412, %v412
  %v415 = vmul.f32 %v413, %v413
  %v416 = vsel %vm194, %v414, 0.0
  %417 = vadd.xlane.f32.xlu0 %v416
  %v418 = vpop.xlane.xlu0 %417
  %v419 = vsel %vm359, %v415, 0.0
  %420 = vadd.xlane.f32.xlu0 %v419
  %v421 = vpop.xlane.xlu0 %420
  %v422 = vmul.f32 %v418, %v363
  %v423 = vmul.f32 %v421, %v363
  %v424 = vadd.f32 %v422, 1e-05
  %v425 = vadd.f32 %v423, 1e-05
  %v426 = vrsqrt.pop %v424
  %v427 = vrsqrt.pop %v425
  %v428 = vmul.f32 %v412, %v426
  %v429 = vmul.f32 %v413, %v427
  %v431 = vlaneseq
  %v432 = vshrl.u32 %v431, 7
  %v433 = vsub.s32 0, %v432
  %v434 = vrot.slane %v402, %v433
  %v436 = vmul.f32 %v428, %v434
  %v437 = vmul.f32 %v429, %v434
  %v439 = vlaneseq
  %v440 = vshrl.u32 %v439, 7
  %v441 = vsub.s32 0, %v440
  %v442 = vrot.slane %v403, %v441
  %v444 = vadd.f32 %v436, %v442
  %v445 = vadd.f32 %v437, %v442
  %v446 = vld [vmem:[%s17] sm:$0xff]
  %v447 = vld [vmem:[%s17 + $0x8] sm:$0xff]
  %v448 = vld [vmem:[%s17 + $0x10] sm:$0xff]
  %v449 = vld [vmem:[%s17 + $0x18] sm:$0xff]
  %v450 = vld [vmem:[%s17 + $0x20] sm:$0xff]
  %v451 = vld [vmem:[%s17 + $0x28] sm:$0xff]
  %v452 = vld [vmem:[%s17 + $0x30] sm:$0xff]
  %v453 = vld [vmem:[%s17 + $0x38] sm:$0xff]
  %v454 = vld [vmem:[%s17 + $0x40] sm:$0xff]
  %v455 = vld [vmem:[%s17 + $0x48] sm:$0xff]
  %v456 = vld [vmem:[%s17 + $0x50] sm:$0xff]
  %v457 = vld [vmem:[%s17 + $0x58] sm:$0xff]
  %v458 = vld [vmem:[%s17 + $0x60] sm:$0xff]
  %v459 = vld [vmem:[%s17 + $0x68] sm:$0xff]
  %v460 = vld [vmem:[%s17 + $0x70] sm:$0xff]
  %v461 = vld [vmem:[%s17 + $0x78] sm:$0xff]
  %v462 = vld [vmem:[%s19] sm:$0x3]
  %v464 = vlaneseq
  %v465 = vshrl.u32 %v464, 7
  %v466 = vsub.s32 0, %v465
  %v467 = vrot.slane %v462, %v466
  %v468 = vlaneseq
  %v469 = vshrl.u32 %v468, 7
  %v470 = vsub.s32 1, %v469
  %v471 = vrot.slane %v462, %v470
  %v475 = vsel %vm194, %v444, 0
  %v478 = vsel %vm194, %v445, 0
  %480 = vmatprep.subr.mxu0 %v447
  %481 = vmatpush1.msra.mxu0 %v446
  %482 = vmatprep.subr.mxu0 %v449
  %483 = vmatpush1.msra.mxu0 %v448
  %484 = vmatprep.subr.mxu0 %v451
  %485 = vmatpush1.msra.mxu0 %v450
  %486 = vmatprep.subr.mxu0 %v453
  %487 = vmatpush1.msra.mxu0 %v452
  %488 = vmatprep.subr.mxu0 %v455
  %489 = vmatpush1.msra.mxu0 %v454
  %490 = vmatprep.subr.mxu0 %v457
  %491 = vmatpush1.msra.mxu0 %v456
  %492 = vmatprep.subr.mxu0 %v459
  %493 = vmatpush1.msra.mxu0 %v458
  %494 = vmatprep.subr.mxu0 %v461
  %495 = vmatpush1.msra.mxu0 %v460
  %496 = vmatprep.subr.mxu0 0.0
  %497 = vmatpush1.msra.mxu0 0.0
  %498 = vmatprep.subr.mxu0 0.0
  %499 = vmatpush1.msra.mxu0 0.0
  %500 = vmatprep.subr.mxu0 0.0
  %501 = vmatpush1.msra.mxu0 0.0
  %502 = vmatprep.subr.mxu0 0.0
  %503 = vmatpush1.msra.mxu0 0.0
  %504 = vmatprep.subr.mxu0 0.0
  %505 = vmatpush1.msra.mxu0 0.0
  %506 = vmatprep.subr.mxu0 0.0
  %507 = vmatpush1.msra.mxu0 0.0
  %508 = vmatprep.subr.mxu0 0.0
  %509 = vmatpush1.msra.mxu0 0.0
  %510 = vmatprep.subr.mxu0 0.0
  %511 = vmatpush1.msra.mxu0 0.0
  %512 = vmatprep.subr.mxu0 0.0
  %513 = vmatpush1.msra.mxu0 0.0
  %514 = vmatprep.subr.mxu0 0.0
  %515 = vmatpush1.msra.mxu0 0.0
  %516 = vmatprep.subr.mxu0 0.0
  %517 = vmatpush1.msra.mxu0 0.0
  %518 = vmatprep.subr.mxu0 0.0
  %519 = vmatpush1.msra.mxu0 0.0
  %520 = vmatprep.subr.mxu0 0.0
  %521 = vmatpush1.msra.mxu0 0.0
  %522 = vmatprep.subr.mxu0 0.0
  %523 = vmatpush1.msra.mxu0 0.0
  %524 = vmatprep.subr.mxu0 0.0
  %525 = vmatpush1.msra.mxu0 0.0
  %526 = vmatprep.subr.mxu0 0.0
  %527 = vmatpush1.msra.mxu0 0.0
  %528 = vmatprep.subr.mxu0 0.0
  %529 = vmatpush1.msra.mxu0 0.0
  %530 = vmatprep.subr.mxu0 0.0
  %531 = vmatpush1.msra.mxu0 0.0
  %532 = vmatprep.subr.mxu0 0.0
  %533 = vmatpush1.msra.mxu0 0.0
  %534 = vmatprep.subr.mxu0 0.0
  %535 = vmatpush1.msra.mxu0 0.0
  %536 = vmatprep.subr.mxu0 0.0
  %537 = vmatpush1.msra.mxu0 0.0
  %538 = vmatprep.subr.mxu0 0.0
  %539 = vmatpush1.msra.mxu0 0.0
  %540 = vmatprep.subr.mxu0 0.0
  %541 = vmatpush1.msra.mxu0 0.0
  %542 = vmatprep.subr.mxu0 0.0
  %543 = vmatpush1.msra.mxu0 0.0
  %544 = vmatprep.mubr.f32.mxu0 0.0
  %545 = vmatmul.mubr.f32.gmra.mrb[0].mxu0 %v475
  %v546 = vpop.f32.mrb[0].mxu0
  %v547 = vadd.f32 %v467, %v546
  %v548 = vpop.f32.mrb[0].mxu0
  %v549 = vadd.f32 %v471, %v548
  %550 = vmatprep.mubr.f32.mxu0 0.0
  %551 = vmatmul.mubr.f32.gmra.mrb[0].mxu0 %v478
  %v552 = vpop.f32.mrb[0].mxu0
  %v553 = vadd.f32 %v467, %v552
  %v554 = vpop.f32.mrb[0].mxu0
  %v555 = vadd.f32 %v471, %v554
  %556 = vdwg.mxu0
  %557 = vst [vmem:[#allocation2] sm:$0xff] %v547
  %558 = vst.msk [vmem:[#allocation2 + $0x8] sm:$0xff] %vm194, %v549
  %559 = vst [vmem:[#allocation2 + $0x10] sm:$0x3] %v553
  %560 = vst.msk [vmem:[#allocation2 + $0x18] sm:$0x3] %vm359, %v555
  %v561 = vld [vmem:[%s21] sm:$0xff]
  %v562 = vld [vmem:[%s21 + $0x8] sm:$0xff]
  %v563 = vld [vmem:[%s21 + $0x10] sm:$0xff]
  %v564 = vld [vmem:[%s21 + $0x18] sm:$0xff]
  %v565 = vld [vmem:[%s21 + $0x20] sm:$0xff]
  %v566 = vld [vmem:[%s21 + $0x28] sm:$0xff]
  %v567 = vld [vmem:[%s21 + $0x30] sm:$0xff]
  %v568 = vld [vmem:[%s21 + $0x38] sm:$0xff]
  %v569 = vld [vmem:[#allocation2] sm:$0xff]
  %v570 = vld [vmem:[#allocation2 + $0x10] sm:$0x3]
  %v571 = vld [vmem:[#allocation2 + $0x8] sm:$0xff]
  %v572 = vld [vmem:[#allocation2 + $0x18] sm:$0x3]
  %v573 = vmul.f32 %v569, 0.125
  %v574 = vmul.f32 %v570, 0.125
  %577 = vrot.lane.b32.xlu0 %v569, 64
  %v578 = vpop.permute.xlu0 %577
  %579 = vrot.lane.b32.xlu0 %v570, 64
  %v580 = vpop.permute.xlu0 %579
  %v582 = vsel %vm194, %v573, 0
  %v585 = vsel %vm194, %v574, 0
  %v587 = vsel %vm194, %v578, 0
  %v589 = vsel %vm194, %v580, 0
  %591 = vmatprep.subr.mxu0 0.0
  %592 = vmatpush1.xpose.msra.mxu0 %v587
  %593 = vmatprep.subr.mxu0 0.0
  %594 = vmatpush1.xpose.msra.mxu0 %v589
  %595 = vmatprep.subr.mxu0 0.0
  %596 = vmatpush1.xpose.msra.mxu0 0.0
  %597 = vmatprep.subr.mxu0 0.0
  %598 = vmatpush1.xpose.msra.mxu0 0.0
  %599 = vmatprep.subr.mxu0 0.0
  %600 = vmatpush1.xpose.msra.mxu0 0.0
  %601 = vmatprep.subr.mxu0 0.0
  %602 = vmatpush1.xpose.msra.mxu0 0.0
  %603 = vmatprep.subr.mxu0 0.0
  %604 = vmatpush1.xpose.msra.mxu0 0.0
  %605 = vmatprep.subr.mxu0 0.0
  %606 = vmatpush1.xpose.msra.mxu0 0.0
  %607 = vmatprep.subr.mxu0 0.0
  %608 = vmatpush1.xpose.msra.mxu0 0.0
  %609 = vmatprep.subr.mxu0 0.0
  %610 = vmatpush1.xpose.msra.mxu0 0.0
  %611 = vmatprep.subr.mxu0 0.0
  %612 = vmatpush1.xpose.msra.mxu0 0.0
  %613 = vmatprep.subr.mxu0 0.0
  %614 = vmatpush1.xpose.msra.mxu0 0.0
  %615 = vmatprep.subr.mxu0 0.0
  %616 = vmatpush1.xpose.msra.mxu0 0.0
  %617 = vmatprep.subr.mxu0 0.0
  %618 = vmatpush1.xpose.msra.mxu0 0.0
  %619 = vmatprep.subr.mxu0 0.0
  %620 = vmatpush1.xpose.msra.mxu0 0.0
  %621 = vmatprep.subr.mxu0 0.0
  %622 = vmatpush1.xpose.msra.mxu0 0.0
  %623 = vmatprep.subr.mxu0 0.0
  %624 = vmatpush1.xpose.msra.mxu0 0.0
  %625 = vmatprep.subr.mxu0 0.0
  %626 = vmatpush1.xpose.msra.mxu0 0.0
  %627 = vmatprep.subr.mxu0 0.0
  %628 = vmatpush1.xpose.msra.mxu0 0.0
  %629 = vmatprep.subr.mxu0 0.0
  %630 = vmatpush1.xpose.msra.mxu0 0.0
  %631 = vmatprep.subr.mxu0 0.0
  %632 = vmatpush1.xpose.msra.mxu0 0.0
  %633 = vmatprep.subr.mxu0 0.0
  %634 = vmatpush1.xpose.msra.mxu0 0.0
  %635 = vmatprep.subr.mxu0 0.0
  %636 = vmatpush1.xpose.msra.mxu0 0.0
  %637 = vmatprep.subr.mxu0 0.0
  %638 = vmatpush1.xpose.msra.mxu0 0.0
  %639 = vmatprep.subr.mxu0 0.0
  %640 = vmatpush1.xpose.msra.mxu0 0.0
  %641 = vmatprep.subr.mxu0 0.0
  %642 = vmatpush1.xpose.msra.mxu0 0.0
  %643 = vmatprep.subr.mxu0 0.0
  %644 = vmatpush1.xpose.msra.mxu0 0.0
  %645 = vmatprep.subr.mxu0 0.0
  %646 = vmatpush1.xpose.msra.mxu0 0.0
  %647 = vmatprep.subr.mxu0 0.0
  %648 = vmatpush1.xpose.msra.mxu0 0.0
  %649 = vmatprep.subr.mxu0 0.0
  %650 = vmatpush1.xpose.msra.mxu0 0.0
  %651 = vmatprep.subr.mxu0 0.0
  %652 = vmatpush1.xpose.msra.mxu0 0.0
  %653 = vmatprep.subr.mxu0 0.0
  %654 = vmatpush1.xpose.msra.mxu0 0.0
  %655 = vmatprep.mubr.f32.mxu0 0.0
  %656 = vmatmul.mubr.f32.gmra.mrb[0].mxu0 %v582
  %v657 = vpop.f32.mrb[0].mxu0
  %v658 = vadd.f32 %v400, %v657
  %v659 = vpop.f32.mrb[0].mxu0
  %660 = vmatprep.mubr.f32.mxu0 0.0
  %661 = vmatmul.mubr.f32.gmra.mrb[0].mxu0 %v585
  %v662 = vpop.f32.mrb[0].mxu0
  %v663 = vadd.f32 %v401, %v662
  %v664 = vpop.f32.mrb[0].mxu0
  %665 = vdwg.mxu0
  %vm666 = vcmask 80896
  %v667 = vsel %vm666, %v658, -inf
  %668 = vmax.xlane.f32.xlu0 %v667
  %v669 = vpop.xlane.xlu0 %668
  %vm670 = vcmask 74752
  %v671 = vsel %vm670, %v663, -inf
  %672 = vmax.xlane.f32.xlu0 %v671
  %v673 = vpop.xlane.xlu0 %672
  %v674 = vsub.f32 %v658, %v669
  %v675 = vsub.f32 %v663, %v673
  %v676 = vmul.f32 %v674, 1.442695
  %v677 = vpow.pop %v676
  %v678 = vmul.f32 %v675, 1.442695
  %v679 = vpow.pop %v678
  %v680 = vsel %vm666, %v677, 0.0
  %681 = vadd.xlane.f32.xlu0 %v680
  %v682 = vpop.xlane.xlu0 %681
  %v683 = vsel %vm670, %v679, 0.0
  %684 = vadd.xlane.f32.xlu0 %v683
  %v685 = vpop.xlane.xlu0 %684
  %v686 = vrcp.pop %v682
  %v687 = vrcp.pop %v685
  %v688 = vmul.f32 %v677, %v686
  %v689 = vmul.f32 %v679, %v687
  %v691 = vsel %vm666, %v688, 0
  %v694 = vsel %vm666, %v689, 0
  %vm696 = vcmask 1041408
  %v698 = vsel %vm696, %v572, 0
  %700 = vmatprep.subr.mxu0 0.0
  %701 = vmatpush1.msra.mxu0 %v571
  %702 = vmatprep.subr.mxu0 0.0
  %703 = vmatpush1.msra.mxu0 %v698
  %704 = vmatprep.subr.mxu0 0.0
  %705 = vmatpush1.msra.mxu0 0.0
  %706 = vmatprep.subr.mxu0 0.0
  %707 = vmatpush1.msra.mxu0 0.0
  %708 = vmatprep.subr.mxu0 0.0
  %709 = vmatpush1.msra.mxu0 0.0
  %710 = vmatprep.subr.mxu0 0.0
  %711 = vmatpush1.msra.mxu0 0.0
  %712 = vmatprep.subr.mxu0 0.0
  %713 = vmatpush1.msra.mxu0 0.0
  %714 = vmatprep.subr.mxu0 0.0
  %715 = vmatpush1.msra.mxu0 0.0
  %716 = vmatprep.subr.mxu0 0.0
  %717 = vmatpush1.msra.mxu0 0.0
  %718 = vmatprep.subr.mxu0 0.0
  %719 = vmatpush1.msra.mxu0 0.0
  %720 = vmatprep.subr.mxu0 0.0
  %721 = vmatpush1.msra.mxu0 0.0
  %722 = vmatprep.subr.mxu0 0.0
  %723 = vmatpush1.msra.mxu0 0.0
  %724 = vmatprep.subr.mxu0 0.0
  %725 = vmatpush1.msra.mxu0 0.0
  %726 = vmatprep.subr.mxu0 0.0
  %727 = vmatpush1.msra.mxu0 0.0
  %728 = vmatprep.subr.mxu0 0.0
  %729 = vmatpush1.msra.mxu0 0.0
  %730 = vmatprep.subr.mxu0 0.0
  %731 = vmatpush1.msra.mxu0 0.0
  %732 = vmatprep.subr.mxu0 0.0
  %733 = vmatpush1.msra.mxu0 0.0
  %734 = vmatprep.subr.mxu0 0.0
  %735 = vmatpush1.msra.mxu0 0.0
  %736 = vmatprep.subr.mxu0 0.0
  %737 = vmatpush1.msra.mxu0 0.0
  %738 = vmatprep.subr.mxu0 0.0
  %739 = vmatpush1.msra.mxu0 0.0
  %740 = vmatprep.subr.mxu0 0.0
  %741 = vmatpush1.msra.mxu0 0.0
  %742 = vmatprep.subr.mxu0 0.0
  %743 = vmatpush1.msra.mxu0 0.0
  %744 = vmatprep.subr.mxu0 0.0
  %745 = vmatpush1.msra.mxu0 0.0
  %746 = vmatprep.subr.mxu0 0.0
  %747 = vmatpush1.msra.mxu0 0.0
  %748 = vmatprep.subr.mxu0 0.0
  %749 = vmatpush1.msra.mxu0 0.0
  %750 = vmatprep.subr.mxu0 0.0
  %751 = vmatpush1.msra.mxu0 0.0
  %752 = vmatprep.subr.mxu0 0.0
  %753 = vmatpush1.msra.mxu0 0.0
  %754 = vmatprep.subr.mxu0 0.0
  %755 = vmatpush1.msra.mxu0 0.0
  %756 = vmatprep.subr.mxu0 0.0
  %757 = vmatpush1.msra.mxu0 0.0
  %758 = vmatprep.subr.mxu0 0.0
  %759 = vmatpush1.msra.mxu0 0.0
  %760 = vmatprep.subr.mxu0 0.0
  %761 = vmatpush1.msra.mxu0 0.0
  %762 = vmatprep.subr.mxu0 0.0
  %763 = vmatpush1.msra.mxu0 0.0
  %764 = vmatprep.mubr.f32.mxu0 0.0
  %765 = vmatmul.mubr.f32.gmra.mrb[0].mxu0 %v691
  %v766 = vpop.f32.mrb[0].mxu0
  %v767 = vadd.f32 0.0, %v766
  %v768 = vpop.f32.mrb[0].mxu0
  %769 = vmatprep.mubr.f32.mxu0 0.0
  %770 = vmatmul.mubr.f32.gmra.mrb[0].mxu0 %v694
  %v771 = vpop.f32.mrb[0].mxu0
  %v772 = vadd.f32 0.0, %v771
  %v773 = vpop.f32.mrb[0].mxu0
  %774 = vdwg.mxu0
  %v776 = vsel %vm194, %v767, 0
  %v779 = vsel %vm194, %v772, 0
  %781 = vmatprep.subr.mxu0 0.0
  %782 = vmatpush1.msra.mxu0 %v561
  %783 = vmatprep.subr.mxu0 0.0
  %784 = vmatpush1.msra.mxu0 %v562
  %785 = vmatprep.subr.mxu0 0.0
  %786 = vmatpush1.msra.mxu0 %v563
  %787 = vmatprep.subr.mxu0 0.0
  %788 = vmatpush1.msra.mxu0 %v564
  %789 = vmatprep.subr.mxu0 0.0
  %790 = vmatpush1.msra.mxu0 %v565
  %791 = vmatprep.subr.mxu0 0.0
  %792 = vmatpush1.msra.mxu0 %v566
  %793 = vmatprep.subr.mxu0 0.0
  %794 = vmatpush1.msra.mxu0 %v567
  %795 = vmatprep.subr.mxu0 0.0
  %796 = vmatpush1.msra.mxu0 %v568
  %797 = vmatprep.subr.mxu0 0.0
  %798 = vmatpush1.msra.mxu0 0.0
  %799 = vmatprep.subr.mxu0 0.0
  %800 = vmatpush1.msra.mxu0 0.0
  %801 = vmatprep.subr.mxu0 0.0
  %802 = vmatpush1.msra.mxu0 0.0
  %803 = vmatprep.subr.mxu0 0.0
  %804 = vmatpush1.msra.mxu0 0.0
  %805 = vmatprep.subr.mxu0 0.0
  %806 = vmatpush1.msra.mxu0 0.0
  %807 = vmatprep.subr.mxu0 0.0
  %808 = vmatpush1.msra.mxu0 0.0
  %809 = vmatprep.subr.mxu0 0.0
  %810 = vmatpush1.msra.mxu0 0.0
  %811 = vmatprep.subr.mxu0 0.0
  %812 = vmatpush1.msra.mxu0 0.0
  %813 = vmatprep.subr.mxu0 0.0
  %814 = vmatpush1.msra.mxu0 0.0
  %815 = vmatprep.subr.mxu0 0.0
  %816 = vmatpush1.msra.mxu0 0.0
  %817 = vmatprep.subr.mxu0 0.0
  %818 = vmatpush1.msra.mxu0 0.0
  %819 = vmatprep.subr.mxu0 0.0
  %820 = vmatpush1.msra.mxu0 0.0
  %821 = vmatprep.subr.mxu0 0.0
  %822 = vmatpush1.msra.mxu0 0.0
  %823 = vmatprep.subr.mxu0 0.0
  %824 = vmatpush1.msra.mxu0 0.0
  %825 = vmatprep.subr.mxu0 0.0
  %826 = vmatpush1.msra.mxu0 0.0
  %827 = vmatprep.subr.mxu0 0.0
  %828 = vmatpush1.msra.mxu0 0.0
  %829 = vmatprep.subr.mxu0 0.0
  %830 = vmatpush1.msra.mxu0 0.0
  %831 = vmatprep.subr.mxu0 0.0
  %832 = vmatpush1.msra.mxu0 0.0
  %833 = vmatprep.subr.mxu0 0.0
  %834 = vmatpush1.msra.mxu0 0.0
  %835 = vmatprep.subr.mxu0 0.0
  %836 = vmatpush1.msra.mxu0 0.0
  %837 = vmatprep.subr.mxu0 0.0
  %838 = vmatpush1.msra.mxu0 0.0
  %839 = vmatprep.subr.mxu0 0.0
  %840 = vmatpush1.msra.mxu0 0.0
  %841 = vmatprep.subr.mxu0 0.0
  %842 = vmatpush1.msra.mxu0 0.0
  %843 = vmatprep.subr.mxu0 0.0
  %844 = vmatpush1.msra.mxu0 0.0
  %845 = vmatprep.mubr.f32.mxu0 0.0
  %846 = vmatmul.mubr.f32.gmra.mrb[0].mxu0 %v776
  %v847 = vpop.f32.mrb[0].mxu0
  %v848 = vadd.f32 0.0, %v847
  %v849 = vpop.f32.mrb[0].mxu0
  %850 = vmatprep.mubr.f32.mxu0 0.0
  %851 = vmatmul.mubr.f32.gmra.mrb[0].mxu0 %v779
  %v852 = vpop.f32.mrb[0].mxu0
  %v853 = vadd.f32 0.0, %v852
  %v854 = vpop.f32.mrb[0].mxu0
  %855 = vdwg.mxu0
  %v856 = vadd.f32 %v398, %v848
  %v857 = vadd.f32 %v399, %v853
  %v858 = vld [vmem:[%s23] sm:$0x1]
  %v860 = vlaneseq
  %v861 = vshrl.u32 %v860, 7
  %v862 = vsub.s32 0, %v861
  %v863 = vrot.slane %v858, %v862
  %v865 = vadd.f32 %v856, %v863
  %v866 = vadd.f32 %v857, %v863
  %v867 = vld [vmem:[%s25] sm:$0x1]
  %v868 = vld [vmem:[%s27] sm:$0x1]
  %v869 = vsel %vm194, %v865, 0.0
  %870 = vadd.xlane.f32.xlu0 %v869
  %v871 = vpop.xlane.xlu0 %870
  %v872 = vsel %vm359, %v866, 0.0
  %873 = vadd.xlane.f32.xlu0 %v872
  %v874 = vpop.xlane.xlu0 %873
  %v875 = vmul.f32 %v871, %v363
  %v876 = vmul.f32 %v874, %v363
  %v877 = vsub.f32 %v865, %v875
  %v878 = vsub.f32 %v866, %v876
  %v879 = vmul.f32 %v877, %v877
  %v880 = vmul.f32 %v878, %v878
  %v881 = vsel %vm194, %v879, 0.0
  %882 = vadd.xlane.f32.xlu0 %v881
  %v883 = vpop.xlane.xlu0 %882
  %v884 = vsel %vm359, %v880, 0.0
  %885 = vadd.xlane.f32.xlu0 %v884
  %v886 = vpop.xlane.xlu0 %885
  %v887 = vmul.f32 %v883, %v363
  %v888 = vmul.f32 %v886, %v363
  %v889 = vadd.f32 %v887, 1e-05
  %v890 = vadd.f32 %v888, 1e-05
  %v891 = vrsqrt.pop %v889
  %v892 = vrsqrt.pop %v890
  %v893 = vmul.f32 %v877, %v891
  %v894 = vmul.f32 %v878, %v892
  %v896 = vlaneseq
  %v897 = vshrl.u32 %v896, 7
  %v898 = vsub.s32 0, %v897
  %v899 = vrot.slane %v867, %v898
  %v901 = vmul.f32 %v893, %v899
  %v902 = vmul.f32 %v894, %v899
  %v904 = vlaneseq
  %v905 = vshrl.u32 %v904, 7
  %v906 = vsub.s32 0, %v905
  %v907 = vrot.slane %v868, %v906
  %v909 = vadd.f32 %v901, %v907
  %v910 = vadd.f32 %v902, %v907
  %v911 = vld [vmem:[%s29] sm:$0xff]
  %v912 = vld [vmem:[%s29 + $0x8] sm:$0xff]
  %v913 = vld [vmem:[%s29 + $0x10] sm:$0xff]
  %v914 = vld [vmem:[%s29 + $0x18] sm:$0xff]
  %v915 = vld [vmem:[%s29 + $0x20] sm:$0xff]
  %v916 = vld [vmem:[%s29 + $0x28] sm:$0xff]
  %v917 = vld [vmem:[%s29 + $0x30] sm:$0xff]
  %v918 = vld [vmem:[%s29 + $0x38] sm:$0xff]
  %v919 = vld [vmem:[%s29 + $0x40] sm:$0xff]
  %v920 = vld [vmem:[%s29 + $0x48] sm:$0xff]
  %v921 = vld [vmem:[%s29 + $0x50] sm:$0xff]
  %v922 = vld [vmem:[%s29 + $0x58] sm:$0xff]
  %v923 = vld [vmem:[%s29 + $0x60] sm:$0xff]
  %v924 = vld [vmem:[%s29 + $0x68] sm:$0xff]
  %v925 = vld [vmem:[%s29 + $0x70] sm:$0xff]
  %v926 = vld [vmem:[%s29 + $0x78] sm:$0xff]
  %v927 = vld [vmem:[%s31] sm:$0x3]
  %v929 = vlaneseq
  %v930 = vshrl.u32 %v929, 7
  %v931 = vsub.s32 0, %v930
  %v932 = vrot.slane %v927, %v931
  %v933 = vlaneseq
  %v934 = vshrl.u32 %v933, 7
  %v935 = vsub.s32 1, %v934
  %v936 = vrot.slane %v927, %v935
  %v940 = vsel %vm194, %v909, 0
  %v943 = vsel %vm194, %v910, 0
  %945 = vmatprep.subr.mxu0 %v912
  %946 = vmatpush1.msra.mxu0 %v911
  %947 = vmatprep.subr.mxu0 %v914
  %948 = vmatpush1.msra.mxu0 %v913
  %949 = vmatprep.subr.mxu0 %v916
  %950 = vmatpush1.msra.mxu0 %v915
  %951 = vmatprep.subr.mxu0 %v918
  %952 = vmatpush1.msra.mxu0 %v917
  %953 = vmatprep.subr.mxu0 %v920
  %954 = vmatpush1.msra.mxu0 %v919
  %955 = vmatprep.subr.mxu0 %v922
  %956 = vmatpush1.msra.mxu0 %v921
  %957 = vmatprep.subr.mxu0 %v924
  %958 = vmatpush1.msra.mxu0 %v923
  %959 = vmatprep.subr.mxu0 %v926
  %960 = vmatpush1.msra.mxu0 %v925
  %961 = vmatprep.subr.mxu0 0.0
  %962 = vmatpush1.msra.mxu0 0.0
  %963 = vmatprep.subr.mxu0 0.0
  %964 = vmatpush1.msra.mxu0 0.0
  %965 = vmatprep.subr.mxu0 0.0
  %966 = vmatpush1.msra.mxu0 0.0
  %967 = vmatprep.subr.mxu0 0.0
  %968 = vmatpush1.msra.mxu0 0.0
  %969 = vmatprep.subr.mxu0 0.0
  %970 = vmatpush1.msra.mxu0 0.0
  %971 = vmatprep.subr.mxu0 0.0
  %972 = vmatpush1.msra.mxu0 0.0
  %973 = vmatprep.subr.mxu0 0.0
  %974 = vmatpush1.msra.mxu0 0.0
  %975 = vmatprep.subr.mxu0 0.0
  %976 = vmatpush1.msra.mxu0 0.0
  %977 = vmatprep.subr.mxu0 0.0
  %978 = vmatpush1.msra.mxu0 0.0
  %979 = vmatprep.subr.mxu0 0.0
  %980 = vmatpush1.msra.mxu0 0.0
  %981 = vmatprep.subr.mxu0 0.0
  %982 = vmatpush1.msra.mxu0 0.0
  %983 = vmatprep.subr.mxu0 0.0
  %984 = vmatpush1.msra.mxu0 0.0
  %985 = vmatprep.subr.mxu0 0.0
  %986 = vmatpush1.msra.mxu0 0.0
  %987 = vmatprep.subr.mxu0 0.0
  %988 = vmatpush1.msra.mxu0 0.0
  %989 = vmatprep.subr.mxu0 0.0
  %990 = vmatpush1.msra.mxu0 0.0
  %991 = vmatprep.subr.mxu0 0.0
  %992 = vmatpush1.msra.mxu0 0.0
  %993 = vmatprep.subr.mxu0 0.0
  %994 = vmatpush1.msra.mxu0 0.0
  %995 = vmatprep.subr.mxu0 0.0
  %996 = vmatpush1.msra.mxu0 0.0
  %997 = vmatprep.subr.mxu0 0.0
  %998 = vmatpush1.msra.mxu0 0.0
  %999 = vmatprep.subr.mxu0 0.0
  %1000 = vmatpush1.msra.mxu0 0.0
  %1001 = vmatprep.subr.mxu0 0.0
  %1002 = vmatpush1.msra.mxu0 0.0
  %1003 = vmatprep.subr.mxu0 0.0
  %1004 = vmatpush1.msra.mxu0 0.0
  %1005 = vmatprep.subr.mxu0 0.0
  %1006 = vmatpush1.msra.mxu0 0.0
  %1007 = vmatprep.subr.mxu0 0.0
  %1008 = vmatpush1.msra.mxu0 0.0
  %1009 = vmatprep.mubr.f32.mxu0 0.0
  %1010 = vmatmul.mubr.f32.gmra.mrb[0].mxu0 %v940
  %v1011 = vpop.f32.mrb[0].mxu0
  %v1012 = vadd.f32 %v932, %v1011
  %v1013 = vpop.f32.mrb[0].mxu0
  %v1014 = vadd.f32 %v936, %v1013
  %1015 = vmatprep.mubr.f32.mxu0 0.0
  %1016 = vmatmul.mubr.f32.gmra.mrb[0].mxu0 %v943
  %v1017 = vpop.f32.mrb[0].mxu0
  %v1018 = vadd.f32 %v932, %v1017
  %v1019 = vpop.f32.mrb[0].mxu0
  %v1020 = vadd.f32 %v936, %v1019
  %1021 = vdwg.mxu0
  %v1022 = vmul.f32 %v1012, 1.702
  %v1023 = vmul.f32 %v1014, 1.702
  %v1024 = vmul.f32 %v1018, 1.702
  %v1025 = vmul.f32 %v1020, 1.702
  %v1026 = vxor.u32 %v1022, 2147483648
  %v1027 = vxor.u32 %v1023, 2147483648
  %v1028 = vxor.u32 %v1024, 2147483648
  %v1029 = vxor.u32 %v1025, 2147483648
  %v1030 = vmul.f32 %v1026, 1.442695
  %v1031 = vpow.pop %v1030
  %v1032 = vmul.f32 %v1027, 1.442695
  %v1033 = vpow.pop %v1032
  %v1034 = vmul.f32 %v1028, 1.442695
  %v1035 = vpow.pop %v1034
  %v1036 = vmul.f32 %v1029, 1.442695
  %v1037 = vpow.pop %v1036
  %v1038 = vadd.f32 %v1031, 1.0
  %v1039 = vadd.f32 %v1033, 1.0
  %v1040 = vadd.f32 %v1035, 1.0
  %v1041 = vadd.f32 %v1037, 1.0
  %v1042 = vrcp.pop %v1038
  %v1043 = vmul.f32 1.0, %v1042
  %v1044 = vrcp.pop %v1039
  %v1045 = vmul.f32 1.0, %v1044
  %v1046 = vrcp.pop %v1040
  %v1047 = vmul.f32 1.0, %v1046
  %v1048 = vrcp.pop %v1041
  %v1049 = vmul.f32 1.0, %v1048
  %v1050 = vmul.f32 %v1012, %v1043
  %v1051 = vmul.f32 %v1014, %v1045
  %v1052 = vmul.f32 %v1018, %v1047
  %v1053 = vmul.f32 %v1020, %v1049
  %v1054 = vld [vmem:[%s33] sm:$0xff]
  %v1055 = vld [vmem:[%s33 + $0x8] sm:$0xff]
  %v1056 = vld [vmem:[%s33 + $0x10] sm:$0xff]
  %v1057 = vld [vmem:[%s33 + $0x18] sm:$0xff]
  %v1058 = vld [vmem:[%s33 + $0x20] sm:$0xff]
  %v1059 = vld [vmem:[%s33 + $0x28] sm:$0xff]
  %v1060 = vld [vmem:[%s33 + $0x30] sm:$0xff]
  %v1061 = vld [vmem:[%s33 + $0x38] sm:$0xff]
  %v1062 = vld [vmem:[%s33 + $0x40] sm:$0xff]
  %v1063 = vld [vmem:[%s33 + $0x48] sm:$0xff]
  %v1064 = vld [vmem:[%s33 + $0x50] sm:$0xff]
  %v1065 = vld [vmem:[%s33 + $0x58] sm:$0xff]
  %v1066 = vld [vmem:[%s33 + $0x60] sm:$0xff]
  %v1067 = vld [vmem:[%s33 + $0x68] sm:$0xff]
  %v1068 = vld [vmem:[%s33 + $0x70] sm:$0xff]
  %v1069 = vld [vmem:[%s33 + $0x78] sm:$0xff]
  %v1070 = vld [vmem:[%s33 + $0x80] sm:$0xff]
  %v1071 = vld [vmem:[%s33 + $0x88] sm:$0xff]
  %v1072 = vld [vmem:[%s33 + $0x90] sm:$0xff]
  %v1073 = vld [vmem:[%s33 + $0x98] sm:$0xff]
  %v1074 = vld [vmem:[%s33 + $0xa0] sm:$0xff]
  %v1075 = vld [vmem:[%s33 + $0xa8] sm:$0xff]
  %v1076 = vld [vmem:[%s33 + $0xb0] sm:$0xff]
  %v1077 = vld [vmem:[%s33 + $0xb8] sm:$0xff]
  %v1078 = vld [vmem:[%s33 + $0xc0] sm:$0xff]
  %v1079 = vld [vmem:[%s33 + $0xc8] sm:$0xff]
  %v1080 = vld [vmem:[%s33 + $0xd0] sm:$0xff]
  %v1081 = vld [vmem:[%s33 + $0xd8] sm:$0xff]
  %v1082 = vld [vmem:[%s33 + $0xe0] sm:$0xff]
  %v1083 = vld [vmem:[%s33 + $0xe8] sm:$0xff]
  %v1084 = vld [vmem:[%s33 + $0xf0] sm:$0xff]
  %v1085 = vld [vmem:[%s33 + $0xf8] sm:$0xff]
  %1086 = vmatprep.subr.mxu0 0.0
  %1087 = vmatpush1.msra.mxu0 %v1054
  %1088 = vmatprep.subr.mxu0 0.0
  %1089 = vmatpush1.msra.mxu0 %v1055
  %1090 = vmatprep.subr.mxu0 0.0
  %1091 = vmatpush1.msra.mxu0 %v1056
  %1092 = vmatprep.subr.mxu0 0.0
  %1093 = vmatpush1.msra.mxu0 %v1057
  %1094 = vmatprep.subr.mxu0 0.0
  %1095 = vmatpush1.msra.mxu0 %v1058
  %1096 = vmatprep.subr.mxu0 0.0
  %1097 = vmatpush1.msra.mxu0 %v1059
  %1098 = vmatprep.subr.mxu0 0.0
  %1099 = vmatpush1.msra.mxu0 %v1060
  %1100 = vmatprep.subr.mxu0 0.0
  %1101 = vmatpush1.msra.mxu0 %v1061
  %1102 = vmatprep.subr.mxu0 0.0
  %1103 = vmatpush1.msra.mxu0 %v1062
  %1104 = vmatprep.subr.mxu0 0.0
  %1105 = vmatpush1.msra.mxu0 %v1063
  %1106 = vmatprep.subr.mxu0 0.0
  %1107 = vmatpush1.msra.mxu0 %v1064
  %1108 = vmatprep.subr.mxu0 0.0
  %1109 = vmatpush1.msra.mxu0 %v1065
  %1110 = vmatprep.subr.mxu0 0.0
  %1111 = vmatpush1.msra.mxu0 %v1066
  %1112 = vmatprep.subr.mxu0 0.0
  %1113 = vmatpush1.msra.mxu0 %v1067
  %1114 = vmatprep.subr.mxu0 0.0
  %1115 = vmatpush1.msra.mxu0 %v1068
  %1116 = vmatprep.subr.mxu0 0.0
  %1117 = vmatpush1.msra.mxu0 %v1069
  %1118 = vmatprep.subr.mxu0 0.0
  %1119 = vmatpush1.msra.mxu0 %v1070
  %1120 = vmatprep.subr.mxu0 0.0
  %1121 = vmatpush1.msra.mxu0 %v1071
  %1122 = vmatprep.subr.mxu0 0.0
  %1123 = vmatpush1.msra.mxu0 %v1072
  %1124 = vmatprep.subr.mxu0 0.0
  %1125 = vmatpush1.msra.mxu0 %v1073
  %1126 = vmatprep.subr.mxu0 0.0
  %1127 = vmatpush1.msra.mxu0 %v1074
  %1128 = vmatprep.subr.mxu0 0.0
  %1129 = vmatpush1.msra.mxu0 %v1075
  %1130 = vmatprep.subr.mxu0 0.0
  %1131 = vmatpush1.msra.mxu0 %v1076
  %1132 = vmatprep.subr.mxu0 0.0
  %1133 = vmatpush1.msra.mxu0 %v1077
  %1134 = vmatprep.subr.mxu0 0.0
  %1135 = vmatpush1.msra.mxu0 %v1078
  %1136 = vmatprep.subr.mxu0 0.0
  %1137 = vmatpush1.msra.mxu0 %v1079
  %1138 = vmatprep.subr.mxu0 0.0
  %1139 = vmatpush1.msra.mxu0 %v1080
  %1140 = vmatprep.subr.mxu0 0.0
  %1141 = vmatpush1.msra.mxu0 %v1081
  %1142 = vmatprep.subr.mxu0 0.0
  %1143 = vmatpush1.msra.mxu0 %v1082
  %1144 = vmatprep.subr.mxu0 0.0
  %1145 = vmatpush1.msra.mxu0 %v1083
  %1146 = vmatprep.subr.mxu0 0.0
  %1147 = vmatpush1.msra.mxu0 %v1084
  %1148 = vmatprep.subr.mxu0 0.0
  %1149 = vmatpush1.msra.mxu0 %v1085
  %1150 = vmatprep.mubr.f32.mxu0 %v1051
  %1151 = vmatmul.mubr.f32.gmra.mrb[0].mxu0 %v1050
  %v1152 = vpop.f32.mrb[0].mxu0
  %v1153 = vadd.f32 0.0, %v1152
  %v1154 = vpop.f32.mrb[0].mxu0
  %1155 = vmatprep.mubr.f32.mxu0 %v1053
  %1156 = vmatmul.mubr.f32.gmra.mrb[0].mxu0 %v1052
  %v1157 = vpop.f32.mrb[0].mxu0
  %v1158 = vadd.f32 0.0, %v1157
  %v1159 = vpop.f32.mrb[0].mxu0
  %1160 = vdwg.mxu0
  %v1161 = vadd.f32 %v865, %v1153
  %v1162 = vadd.f32 %v866, %v1158
  %v1163 = vld [vmem:[%s35] sm:$0x1]
  %v1165 = vlaneseq
  %v1166 = vshrl.u32 %v1165, 7
  %v1167 = vsub.s32 0, %v1166
  %v1168 = vrot.slane %v1163, %v1167
  %v1170 = vadd.f32 %v1161, %v1168
  %v1171 = vadd.f32 %v1162, %v1168
  %s1172 = scalar_lea.vmem %s13, 1
  %v1173 = vld [vmem:[%s1172] sm:$0x1]
  %s1174 = scalar_lea.vmem %s15, 1
  %v1175 = vld [vmem:[%s1174] sm:$0x1]
  %v1176 = vsel %vm194, %v1170, 0.0
  %1177 = vadd.xlane.f32.xlu0 %v1176
  %v1178 = vpop.xlane.xlu0 %1177
  %v1179 = vsel %vm359, %v1171, 0.0
  %1180 = vadd.xlane.f32.xlu0 %v1179
  %v1181 = vpop.xlane.xlu0 %1180
  %v1182 = vmul.f32 %v1178, %v363
  %v1183 = vmul.f32 %v1181, %v363
  %v1184 = vsub.f32 %v1170, %v1182
  %v1185 = vsub.f32 %v1171, %v1183
  %v1186 = vmul.f32 %v1184, %v1184
  %v1187 = vmul.f32 %v1185, %v1185
  %v1188 = vsel %vm194, %v1186, 0.0
  %1189 = vadd.xlane.f32.xlu0 %v1188
  %v1190 = vpop.xlane.xlu0 %1189
  %v1191 = vsel %vm359, %v1187, 0.0
  %1192 = vadd.xlane.f32.xlu0 %v1191
  %v1193 = vpop.xlane.xlu0 %1192
  %v1194 = vmul.f32 %v1190, %v363
  %v1195 = vmul.f32 %v1193, %v363
  %v1196 = vadd.f32 %v1194, 1e-05
  %v1197 = vadd.f32 %v1195, 1e-05
  %v1198 = vrsqrt.pop %v1196
  %v1199 = vrsqrt.pop %v1197
  %v1200 = vmul.f32 %v1184, %v1198
  %v1201 = vmul.f32 %v1185, %v1199
  %v1203 = vlaneseq
  %v1204 = vshrl.u32 %v1203, 7
  %v1205 = vsub.s32 0, %v1204
  %v1206 = vrot.slane %v1173, %v1205
  %v1208 = vmul.f32 %v1200, %v1206
  %v1209 = vmul.f32 %v1201, %v1206
  %v1211 = vlaneseq
  %v1212 = vshrl.u32 %v1211, 7
  %v1213 = vsub.s32 0, %v1212
  %v1214 = vrot.slane %v1175, %v1213
  %v1216 = vadd.f32 %v1208, %v1214
  %v1217 = vadd.f32 %v1209, %v1214
  %s1218 = scalar_lea.vmem %s17, 128
  %v1219 = vld [vmem:[%s1218] sm:$0xff]
  %v1220 = vld [vmem:[%s1218 + $0x8] sm:$0xff]
  %v1221 = vld [vmem:[%s1218 + $0x10] sm:$0xff]
  %v1222 = vld [vmem:[%s1218 + $0x18] sm:$0xff]
  %v1223 = vld [vmem:[%s1218 + $0x20] sm:$0xff]
  %v1224 = vld [vmem:[%s1218 + $0x28] sm:$0xff]
  %v1225 = vld [vmem:[%s1218 + $0x30] sm:$0xff]
  %v1226 = vld [vmem:[%s1218 + $0x38] sm:$0xff]
  %v1227 = vld [vmem:[%s1218 + $0x40] sm:$0xff]
  %v1228 = vld [vmem:[%s1218 + $0x48] sm:$0xff]
  %v1229 = vld [vmem:[%s1218 + $0x50] sm:$0xff]
  %v1230 = vld [vmem:[%s1218 + $0x58] sm:$0xff]
  %v1231 = vld [vmem:[%s1218 + $0x60] sm:$0xff]
  %v1232 = vld [vmem:[%s1218 + $0x68] sm:$0xff]
  %v1233 = vld [vmem:[%s1218 + $0x70] sm:$0xff]
  %v1234 = vld [vmem:[%s1218 + $0x78] sm:$0xff]
  %s1235 = scalar_lea.vmem %s19, 2
  %v1236 = vld [vmem:[%s1235] sm:$0x3]
  %v1238 = vlaneseq
  %v1239 = vshrl.u32 %v1238, 7
  %v1240 = vsub.s32 0, %v1239
  %v1241 = vrot.slane %v1236, %v1240
  %v1242 = vlaneseq
  %v1243 = vshrl.u32 %v1242, 7
  %v1244 = vsub.s32 1, %v1243
  %v1245 = vrot.slane %v1236, %v1244
  %v1249 = vsel %vm194, %v1216, 0
  %v1252 = vsel %vm194, %v1217, 0
  %1254 = vmatprep.subr.mxu0 %v1220
  %1255 = vmatpush1.msra.mxu0 %v1219
  %1256 = vmatprep.subr.mxu0 %v1222
  %1257 = vmatpush1.msra.mxu0 %v1221
  %1258 = vmatprep.subr.mxu0 %v1224
  %1259 = vmatpush1.msra.mxu0 %v1223
  %1260 = vmatprep.subr.mxu0 %v1226
  %1261 = vmatpush1.msra.mxu0 %v1225
  %1262 = vmatprep.subr.mxu0 %v1228
  %1263 = vmatpush1.msra.mxu0 %v1227
  %1264 = vmatprep.subr.mxu0 %v1230
  %1265 = vmatpush1.msra.mxu0 %v1229
  %1266 = vmatprep.subr.mxu0 %v1232
  %1267 = vmatpush1.msra.mxu0 %v1231
  %1268 = vmatprep.subr.mxu0 %v1234
  %1269 = vmatpush1.msra.mxu0 %v1233
  %1270 = vmatprep.subr.mxu0 0.0
  %1271 = vmatpush1.msra.mxu0 0.0
  %1272 = vmatprep.subr.mxu0 0.0
  %1273 = vmatpush1.msra.mxu0 0.0
  %1274 = vmatprep.subr.mxu0 0.0
  %1275 = vmatpush1.msra.mxu0 0.0
  %1276 = vmatprep.subr.mxu0 0.0
  %1277 = vmatpush1.msra.mxu0 0.0
  %1278 = vmatprep.subr.mxu0 0.0
  %1279 = vmatpush1.msra.mxu0 0.0
  %1280 = vmatprep.subr.mxu0 0.0
  %1281 = vmatpush1.msra.mxu0 0.0
  %1282 = vmatprep.subr.mxu0 0.0
  %1283 = vmatpush1.msra.mxu0 0.0
  %1284 = vmatprep.subr.mxu0 0.0
  %1285 = vmatpush1.msra.mxu0 0.0
  %1286 = vmatprep.subr.mxu0 0.0
  %1287 = vmatpush1.msra.mxu0 0.0
  %1288 = vmatprep.subr.mxu0 0.0
  %1289 = vmatpush1.msra.mxu0 0.0
  %1290 = vmatprep.subr.mxu0 0.0
  %1291 = vmatpush1.msra.mxu0 0.0
  %1292 = vmatprep.subr.mxu0 0.0
  %1293 = vmatpush1.msra.mxu0 0.0
  %1294 = vmatprep.subr.mxu0 0.0
  %1295 = vmatpush1.msra.mxu0 0.0
  %1296 = vmatprep.subr.mxu0 0.0
  %1297 = vmatpush1.msra.mxu0 0.0
  %1298 = vmatprep.subr.mxu0 0.0
  %1299 = vmatpush1.msra.mxu0 0.0
  %1300 = vmatprep.subr.mxu0 0.0
  %1301 = vmatpush1.msra.mxu0 0.0
  %1302 = vmatprep.subr.mxu0 0.0
  %1303 = vmatpush1.msra.mxu0 0.0
  %1304 = vmatprep.subr.mxu0 0.0
  %1305 = vmatpush1.msra.mxu0 0.0
  %1306 = vmatprep.subr.mxu0 0.0
  %1307 = vmatpush1.msra.mxu0 0.0
  %1308 = vmatprep.subr.mxu0 0.0
  %1309 = vmatpush1.msra.mxu0 0.0
  %1310 = vmatprep.subr.mxu0 0.0
  %1311 = vmatpush1.msra.mxu0 0.0
  %1312 = vmatprep.subr.mxu0 0.0
  %1313 = vmatpush1.msra.mxu0 0.0
  %1314 = vmatprep.subr.mxu0 0.0
  %1315 = vmatpush1.msra.mxu0 0.0
  %1316 = vmatprep.subr.mxu0 0.0
  %1317 = vmatpush1.msra.mxu0 0.0
  %1318 = vmatprep.mubr.f32.mxu0 0.0
  %1319 = vmatmul.mubr.f32.gmra.mrb[0].mxu0 %v1249
  %v1320 = vpop.f32.mrb[0].mxu0
  %v1321 = vadd.f32 %v1241, %v1320
  %v1322 = vpop.f32.mrb[0].mxu0
  %v1323 = vadd.f32 %v1245, %v1322
  %1324 = vmatprep.mubr.f32.mxu0 0.0
  %1325 = vmatmul.mubr.f32.gmra.mrb[0].mxu0 %v1252
  %v1326 = vpop.f32.mrb[0].mxu0
  %v1327 = vadd.f32 %v1241, %v1326
  %v1328 = vpop.f32.mrb[0].mxu0
  %v1329 = vadd.f32 %v1245, %v1328
  %1330 = vdwg.mxu0
  %1331 = vst [vmem:[#allocation2] sm:$0xff] %v1321
  %1332 = vst.msk [vmem:[#allocation2 + $0x8] sm:$0xff] %vm194, %v1323
  %1333 = vst [vmem:[#allocation2 + $0x10] sm:$0x3] %v1327
  %1334 = vst.msk [vmem:[#allocation2 + $0x18] sm:$0x3] %vm359, %v1329
  %s1335 = scalar_lea.vmem %s21, 64
  %v1336 = vld [vmem:[%s1335] sm:$0xff]
  %v1337 = vld [vmem:[%s1335 + $0x8] sm:$0xff]
  %v1338 = vld [vmem:[%s1335 + $0x10] sm:$0xff]
  %v1339 = vld [vmem:[%s1335 + $0x18] sm:$0xff]
  %v1340 = vld [vmem:[%s1335 + $0x20] sm:$0xff]
  %v1341 = vld [vmem:[%s1335 + $0x28] sm:$0xff]
  %v1342 = vld [vmem:[%s1335 + $0x30] sm:$0xff]
  %v1343 = vld [vmem:[%s1335 + $0x38] sm:$0xff]
  %v1344 = vld [vmem:[#allocation2] sm:$0xff]
  %v1345 = vld [vmem:[#allocation2 + $0x10] sm:$0x3]
  %v1346 = vld [vmem:[#allocation2 + $0x8] sm:$0xff]
  %v1347 = vld [vmem:[#allocation2 + $0x18] sm:$0x3]
  %v1348 = vmul.f32 %v1344, 0.125
  %v1349 = vmul.f32 %v1345, 0.125
  %1352 = vrot.lane.b32.xlu0 %v1344, 64
  %v1353 = vpop.permute.xlu0 %1352
  %1354 = vrot.lane.b32.xlu0 %v1345, 64
  %v1355 = vpop.permute.xlu0 %1354
  %v1357 = vsel %vm194, %v1348, 0
  %v1360 = vsel %vm194, %v1349, 0
  %v1362 = vsel %vm194, %v1353, 0
  %v1364 = vsel %vm194, %v1355, 0
  %1366 = vmatprep.subr.mxu0 0.0
  %1367 = vmatpush1.xpose.msra.mxu0 %v1362
  %1368 = vmatprep.subr.mxu0 0.0
  %1369 = vmatpush1.xpose.msra.mxu0 %v1364
  %1370 = vmatprep.subr.mxu0 0.0
  %1371 = vmatpush1.xpose.msra.mxu0 0.0
  %1372 = vmatprep.subr.mxu0 0.0
  %1373 = vmatpush1.xpose.msra.mxu0 0.0
  %1374 = vmatprep.subr.mxu0 0.0
  %1375 = vmatpush1.xpose.msra.mxu0 0.0
  %1376 = vmatprep.subr.mxu0 0.0
  %1377 = vmatpush1.xpose.msra.mxu0 0.0
  %1378 = vmatprep.subr.mxu0 0.0
  %1379 = vmatpush1.xpose.msra.mxu0 0.0
  %1380 = vmatprep.subr.mxu0 0.0
  %1381 = vmatpush1.xpose.msra.mxu0 0.0
  %1382 = vmatprep.subr.mxu0 0.0
  %1383 = vmatpush1.xpose.msra.mxu0 0.0
  %1384 = vmatprep.subr.mxu0 0.0
  %1385 = vmatpush1.xpose.msra.mxu0 0.0
  %1386 = vmatprep.subr.mxu0 0.0
  %1387 = vmatpush1.xpose.msra.mxu0 0.0
  %1388 = vmatprep.subr.mxu0 0.0
  %1389 = vmatpush1.xpose.msra.mxu0 0.0
  %1390 = vmatprep.subr.mxu0 0.0
  %1391 = vmatpush1.xpose.msra.mxu0 0.0
  %1392 = vmatprep.subr.mxu0 0.0
  %1393 = vmatpush1.xpose.msra.mxu0 0.0
  %1394 = vmatprep.subr.mxu0 0.0
  %1395 = vmatpush1.xpose.msra.mxu0 0.0
  %1396 = vmatprep.subr.mxu0 0.0
  %1397 = vmatpush1.xpose.msra.mxu0 0.0
  %1398 = vmatprep.subr.mxu0 0.0
  %1399 = vmatpush1.xpose.msra.mxu0 0.0
  %1400 = vmatprep.subr.mxu0 0.0
  %1401 = vmatpush1.xpose.msra.mxu0 0.0
  %1402 = vmatprep.subr.mxu0 0.0
  %1403 = vmatpush1.xpose.msra.mxu0 0.0
  %1404 = vmatprep.subr.mxu0 0.0
  %1405 = vmatpush1.xpose.msra.mxu0 0.0
  %1406 = vmatprep.subr.mxu0 0.0
  %1407 = vmatpush1.xpose.msra.mxu0 0.0
  %1408 = vmatprep.subr.mxu0 0.0
  %1409 = vmatpush1.xpose.msra.mxu0 0.0
  %1410 = vmatprep.subr.mxu0 0.0
  %1411 = vmatpush1.xpose.msra.mxu0 0.0
  %1412 = vmatprep.subr.mxu0 0.0
  %1413 = vmatpush1.xpose.msra.mxu0 0.0
  %1414 = vmatprep.subr.mxu0 0.0
  %1415 = vmatpush1.xpose.msra.mxu0 0.0
  %1416 = vmatprep.subr.mxu0 0.0
  %1417 = vmatpush1.xpose.msra.mxu0 0.0
  %1418 = vmatprep.subr.mxu0 0.0
  %1419 = vmatpush1.xpose.msra.mxu0 0.0
  %1420 = vmatprep.subr.mxu0 0.0
  %1421 = vmatpush1.xpose.msra.mxu0 0.0
  %1422 = vmatprep.subr.mxu0 0.0
  %1423 = vmatpush1.xpose.msra.mxu0 0.0
  %1424 = vmatprep.subr.mxu0 0.0
  %1425 = vmatpush1.xpose.msra.mxu0 0.0
  %1426 = vmatprep.subr.mxu0 0.0
  %1427 = vmatpush1.xpose.msra.mxu0 0.0
  %1428 = vmatprep.subr.mxu0 0.0
  %1429 = vmatpush1.xpose.msra.mxu0 0.0
  %1430 = vmatprep.mubr.f32.mxu0 0.0
  %1431 = vmatmul.mubr.f32.gmra.mrb[0].mxu0 %v1357
  %v1432 = vpop.f32.mrb[0].mxu0
  %v1433 = vadd.f32 %v400, %v1432
  %v1434 = vpop.f32.mrb[0].mxu0
  %1435 = vmatprep.mubr.f32.mxu0 0.0
  %1436 = vmatmul.mubr.f32.gmra.mrb[0].mxu0 %v1360
  %v1437 = vpop.f32.mrb[0].mxu0
  %v1438 = vadd.f32 %v401, %v1437
  %v1439 = vpop.f32.mrb[0].mxu0
  %1440 = vdwg.mxu0
  %v1441 = vsel %vm666, %v1433, -inf
  %1442 = vmax.xlane.f32.xlu0 %v1441
  %v1443 = vpop.xlane.xlu0 %1442
  %v1444 = vsel %vm670, %v1438, -inf
  %1445 = vmax.xlane.f32.xlu0 %v1444
  %v1446 = vpop.xlane.xlu0 %1445
  %v1447 = vsub.f32 %v1433, %v1443
  %v1448 = vsub.f32 %v1438, %v1446
  %v1449 = vmul.f32 %v1447, 1.442695
  %v1450 = vpow.pop %v1449
  %v1451 = vmul.f32 %v1448, 1.442695
  %v1452 = vpow.pop %v1451
  %v1453 = vsel %vm666, %v1450, 0.0
  %1454 = vadd.xlane.f32.xlu0 %v1453
  %v1455 = vpop.xlane.xlu0 %1454
  %v1456 = vsel %vm670, %v1452, 0.0
  %1457 = vadd.xlane.f32.xlu0 %v1456
  %v1458 = vpop.xlane.xlu0 %1457
  %v1459 = vrcp.pop %v1455
  %v1460 = vrcp.pop %v1458
  %v1461 = vmul.f32 %v1450, %v1459
  %v1462 = vmul.f32 %v1452, %v1460
  %v1464 = vsel %vm666, %v1461, 0
  %v1467 = vsel %vm666, %v1462, 0
  %v1470 = vsel %vm696, %v1347, 0
  %1472 = vmatprep.subr.mxu0 0.0
  %1473 = vmatpush1.msra.mxu0 %v1346
  %1474 = vmatprep.subr.mxu0 0.0
  %1475 = vmatpush1.msra.mxu0 %v1470
  %1476 = vmatprep.subr.mxu0 0.0
  %1477 = vmatpush1.msra.mxu0 0.0
  %1478 = vmatprep.subr.mxu0 0.0
  %1479 = vmatpush1.msra.mxu0 0.0
  %1480 = vmatprep.subr.mxu0 0.0
  %1481 = vmatpush1.msra.mxu0 0.0
  %1482 = vmatprep.subr.mxu0 0.0
  %1483 = vmatpush1.msra.mxu0 0.0
  %1484 = vmatprep.subr.mxu0 0.0
  %1485 = vmatpush1.msra.mxu0 0.0
  %1486 = vmatprep.subr.mxu0 0.0
  %1487 = vmatpush1.msra.mxu0 0.0
  %1488 = vmatprep.subr.mxu0 0.0
  %1489 = vmatpush1.msra.mxu0 0.0
  %1490 = vmatprep.subr.mxu0 0.0
  %1491 = vmatpush1.msra.mxu0 0.0
  %1492 = vmatprep.subr.mxu0 0.0
  %1493 = vmatpush1.msra.mxu0 0.0
  %1494 = vmatprep.subr.mxu0 0.0
  %1495 = vmatpush1.msra.mxu0 0.0
  %1496 = vmatprep.subr.mxu0 0.0
  %1497 = vmatpush1.msra.mxu0 0.0
  %1498 = vmatprep.subr.mxu0 0.0
  %1499 = vmatpush1.msra.mxu0 0.0
  %1500 = vmatprep.subr.mxu0 0.0
  %1501 = vmatpush1.msra.mxu0 0.0
  %1502 = vmatprep.subr.mxu0 0.0
  %1503 = vmatpush1.msra.mxu0 0.0
  %1504 = vmatprep.subr.mxu0 0.0
  %1505 = vmatpush1.msra.mxu0 0.0
  %1506 = vmatprep.subr.mxu0 0.0
  %1507 = vmatpush1.msra.mxu0 0.0
  %1508 = vmatprep.subr.mxu0 0.0
  %1509 = vmatpush1.msra.mxu0 0.0
  %1510 = vmatprep.subr.mxu0 0.0
  %1511 = vmatpush1.msra.mxu0 0.0
  %1512 = vmatprep.subr.mxu0 0.0
  %1513 = vmatpush1.msra.mxu0 0.0
  %1514 = vmatprep.subr.mxu0 0.0
  %1515 = vmatpush1.msra.mxu0 0.0
  %1516 = vmatprep.subr.mxu0 0.0
  %1517 = vmatpush1.msra.mxu0 0.0
  %1518 = vmatprep.subr.mxu0 0.0
  %1519 = vmatpush1.msra.mxu0 0.0
  %1520 = vmatprep.subr.mxu0 0.0
  %1521 = vmatpush1.msra.mxu0 0.0
  %1522 = vmatprep.subr.mxu0 0.0
  %1523 = vmatpush1.msra.mxu0 0.0
  %1524 = vmatprep.subr.mxu0 0.0
  %1525 = vmatpush1.msra.mxu0 0.0
  %1526 = vmatprep.subr.mxu0 0.0
  %1527 = vmatpush1.msra.mxu0 0.0
  %1528 = vmatprep.subr.mxu0 0.0
  %1529 = vmatpush1.msra.mxu0 0.0
  %1530 = vmatprep.subr.mxu0 0.0
  %1531 = vmatpush1.msra.mxu0 0.0
  %1532 = vmatprep.subr.mxu0 0.0
  %1533 = vmatpush1.msra.mxu0 0.0
  %1534 = vmatprep.subr.mxu0 0.0
  %1535 = vmatpush1.msra.mxu0 0.0
  %1536 = vmatprep.mubr.f32.mxu0 0.0
  %1537 = vmatmul.mubr.f32.gmra.mrb[0].mxu0 %v1464
  %v1538 = vpop.f32.mrb[0].mxu0
  %v1539 = vadd.f32 0.0, %v1538
  %v1540 = vpop.f32.mrb[0].mxu0
  %1541 = vmatprep.mubr.f32.mxu0 0.0
  %1542 = vmatmul.mubr.f32.gmra.mrb[0].mxu0 %v1467
  %v1543 = vpop.f32.mrb[0].mxu0
  %v1544 = vadd.f32 0.0, %v1543
  %v1545 = vpop.f32.mrb[0].mxu0
  %1546 = vdwg.mxu0
  %v1548 = vsel %vm194, %v1539, 0
  %v1551 = vsel %vm194, %v1544, 0
  %1553 = vmatprep.subr.mxu0 0.0
  %1554 = vmatpush1.msra.mxu0 %v1336
  %1555 = vmatprep.subr.mxu0 0.0
  %1556 = vmatpush1.msra.mxu0 %v1337
  %1557 = vmatprep.subr.mxu0 0.0
  %1558 = vmatpush1.msra.mxu0 %v1338
  %1559 = vmatprep.subr.mxu0 0.0
  %1560 = vmatpush1.msra.mxu0 %v1339
  %1561 = vmatprep.subr.mxu0 0.0
  %1562 = vmatpush1.msra.mxu0 %v1340
  %1563 = vmatprep.subr.mxu0 0.0
  %1564 = vmatpush1.msra.mxu0 %v1341
  %1565 = vmatprep.subr.mxu0 0.0
  %1566 = vmatpush1.msra.mxu0 %v1342
  %1567 = vmatprep.subr.mxu0 0.0
  %1568 = vmatpush1.msra.mxu0 %v1343
  %1569 = vmatprep.subr.mxu0 0.0
  %1570 = vmatpush1.msra.mxu0 0.0
  %1571 = vmatprep.subr.mxu0 0.0
  %1572 = vmatpush1.msra.mxu0 0.0
  %1573 = vmatprep.subr.mxu0 0.0
  %1574 = vmatpush1.msra.mxu0 0.0
  %1575 = vmatprep.subr.mxu0 0.0
  %1576 = vmatpush1.msra.mxu0 0.0
  %1577 = vmatprep.subr.mxu0 0.0
  %1578 = vmatpush1.msra.mxu0 0.0
  %1579 = vmatprep.subr.mxu0 0.0
  %1580 = vmatpush1.msra.mxu0 0.0
  %1581 = vmatprep.subr.mxu0 0.0
  %1582 = vmatpush1.msra.mxu0 0.0
  %1583 = vmatprep.subr.mxu0 0.0
  %1584 = vmatpush1.msra.mxu0 0.0
  %1585 = vmatprep.subr.mxu0 0.0
  %1586 = vmatpush1.msra.mxu0 0.0
  %1587 = vmatprep.subr.mxu0 0.0
  %1588 = vmatpush1.msra.mxu0 0.0
  %1589 = vmatprep.subr.mxu0 0.0
  %1590 = vmatpush1.msra.mxu0 0.0
  %1591 = vmatprep.subr.mxu0 0.0
  %1592 = vmatpush1.msra.mxu0 0.0
  %1593 = vmatprep.subr.mxu0 0.0
  %1594 = vmatpush1.msra.mxu0 0.0
  %1595 = vmatprep.subr.mxu0 0.0
  %1596 = vmatpush1.msra.mxu0 0.0
  %1597 = vmatprep.subr.mxu0 0.0
  %1598 = vmatpush1.msra.mxu0 0.0
  %1599 = vmatprep.subr.mxu0 0.0
  %1600 = vmatpush1.msra.mxu0 0.0
  %1601 = vmatprep.subr.mxu0 0.0
  %1602 = vmatpush1.msra.mxu0 0.0
  %1603 = vmatprep.subr.mxu0 0.0
  %1604 = vmatpush1.msra.mxu0 0.0
  %1605 = vmatprep.subr.mxu0 0.0
  %1606 = vmatpush1.msra.mxu0 0.0
  %1607 = vmatprep.subr.mxu0 0.0
  %1608 = vmatpush1.msra.mxu0 0.0
  %1609 = vmatprep.subr.mxu0 0.0
  %1610 = vmatpush1.msra.mxu0 0.0
  %1611 = vmatprep.subr.mxu0 0.0
  %1612 = vmatpush1.msra.mxu0 0.0
  %1613 = vmatprep.subr.mxu0 0.0
  %1614 = vmatpush1.msra.mxu0 0.0
  %1615 = vmatprep.subr.mxu0 0.0
  %1616 = vmatpush1.msra.mxu0 0.0
  %1617 = vmatprep.mubr.f32.mxu0 0.0
  %1618 = vmatmul.mubr.f32.gmra.mrb[0].mxu0 %v1548
  %v1619 = vpop.f32.mrb[0].mxu0
  %v1620 = vadd.f32 0.0, %v1619
  %v1621 = vpop.f32.mrb[0].mxu0
  %1622 = vmatprep.mubr.f32.mxu0 0.0
  %1623 = vmatmul.mubr.f32.gmra.mrb[0].mxu0 %v1551
  %v1624 = vpop.f32.mrb[0].mxu0
  %v1625 = vadd.f32 0.0, %v1624
  %v1626 = vpop.f32.mrb[0].mxu0
  %1627 = vdwg.mxu0
  %v1628 = vadd.f32 %v1170, %v1620
  %v1629 = vadd.f32 %v1171, %v1625
  %s1630 = scalar_lea.vmem %s23, 1
  %v1631 = vld [vmem:[%s1630] sm:$0x1]
  %v1633 = vlaneseq
  %v1634 = vshrl.u32 %v1633, 7
  %v1635 = vsub.s32 0, %v1634
  %v1636 = vrot.slane %v1631, %v1635
  %v1638 = vadd.f32 %v1628, %v1636
  %v1639 = vadd.f32 %v1629, %v1636
  %s1640 = scalar_lea.vmem %s25, 1
  %v1641 = vld [vmem:[%s1640] sm:$0x1]
  %s1642 = scalar_lea.vmem %s27, 1
  %v1643 = vld [vmem:[%s1642] sm:$0x1]
  %v1644 = vsel %vm194, %v1638, 0.0
  %1645 = vadd.xlane.f32.xlu0 %v1644
  %v1646 = vpop.xlane.xlu0 %1645
  %v1647 = vsel %vm359, %v1639, 0.0
  %1648 = vadd.xlane.f32.xlu0 %v1647
  %v1649 = vpop.xlane.xlu0 %1648
  %v1650 = vmul.f32 %v1646, %v363
  %v1651 = vmul.f32 %v1649, %v363
  %v1652 = vsub.f32 %v1638, %v1650
  %v1653 = vsub.f32 %v1639, %v1651
  %v1654 = vmul.f32 %v1652, %v1652
  %v1655 = vmul.f32 %v1653, %v1653
  %v1656 = vsel %vm194, %v1654, 0.0
  %1657 = vadd.xlane.f32.xlu0 %v1656
  %v1658 = vpop.xlane.xlu0 %1657
  %v1659 = vsel %vm359, %v1655, 0.0
  %1660 = vadd.xlane.f32.xlu0 %v1659
  %v1661 = vpop.xlane.xlu0 %1660
  %v1662 = vmul.f32 %v1658, %v363
  %v1663 = vmul.f32 %v1661, %v363
  %v1664 = vadd.f32 %v1662, 1e-05
  %v1665 = vadd.f32 %v1663, 1e-05
  %v1666 = vrsqrt.pop %v1664
  %v1667 = vrsqrt.pop %v1665
  %v1668 = vmul.f32 %v1652, %v1666
  %v1669 = vmul.f32 %v1653, %v1667
  %v1671 = vlaneseq
  %v1672 = vshrl.u32 %v1671, 7
  %v1673 = vsub.s32 0, %v1672
  %v1674 = vrot.slane %v1641, %v1673
  %v1676 = vmul.f32 %v1668, %v1674
  %v1677 = vmul.f32 %v1669, %v1674
  %v1679 = vlaneseq
  %v1680 = vshrl.u32 %v1679, 7
  %v1681 = vsub.s32 0, %v1680
  %v1682 = vrot.slane %v1643, %v1681
  %v1684 = vadd.f32 %v1676, %v1682
  %v1685 = vadd.f32 %v1677, %v1682
  %s1686 = scalar_lea.vmem %s29, 128
  %v1687 = vld [vmem:[%s1686] sm:$0xff]
  %v1688 = vld [vmem:[%s1686 + $0x8] sm:$0xff]
  %v1689 = vld [vmem:[%s1686 + $0x10] sm:$0xff]
  %v1690 = vld [vmem:[%s1686 + $0x18] sm:$0xff]
  %v1691 = vld [vmem:[%s1686 + $0x20] sm:$0xff]
  %v1692 = vld [vmem:[%s1686 + $0x28] sm:$0xff]
  %v1693 = vld [vmem:[%s1686 + $0x30] sm:$0xff]
  %v1694 = vld [vmem:[%s1686 + $0x38] sm:$0xff]
  %v1695 = vld [vmem:[%s1686 + $0x40] sm:$0xff]
  %v1696 = vld [vmem:[%s1686 + $0x48] sm:$0xff]
  %v1697 = vld [vmem:[%s1686 + $0x50] sm:$0xff]
  %v1698 = vld [vmem:[%s1686 + $0x58] sm:$0xff]
  %v1699 = vld [vmem:[%s1686 + $0x60] sm:$0xff]
  %v1700 = vld [vmem:[%s1686 + $0x68] sm:$0xff]
  %v1701 = vld [vmem:[%s1686 + $0x70] sm:$0xff]
  %v1702 = vld [vmem:[%s1686 + $0x78] sm:$0xff]
  %s1703 = scalar_lea.vmem %s31, 2
  %v1704 = vld [vmem:[%s1703] sm:$0x3]
  %v1706 = vlaneseq
  %v1707 = vshrl.u32 %v1706, 7
  %v1708 = vsub.s32 0, %v1707
  %v1709 = vrot.slane %v1704, %v1708
  %v1710 = vlaneseq
  %v1711 = vshrl.u32 %v1710, 7
  %v1712 = vsub.s32 1, %v1711
  %v1713 = vrot.slane %v1704, %v1712
  %v1717 = vsel %vm194, %v1684, 0
  %v1720 = vsel %vm194, %v1685, 0
  %1722 = vmatprep.subr.mxu0 %v1688
  %1723 = vmatpush1.msra.mxu0 %v1687
  %1724 = vmatprep.subr.mxu0 %v1690
  %1725 = vmatpush1.msra.mxu0 %v1689
  %1726 = vmatprep.subr.mxu0 %v1692
  %1727 = vmatpush1.msra.mxu0 %v1691
  %1728 = vmatprep.subr.mxu0 %v1694
  %1729 = vmatpush1.msra.mxu0 %v1693
  %1730 = vmatprep.subr.mxu0 %v1696
  %1731 = vmatpush1.msra.mxu0 %v1695
  %1732 = vmatprep.subr.mxu0 %v1698
  %1733 = vmatpush1.msra.mxu0 %v1697
  %1734 = vmatprep.subr.mxu0 %v1700
  %1735 = vmatpush1.msra.mxu0 %v1699
  %1736 = vmatprep.subr.mxu0 %v1702
  %1737 = vmatpush1.msra.mxu0 %v1701
  %1738 = vmatprep.subr.mxu0 0.0
  %1739 = vmatpush1.msra.mxu0 0.0
  %1740 = vmatprep.subr.mxu0 0.0
  %1741 = vmatpush1.msra.mxu0 0.0
  %1742 = vmatprep.subr.mxu0 0.0
  %1743 = vmatpush1.msra.mxu0 0.0
  %1744 = vmatprep.subr.mxu0 0.0
  %1745 = vmatpush1.msra.mxu0 0.0
  %1746 = vmatprep.subr.mxu0 0.0
  %1747 = vmatpush1.msra.mxu0 0.0
  %1748 = vmatprep.subr.mxu0 0.0
  %1749 = vmatpush1.msra.mxu0 0.0
  %1750 = vmatprep.subr.mxu0 0.0
  %1751 = vmatpush1.msra.mxu0 0.0
  %1752 = vmatprep.subr.mxu0 0.0
  %1753 = vmatpush1.msra.mxu0 0.0
  %1754 = vmatprep.subr.mxu0 0.0
  %1755 = vmatpush1.msra.mxu0 0.0
  %1756 = vmatprep.subr.mxu0 0.0
  %1757 = vmatpush1.msra.mxu0 0.0
  %1758 = vmatprep.subr.mxu0 0.0
  %1759 = vmatpush1.msra.mxu0 0.0
  %1760 = vmatprep.subr.mxu0 0.0
  %1761 = vmatpush1.msra.mxu0 0.0
  %1762 = vmatprep.subr.mxu0 0.0
  %1763 = vmatpush1.msra.mxu0 0.0
  %1764 = vmatprep.subr.mxu0 0.0
  %1765 = vmatpush1.msra.mxu0 0.0
  %1766 = vmatprep.subr.mxu0 0.0
  %1767 = vmatpush1.msra.mxu0 0.0
  %1768 = vmatprep.subr.mxu0 0.0
  %1769 = vmatpush1.msra.mxu0 0.0
  %1770 = vmatprep.subr.mxu0 0.0
  %1771 = vmatpush1.msra.mxu0 0.0
  %1772 = vmatprep.subr.mxu0 0.0
  %1773 = vmatpush1.msra.mxu0 0.0
  %1774 = vmatprep.subr.mxu0 0.0
  %1775 = vmatpush1.msra.mxu0 0.0
  %1776 = vmatprep.subr.mxu0 0.0
  %1777 = vmatpush1.msra.mxu0 0.0
  %1778 = vmatprep.subr.mxu0 0.0
  %1779 = vmatpush1.msra.mxu0 0.0
  %1780 = vmatprep.subr.mxu0 0.0
  %1781 = vmatpush1.msra.mxu0 0.0
  %1782 = vmatprep.subr.mxu0 0.0
  %1783 = vmatpush1.msra.mxu0 0.0
  %1784 = vmatprep.subr.mxu0 0.0
  %1785 = vmatpush1.msra.mxu0 0.0
  %1786 = vmatprep.mubr.f32.mxu0 0.0
  %1787 = vmatmul.mubr.f32.gmra.mrb[0].mxu0 %v1717
  %v1788 = vpop.f32.mrb[0].mxu0
  %v1789 = vadd.f32 %v1709, %v1788
  %v1790 = vpop.f32.mrb[0].mxu0
  %v1791 = vadd.f32 %v1713, %v1790
  %1792 = vmatprep.mubr.f32.mxu0 0.0
  %1793 = vmatmul.mubr.f32.gmra.mrb[0].mxu0 %v1720
  %v1794 = vpop.f32.mrb[0].mxu0
  %v1795 = vadd.f32 %v1709, %v1794
  %v1796 = vpop.f32.mrb[0].mxu0
  %v1797 = vadd.f32 %v1713, %v1796
  %1798 = vdwg.mxu0
  %v1799 = vmul.f32 %v1789, 1.702
  %v1800 = vmul.f32 %v1791, 1.702
  %v1801 = vmul.f32 %v1795, 1.702
  %v1802 = vmul.f32 %v1797, 1.702
  %v1803 = vxor.u32 %v1799, 2147483648
  %v1804 = vxor.u32 %v1800, 2147483648
  %v1805 = vxor.u32 %v1801, 2147483648
  %v1806 = vxor.u32 %v1802, 2147483648
  %v1807 = vmul.f32 %v1803, 1.442695
  %v1808 = vpow.pop %v1807
  %v1809 = vmul.f32 %v1804, 1.442695
  %v1810 = vpow.pop %v1809
  %v1811 = vmul.f32 %v1805, 1.442695
  %v1812 = vpow.pop %v1811
  %v1813 = vmul.f32 %v1806, 1.442695
  %v1814 = vpow.pop %v1813
  %v1815 = vadd.f32 %v1808, 1.0
  %v1816 = vadd.f32 %v1810, 1.0
  %v1817 = vadd.f32 %v1812, 1.0
  %v1818 = vadd.f32 %v1814, 1.0
  %v1819 = vrcp.pop %v1815
  %v1820 = vmul.f32 1.0, %v1819
  %v1821 = vrcp.pop %v1816
  %v1822 = vmul.f32 1.0, %v1821
  %v1823 = vrcp.pop %v1817
  %v1824 = vmul.f32 1.0, %v1823
  %v1825 = vrcp.pop %v1818
  %v1826 = vmul.f32 1.0, %v1825
  %v1827 = vmul.f32 %v1789, %v1820
  %v1828 = vmul.f32 %v1791, %v1822
  %v1829 = vmul.f32 %v1795, %v1824
  %v1830 = vmul.f32 %v1797, %v1826
  %s1831 = scalar_lea.vmem %s33, 256
  %v1832 = vld [vmem:[%s1831] sm:$0xff]
  %v1833 = vld [vmem:[%s1831 + $0x8] sm:$0xff]
  %v1834 = vld [vmem:[%s1831 + $0x10] sm:$0xff]
  %v1835 = vld [vmem:[%s1831 + $0x18] sm:$0xff]
  %v1836 = vld [vmem:[%s1831 + $0x20] sm:$0xff]
  %v1837 = vld [vmem:[%s1831 + $0x28] sm:$0xff]
  %v1838 = vld [vmem:[%s1831 + $0x30] sm:$0xff]
  %v1839 = vld [vmem:[%s1831 + $0x38] sm:$0xff]
  %v1840 = vld [vmem:[%s1831 + $0x40] sm:$0xff]
  %v1841 = vld [vmem:[%s1831 + $0x48] sm:$0xff]
  %v1842 = vld [vmem:[%s1831 + $0x50] sm:$0xff]
  %v1843 = vld [vmem:[%s1831 + $0x58] sm:$0xff]
  %v1844 = vld [vmem:[%s1831 + $0x60] sm:$0xff]
  %v1845 = vld [vmem:[%s1831 + $0x68] sm:$0xff]
  %v1846 = vld [vmem:[%s1831 + $0x70] sm:$0xff]
  %v1847 = vld [vmem:[%s1831 + $0x78] sm:$0xff]
  %v1848 = vld [vmem:[%s1831 + $0x80] sm:$0xff]
  %v1849 = vld [vmem:[%s1831 + $0x88] sm:$0xff]
  %v1850 = vld [vmem:[%s1831 + $0x90] sm:$0xff]
  %v1851 = vld [vmem:[%s1831 + $0x98] sm:$0xff]
  %v1852 = vld [vmem:[%s1831 + $0xa0] sm:$0xff]
  %v1853 = vld [vmem:[%s1831 + $0xa8] sm:$0xff]
  %v1854 = vld [vmem:[%s1831 + $0xb0] sm:$0xff]
  %v1855 = vld [vmem:[%s1831 + $0xb8] sm:$0xff]
  %v1856 = vld [vmem:[%s1831 + $0xc0] sm:$0xff]
  %v1857 = vld [vmem:[%s1831 + $0xc8] sm:$0xff]
  %v1858 = vld [vmem:[%s1831 + $0xd0] sm:$0xff]
  %v1859 = vld [vmem:[%s1831 + $0xd8] sm:$0xff]
  %v1860 = vld [vmem:[%s1831 + $0xe0] sm:$0xff]
  %v1861 = vld [vmem:[%s1831 + $0xe8] sm:$0xff]
  %v1862 = vld [vmem:[%s1831 + $0xf0] sm:$0xff]
  %v1863 = vld [vmem:[%s1831 + $0xf8] sm:$0xff]
  %1864 = vmatprep.subr.mxu0 0.0
  %1865 = vmatpush1.msra.mxu0 %v1832
  %1866 = vmatprep.subr.mxu0 0.0
  %1867 = vmatpush1.msra.mxu0 %v1833
  %1868 = vmatprep.subr.mxu0 0.0
  %1869 = vmatpush1.msra.mxu0 %v1834
  %1870 = vmatprep.subr.mxu0 0.0
  %1871 = vmatpush1.msra.mxu0 %v1835
  %1872 = vmatprep.subr.mxu0 0.0
  %1873 = vmatpush1.msra.mxu0 %v1836
  %1874 = vmatprep.subr.mxu0 0.0
  %1875 = vmatpush1.msra.mxu0 %v1837
  %1876 = vmatprep.subr.mxu0 0.0
  %1877 = vmatpush1.msra.mxu0 %v1838
  %1878 = vmatprep.subr.mxu0 0.0
  %1879 = vmatpush1.msra.mxu0 %v1839
  %1880 = vmatprep.subr.mxu0 0.0
  %1881 = vmatpush1.msra.mxu0 %v1840
  %1882 = vmatprep.subr.mxu0 0.0
  %1883 = vmatpush1.msra.mxu0 %v1841
  %1884 = vmatprep.subr.mxu0 0.0
  %1885 = vmatpush1.msra.mxu0 %v1842
  %1886 = vmatprep.subr.mxu0 0.0
  %1887 = vmatpush1.msra.mxu0 %v1843
  %1888 = vmatprep.subr.mxu0 0.0
  %1889 = vmatpush1.msra.mxu0 %v1844
  %1890 = vmatprep.subr.mxu0 0.0
  %1891 = vmatpush1.msra.mxu0 %v1845
  %1892 = vmatprep.subr.mxu0 0.0
  %1893 = vmatpush1.msra.mxu0 %v1846
  %1894 = vmatprep.subr.mxu0 0.0
  %1895 = vmatpush1.msra.mxu0 %v1847
  %1896 = vmatprep.subr.mxu0 0.0
  %1897 = vmatpush1.msra.mxu0 %v1848
  %1898 = vmatprep.subr.mxu0 0.0
  %1899 = vmatpush1.msra.mxu0 %v1849
  %1900 = vmatprep.subr.mxu0 0.0
  %1901 = vmatpush1.msra.mxu0 %v1850
  %1902 = vmatprep.subr.mxu0 0.0
  %1903 = vmatpush1.msra.mxu0 %v1851
  %1904 = vmatprep.subr.mxu0 0.0
  %1905 = vmatpush1.msra.mxu0 %v1852
  %1906 = vmatprep.subr.mxu0 0.0
  %1907 = vmatpush1.msra.mxu0 %v1853
  %1908 = vmatprep.subr.mxu0 0.0
  %1909 = vmatpush1.msra.mxu0 %v1854
  %1910 = vmatprep.subr.mxu0 0.0
  %1911 = vmatpush1.msra.mxu0 %v1855
  %1912 = vmatprep.subr.mxu0 0.0
  %1913 = vmatpush1.msra.mxu0 %v1856
  %1914 = vmatprep.subr.mxu0 0.0
  %1915 = vmatpush1.msra.mxu0 %v1857
  %1916 = vmatprep.subr.mxu0 0.0
  %1917 = vmatpush1.msra.mxu0 %v1858
  %1918 = vmatprep.subr.mxu0 0.0
  %1919 = vmatpush1.msra.mxu0 %v1859
  %1920 = vmatprep.subr.mxu0 0.0
  %1921 = vmatpush1.msra.mxu0 %v1860
  %1922 = vmatprep.subr.mxu0 0.0
  %1923 = vmatpush1.msra.mxu0 %v1861
  %1924 = vmatprep.subr.mxu0 0.0
  %1925 = vmatpush1.msra.mxu0 %v1862
  %1926 = vmatprep.subr.mxu0 0.0
  %1927 = vmatpush1.msra.mxu0 %v1863
  %1928 = vmatprep.mubr.f32.mxu0 %v1828
  %1929 = vmatmul.mubr.f32.gmra.mrb[0].mxu0 %v1827
  %v1930 = vpop.f32.mrb[0].mxu0
  %v1931 = vadd.f32 0.0, %v1930
  %v1932 = vpop.f32.mrb[0].mxu0
  %1933 = vmatprep.mubr.f32.mxu0 %v1830
  %1934 = vmatmul.mubr.f32.gmra.mrb[0].mxu0 %v1829
  %v1935 = vpop.f32.mrb[0].mxu0
  %v1936 = vadd.f32 0.0, %v1935
  %v1937 = vpop.f32.mrb[0].mxu0
  %1938 = vdwg.mxu0
  %v1939 = vadd.f32 %v1638, %v1931
  %v1940 = vadd.f32 %v1639, %v1936
  %s1941 = scalar_lea.vmem %s35, 1
  %v1942 = vld [vmem:[%s1941] sm:$0x1]
  %v1944 = vlaneseq
  %v1945 = vshrl.u32 %v1944, 7
  %v1946 = vsub.s32 0, %v1945
  %v1947 = vrot.slane %v1942, %v1946
  %v1949 = vadd.f32 %v1939, %v1947
  %v1950 = vadd.f32 %v1940, %v1947
  %v1951 = vld [vmem:[%s39] sm:$0x3]
  %v1953 = vsel %vm666, %v1951, 0
  %v1956 = vsel %vm696, %v1950, 0
  %1958 = vmatprep.subr.mxu0 0.0
  %1959 = vmatpush1.msra.mxu0 %v1949
  %1960 = vmatprep.subr.mxu0 0.0
  %1961 = vmatpush1.msra.mxu0 %v1956
  %1962 = vmatprep.subr.mxu0 0.0
  %1963 = vmatpush1.msra.mxu0 0.0
  %1964 = vmatprep.subr.mxu0 0.0
  %1965 = vmatpush1.msra.mxu0 0.0
  %1966 = vmatprep.subr.mxu0 0.0
  %1967 = vmatpush1.msra.mxu0 0.0
  %1968 = vmatprep.subr.mxu0 0.0
  %1969 = vmatpush1.msra.mxu0 0.0
  %1970 = vmatprep.subr.mxu0 0.0
  %1971 = vmatpush1.msra.mxu0 0.0
  %1972 = vmatprep.subr.mxu0 0.0
  %1973 = vmatpush1.msra.mxu0 0.0
  %1974 = vmatprep.subr.mxu0 0.0
  %1975 = vmatpush1.msra.mxu0 0.0
  %1976 = vmatprep.subr.mxu0 0.0
  %1977 = vmatpush1.msra.mxu0 0.0
  %1978 = vmatprep.subr.mxu0 0.0
  %1979 = vmatpush1.msra.mxu0 0.0
  %1980 = vmatprep.subr.mxu0 0.0
  %1981 = vmatpush1.msra.mxu0 0.0
  %1982 = vmatprep.subr.mxu0 0.0
  %1983 = vmatpush1.msra.mxu0 0.0
  %1984 = vmatprep.subr.mxu0 0.0
  %1985 = vmatpush1.msra.mxu0 0.0
  %1986 = vmatprep.subr.mxu0 0.0
  %1987 = vmatpush1.msra.mxu0 0.0
  %1988 = vmatprep.subr.mxu0 0.0
  %1989 = vmatpush1.msra.mxu0 0.0
  %1990 = vmatprep.subr.mxu0 0.0
  %1991 = vmatpush1.msra.mxu0 0.0
  %1992 = vmatprep.subr.mxu0 0.0
  %1993 = vmatpush1.msra.mxu0 0.0
  %1994 = vmatprep.subr.mxu0 0.0
  %1995 = vmatpush1.msra.mxu0 0.0
  %1996 = vmatprep.subr.mxu0 0.0
  %1997 = vmatpush1.msra.mxu0 0.0
  %1998 = vmatprep.subr.mxu0 0.0
  %1999 = vmatpush1.msra.mxu0 0.0
  %2000 = vmatprep.subr.mxu0 0.0
  %2001 = vmatpush1.msra.mxu0 0.0
  %2002 = vmatprep.subr.mxu0 0.0
  %2003 = vmatpush1.msra.mxu0 0.0
  %2004 = vmatprep.subr.mxu0 0.0
  %2005 = vmatpush1.msra.mxu0 0.0
  %2006 = vmatprep.subr.mxu0 0.0
  %2007 = vmatpush1.msra.mxu0 0.0
  %2008 = vmatprep.subr.mxu0 0.0
  %2009 = vmatpush1.msra.mxu0 0.0
  %2010 = vmatprep.subr.mxu0 0.0
  %2011 = vmatpush1.msra.mxu0 0.0
  %2012 = vmatprep.subr.mxu0 0.0
  %2013 = vmatpush1.msra.mxu0 0.0
  %2014 = vmatprep.subr.mxu0 0.0
  %2015 = vmatpush1.msra.mxu0 0.0
  %2016 = vmatprep.subr.mxu0 0.0
  %2017 = vmatpush1.msra.mxu0 0.0
  %2018 = vmatprep.subr.mxu0 0.0
  %2019 = vmatpush1.msra.mxu0 0.0
  %2020 = vmatprep.subr.mxu0 0.0
  %2021 = vmatpush1.msra.mxu0 0.0
  %2022 = vmatprep.mubr.f32.mxu0 0.0
  %2023 = vmatmul.mubr.f32.gmra.mrb[0].mxu0 %v1953
  %v2024 = vpop.f32.mrb[0].mxu0
  %v2025 = vadd.f32 0.0, %v2024
  %v2026 = vpop.f32.mrb[0].mxu0
  %2027 = vdwg.mxu0
  %v2028 = vld [vmem:[%s41] sm:$0xff]
  %v2029 = vld [vmem:[%s41 + $0x8] sm:$0xff]
  %v2030 = vld [vmem:[%s41 + $0x10] sm:$0xff]
  %v2031 = vld [vmem:[%s41 + $0x18] sm:$0xff]
  %v2032 = vld [vmem:[%s41 + $0x20] sm:$0xff]
  %v2033 = vld [vmem:[%s41 + $0x28] sm:$0xff]
  %v2034 = vld [vmem:[%s41 + $0x30] sm:$0xff]
  %v2035 = vld [vmem:[%s41 + $0x38] sm:$0xff]
  %v2037 = vsel %vm194, %v2025, 0
  %2039 = vmatprep.subr.mxu0 0.0
  %2040 = vmatpush1.msra.mxu0 %v2028
  %2041 = vmatprep.subr.mxu0 0.0
  %2042 = vmatpush1.msra.mxu0 %v2029
  %2043 = vmatprep.subr.mxu0 0.0
  %2044 = vmatpush1.msra.mxu0 %v2030
  %2045 = vmatprep.subr.mxu0 0.0
  %2046 = vmatpush1.msra.mxu0 %v2031
  %2047 = vmatprep.subr.mxu0 0.0
  %2048 = vmatpush1.msra.mxu0 %v2032
  %2049 = vmatprep.subr.mxu0 0.0
  %2050 = vmatpush1.msra.mxu0 %v2033
  %2051 = vmatprep.subr.mxu0 0.0
  %2052 = vmatpush1.msra.mxu0 %v2034
  %2053 = vmatprep.subr.mxu0 0.0
  %2054 = vmatpush1.msra.mxu0 %v2035
  %2055 = vmatprep.subr.mxu0 0.0
  %2056 = vmatpush1.msra.mxu0 0.0
  %2057 = vmatprep.subr.mxu0 0.0
  %2058 = vmatpush1.msra.mxu0 0.0
  %2059 = vmatprep.subr.mxu0 0.0
  %2060 = vmatpush1.msra.mxu0 0.0
  %2061 = vmatprep.subr.mxu0 0.0
  %2062 = vmatpush1.msra.mxu0 0.0
  %2063 = vmatprep.subr.mxu0 0.0
  %2064 = vmatpush1.msra.mxu0 0.0
  %2065 = vmatprep.subr.mxu0 0.0
  %2066 = vmatpush1.msra.mxu0 0.0
  %2067 = vmatprep.subr.mxu0 0.0
  %2068 = vmatpush1.msra.mxu0 0.0
  %2069 = vmatprep.subr.mxu0 0.0
  %2070 = vmatpush1.msra.mxu0 0.0
  %2071 = vmatprep.subr.mxu0 0.0
  %2072 = vmatpush1.msra.mxu0 0.0
  %2073 = vmatprep.subr.mxu0 0.0
  %2074 = vmatpush1.msra.mxu0 0.0
  %2075 = vmatprep.subr.mxu0 0.0
  %2076 = vmatpush1.msra.mxu0 0.0
  %2077 = vmatprep.subr.mxu0 0.0
  %2078 = vmatpush1.msra.mxu0 0.0
  %2079 = vmatprep.subr.mxu0 0.0
  %2080 = vmatpush1.msra.mxu0 0.0
  %2081 = vmatprep.subr.mxu0 0.0
  %2082 = vmatpush1.msra.mxu0 0.0
  %2083 = vmatprep.subr.mxu0 0.0
  %2084 = vmatpush1.msra.mxu0 0.0
  %2085 = vmatprep.subr.mxu0 0.0
  %2086 = vmatpush1.msra.mxu0 0.0
  %2087 = vmatprep.subr.mxu0 0.0
  %2088 = vmatpush1.msra.mxu0 0.0
  %2089 = vmatprep.subr.mxu0 0.0
  %2090 = vmatpush1.msra.mxu0 0.0
  %2091 = vmatprep.subr.mxu0 0.0
  %2092 = vmatpush1.msra.mxu0 0.0
  %2093 = vmatprep.subr.mxu0 0.0
  %2094 = vmatpush1.msra.mxu0 0.0
  %2095 = vmatprep.subr.mxu0 0.0
  %2096 = vmatpush1.msra.mxu0 0.0
  %2097 = vmatprep.subr.mxu0 0.0
  %2098 = vmatpush1.msra.mxu0 0.0
  %2099 = vmatprep.subr.mxu0 0.0
  %2100 = vmatpush1.msra.mxu0 0.0
  %2101 = vmatprep.subr.mxu0 0.0
  %2102 = vmatpush1.msra.mxu0 0.0
  %2103 = vmatprep.mubr.f32.mxu0 0.0
  %2104 = vmatmul.mubr.f32.gmra.mrb[0].mxu0 %v2037
  %v2105 = vpop.f32.mrb[0].mxu0
  %v2106 = vadd.f32 0.0, %v2105
  %v2107 = vpop.f32.mrb[0].mxu0
  %2108 = vdwg.mxu0
  %v2109 = vld [vmem:[%s43] sm:$0xff]
  %v2110 = vld [vmem:[%s43 + $0x8] sm:$0xff]
  %v2111 = vld [vmem:[%s69] sm:$0xff]
  %v2112 = vld [vmem:[%s69 + $0x8] sm:$0xff]
  %v2113 = vld [vmem:[%s45] sm:$0x1]
  %v2114 = vld [vmem:[%s47] sm:$0x1]
  %v2115 = vsel %vm194, %v2109, 0.0
  %2116 = vadd.xlane.f32.xlu0 %v2115
  %v2117 = vpop.xlane.xlu0 %2116
  %v2118 = vsel %vm194, %v2110, 0.0
  %2119 = vadd.xlane.f32.xlu0 %v2118
  %v2120 = vpop.xlane.xlu0 %2119
  %v2121 = vmul.f32 %v2117, %v363
  %v2122 = vmul.f32 %v2120, %v363
  %v2123 = vsub.f32 %v2109, %v2121
  %v2124 = vsub.f32 %v2110, %v2122
  %v2125 = vmul.f32 %v2123, %v2123
  %v2126 = vmul.f32 %v2124, %v2124
  %v2127 = vsel %vm194, %v2125, 0.0
  %2128 = vadd.xlane.f32.xlu0 %v2127
  %v2129 = vpop.xlane.xlu0 %2128
  %v2130 = vsel %vm194, %v2126, 0.0
  %2131 = vadd.xlane.f32.xlu0 %v2130
  %v2132 = vpop.xlane.xlu0 %2131
  %v2133 = vmul.f32 %v2129, %v363
  %v2134 = vmul.f32 %v2132, %v363
  %v2135 = vadd.f32 %v2133, 1e-05
  %v2136 = vadd.f32 %v2134, 1e-05
  %v2137 = vrsqrt.pop %v2135
  %v2138 = vrsqrt.pop %v2136
  %v2139 = vmul.f32 %v2123, %v2137
  %v2140 = vmul.f32 %v2124, %v2138
  %v2142 = vlaneseq
  %v2143 = vshrl.u32 %v2142, 7
  %v2144 = vsub.s32 0, %v2143
  %v2145 = vrot.slane %v2113, %v2144
  %v2147 = vmul.f32 %v2139, %v2145
  %v2148 = vmul.f32 %v2140, %v2145
  %v2150 = vlaneseq
  %v2151 = vshrl.u32 %v2150, 7
  %v2152 = vsub.s32 0, %v2151
  %v2153 = vrot.slane %v2114, %v2152
  %v2155 = vadd.f32 %v2147, %v2153
  %v2156 = vadd.f32 %v2148, %v2153
  %v2157 = vld [vmem:[%s49] sm:$0xff]
  %v2158 = vld [vmem:[%s49 + $0x8] sm:$0xff]
  %v2159 = vld [vmem:[%s49 + $0x10] sm:$0xff]
  %v2160 = vld [vmem:[%s49 + $0x18] sm:$0xff]
  %v2161 = vld [vmem:[%s49 + $0x20] sm:$0xff]
  %v2162 = vld [vmem:[%s49 + $0x28] sm:$0xff]
  %v2163 = vld [vmem:[%s49 + $0x30] sm:$0xff]
  %v2164 = vld [vmem:[%s49 + $0x38] sm:$0xff]
  %v2165 = vld [vmem:[%s49 + $0x40] sm:$0xff]
  %v2166 = vld [vmem:[%s49 + $0x48] sm:$0xff]
  %v2167 = vld [vmem:[%s49 + $0x50] sm:$0xff]
  %v2168 = vld [vmem:[%s49 + $0x58] sm:$0xff]
  %v2169 = vld [vmem:[%s49 + $0x60] sm:$0xff]
  %v2170 = vld [vmem:[%s49 + $0x68] sm:$0xff]
  %v2171 = vld [vmem:[%s49 + $0x70] sm:$0xff]
  %v2172 = vld [vmem:[%s49 + $0x78] sm:$0xff]
  %v2173 = vld [vmem:[%s51] sm:$0x3]
  %v2175 = vlaneseq
  %v2176 = vshrl.u32 %v2175, 7
  %v2177 = vsub.s32 0, %v2176
  %v2178 = vrot.slane %v2173, %v2177
  %v2179 = vlaneseq
  %v2180 = vshrl.u32 %v2179, 7
  %v2181 = vsub.s32 1, %v2180
  %v2182 = vrot.slane %v2173, %v2181
  %v2186 = vsel %vm194, %v2155, 0
  %v2189 = vsel %vm194, %v2156, 0
  %2191 = vmatprep.subr.mxu0 %v2158
  %2192 = vmatpush1.msra.mxu0 %v2157
  %2193 = vmatprep.subr.mxu0 %v2160
  %2194 = vmatpush1.msra.mxu0 %v2159
  %2195 = vmatprep.subr.mxu0 %v2162
  %2196 = vmatpush1.msra.mxu0 %v2161
  %2197 = vmatprep.subr.mxu0 %v2164
  %2198 = vmatpush1.msra.mxu0 %v2163
  %2199 = vmatprep.subr.mxu0 %v2166
  %2200 = vmatpush1.msra.mxu0 %v2165
  %2201 = vmatprep.subr.mxu0 %v2168
  %2202 = vmatpush1.msra.mxu0 %v2167
  %2203 = vmatprep.subr.mxu0 %v2170
  %2204 = vmatpush1.msra.mxu0 %v2169
  %2205 = vmatprep.subr.mxu0 %v2172
  %2206 = vmatpush1.msra.mxu0 %v2171
  %2207 = vmatprep.subr.mxu0 0.0
  %2208 = vmatpush1.msra.mxu0 0.0
  %2209 = vmatprep.subr.mxu0 0.0
  %2210 = vmatpush1.msra.mxu0 0.0
  %2211 = vmatprep.subr.mxu0 0.0
  %2212 = vmatpush1.msra.mxu0 0.0
  %2213 = vmatprep.subr.mxu0 0.0
  %2214 = vmatpush1.msra.mxu0 0.0
  %2215 = vmatprep.subr.mxu0 0.0
  %2216 = vmatpush1.msra.mxu0 0.0
  %2217 = vmatprep.subr.mxu0 0.0
  %2218 = vmatpush1.msra.mxu0 0.0
  %2219 = vmatprep.subr.mxu0 0.0
  %2220 = vmatpush1.msra.mxu0 0.0
  %2221 = vmatprep.subr.mxu0 0.0
  %2222 = vmatpush1.msra.mxu0 0.0
  %2223 = vmatprep.subr.mxu0 0.0
  %2224 = vmatpush1.msra.mxu0 0.0
  %2225 = vmatprep.subr.mxu0 0.0
  %2226 = vmatpush1.msra.mxu0 0.0
  %2227 = vmatprep.subr.mxu0 0.0
  %2228 = vmatpush1.msra.mxu0 0.0
  %2229 = vmatprep.subr.mxu0 0.0
  %2230 = vmatpush1.msra.mxu0 0.0
  %2231 = vmatprep.subr.mxu0 0.0
  %2232 = vmatpush1.msra.mxu0 0.0
  %2233 = vmatprep.subr.mxu0 0.0
  %2234 = vmatpush1.msra.mxu0 0.0
  %2235 = vmatprep.subr.mxu0 0.0
  %2236 = vmatpush1.msra.mxu0 0.0
  %2237 = vmatprep.subr.mxu0 0.0
  %2238 = vmatpush1.msra.mxu0 0.0
  %2239 = vmatprep.subr.mxu0 0.0
  %2240 = vmatpush1.msra.mxu0 0.0
  %2241 = vmatprep.subr.mxu0 0.0
  %2242 = vmatpush1.msra.mxu0 0.0
  %2243 = vmatprep.subr.mxu0 0.0
  %2244 = vmatpush1.msra.mxu0 0.0
  %2245 = vmatprep.subr.mxu0 0.0
  %2246 = vmatpush1.msra.mxu0 0.0
  %2247 = vmatprep.subr.mxu0 0.0
  %2248 = vmatpush1.msra.mxu0 0.0
  %2249 = vmatprep.subr.mxu0 0.0
  %2250 = vmatpush1.msra.mxu0 0.0
  %2251 = vmatprep.subr.mxu0 0.0
  %2252 = vmatpush1.msra.mxu0 0.0
  %2253 = vmatprep.subr.mxu0 0.0
  %2254 = vmatpush1.msra.mxu0 0.0
  %2255 = vmatprep.mubr.f32.mxu0 0.0
  %2256 = vmatmul.mubr.f32.gmra.mrb[0].mxu0 %v2186
  %v2257 = vpop.f32.mrb[0].mxu0
  %v2258 = vadd.f32 %v2178, %v2257
  %v2259 = vpop.f32.mrb[0].mxu0
  %v2260 = vadd.f32 %v2182, %v2259
  %2261 = vmatprep.mubr.f32.mxu0 0.0
  %2262 = vmatmul.mubr.f32.gmra.mrb[0].mxu0 %v2189
  %v2263 = vpop.f32.mrb[0].mxu0
  %v2264 = vadd.f32 %v2178, %v2263
  %v2265 = vpop.f32.mrb[0].mxu0
  %v2266 = vadd.f32 %v2182, %v2265
  %2267 = vdwg.mxu0
  %2268 = vst [vmem:[#allocation3] sm:$0xff] %v2258
  %2269 = vst.msk [vmem:[#allocation3 + $0x8] sm:$0xff] %vm194, %v2260
  %2270 = vst [vmem:[#allocation3 + $0x10] sm:$0xff] %v2264
  %2271 = vst.msk [vmem:[#allocation3 + $0x18] sm:$0xff] %vm194, %v2266
  %v2272 = vld [vmem:[%s53] sm:$0xff]
  %v2273 = vld [vmem:[%s53 + $0x8] sm:$0xff]
  %v2274 = vld [vmem:[%s53 + $0x10] sm:$0xff]
  %v2275 = vld [vmem:[%s53 + $0x18] sm:$0xff]
  %v2276 = vld [vmem:[%s53 + $0x20] sm:$0xff]
  %v2277 = vld [vmem:[%s53 + $0x28] sm:$0xff]
  %v2278 = vld [vmem:[%s53 + $0x30] sm:$0xff]
  %v2279 = vld [vmem:[%s53 + $0x38] sm:$0xff]
  %v2280 = vld [vmem:[#allocation3] sm:$0xff]
  %v2281 = vld [vmem:[#allocation3 + $0x10] sm:$0xff]
  %v2282 = vld [vmem:[#allocation3 + $0x8] sm:$0xff]
  %v2283 = vld [vmem:[#allocation3 + $0x18] sm:$0xff]
  %v2284 = vmul.f32 %v2280, 0.17677669
  %v2285 = vmul.f32 %v2281, 0.17677669
  %2288 = vrot.lane.b32.xlu0 %v2280, 64
  %v2289 = vpop.permute.xlu0 %2288
  %2290 = vrot.lane.b32.xlu0 %v2281, 64
  %v2291 = vpop.permute.xlu0 %2290
  %vm2292 = vcmask 261120
  %v2294 = vsel %vm2292, %v2284, 0
  %v2297 = vsel %vm2292, %v2285, 0
  %v2299 = vsel %vm2292, %v2289, 0
  %v2301 = vsel %vm2292, %v2291, 0
  %2303 = vmatprep.subr.mxu0 0.0
  %2304 = vmatpush1.xpose.msra.mxu0 %v2299
  %2305 = vmatprep.subr.mxu0 0.0
  %2306 = vmatpush1.xpose.msra.mxu0 %v2301
  %2307 = vmatprep.subr.mxu0 0.0
  %2308 = vmatpush1.xpose.msra.mxu0 0.0
  %2309 = vmatprep.subr.mxu0 0.0
  %2310 = vmatpush1.xpose.msra.mxu0 0.0
  %2311 = vmatprep.subr.mxu0 0.0
  %2312 = vmatpush1.xpose.msra.mxu0 0.0
  %2313 = vmatprep.subr.mxu0 0.0
  %2314 = vmatpush1.xpose.msra.mxu0 0.0
  %2315 = vmatprep.subr.mxu0 0.0
  %2316 = vmatpush1.xpose.msra.mxu0 0.0
  %2317 = vmatprep.subr.mxu0 0.0
  %2318 = vmatpush1.xpose.msra.mxu0 0.0
  %2319 = vmatprep.subr.mxu0 0.0
  %2320 = vmatpush1.xpose.msra.mxu0 0.0
  %2321 = vmatprep.subr.mxu0 0.0
  %2322 = vmatpush1.xpose.msra.mxu0 0.0
  %2323 = vmatprep.subr.mxu0 0.0
  %2324 = vmatpush1.xpose.msra.mxu0 0.0
  %2325 = vmatprep.subr.mxu0 0.0
  %2326 = vmatpush1.xpose.msra.mxu0 0.0
  %2327 = vmatprep.subr.mxu0 0.0
  %2328 = vmatpush1.xpose.msra.mxu0 0.0
  %2329 = vmatprep.subr.mxu0 0.0
  %2330 = vmatpush1.xpose.msra.mxu0 0.0
  %2331 = vmatprep.subr.mxu0 0.0
  %2332 = vmatpush1.xpose.msra.mxu0 0.0
  %2333 = vmatprep.subr.mxu0 0.0
  %2334 = vmatpush1.xpose.msra.mxu0 0.0
  %2335 = vmatprep.subr.mxu0 0.0
  %2336 = vmatpush1.xpose.msra.mxu0 0.0
  %2337 = vmatprep.subr.mxu0 0.0
  %2338 = vmatpush1.xpose.msra.mxu0 0.0
  %2339 = vmatprep.subr.mxu0 0.0
  %2340 = vmatpush1.xpose.msra.mxu0 0.0
  %2341 = vmatprep.subr.mxu0 0.0
  %2342 = vmatpush1.xpose.msra.mxu0 0.0
  %2343 = vmatprep.subr.mxu0 0.0
  %2344 = vmatpush1.xpose.msra.mxu0 0.0
  %2345 = vmatprep.subr.mxu0 0.0
  %2346 = vmatpush1.xpose.msra.mxu0 0.0
  %2347 = vmatprep.subr.mxu0 0.0
  %2348 = vmatpush1.xpose.msra.mxu0 0.0
  %2349 = vmatprep.subr.mxu0 0.0
  %2350 = vmatpush1.xpose.msra.mxu0 0.0
  %2351 = vmatprep.subr.mxu0 0.0
  %2352 = vmatpush1.xpose.msra.mxu0 0.0
  %2353 = vmatprep.subr.mxu0 0.0
  %2354 = vmatpush1.xpose.msra.mxu0 0.0
  %2355 = vmatprep.subr.mxu0 0.0
  %2356 = vmatpush1.xpose.msra.mxu0 0.0
  %2357 = vmatprep.subr.mxu0 0.0
  %2358 = vmatpush1.xpose.msra.mxu0 0.0
  %2359 = vmatprep.subr.mxu0 0.0
  %2360 = vmatpush1.xpose.msra.mxu0 0.0
  %2361 = vmatprep.subr.mxu0 0.0
  %2362 = vmatpush1.xpose.msra.mxu0 0.0
  %2363 = vmatprep.subr.mxu0 0.0
  %2364 = vmatpush1.xpose.msra.mxu0 0.0
  %2365 = vmatprep.subr.mxu0 0.0
  %2366 = vmatpush1.xpose.msra.mxu0 0.0
  %2367 = vmatprep.mubr.f32.mxu0 0.0
  %2368 = vmatmul.mubr.f32.gmra.mrb[0].mxu0 %v2294
  %v2369 = vpop.f32.mrb[0].mxu0
  %v2370 = vadd.f32 %v2111, %v2369
  %v2371 = vpop.f32.mrb[0].mxu0
  %2372 = vmatprep.mubr.f32.mxu0 0.0
  %2373 = vmatmul.mubr.f32.gmra.mrb[0].mxu0 %v2297
  %v2374 = vpop.f32.mrb[0].mxu0
  %v2375 = vadd.f32 %v2112, %v2374
  %v2376 = vpop.f32.mrb[0].mxu0
  %2377 = vdwg.mxu0
  %vm2378 = vcmask 130048
  %v2379 = vsel %vm2378, %v2370, -inf
  %2380 = vmax.xlane.f32.xlu0 %v2379
  %v2381 = vpop.xlane.xlu0 %2380
  %v2382 = vsel %vm2378, %v2375, -inf
  %2383 = vmax.xlane.f32.xlu0 %v2382
  %v2384 = vpop.xlane.xlu0 %2383
  %v2385 = vsub.f32 %v2370, %v2381
  %v2386 = vsub.f32 %v2375, %v2384
  %v2387 = vmul.f32 %v2385, 1.442695
  %v2388 = vpow.pop %v2387
  %v2389 = vmul.f32 %v2386, 1.442695
  %v2390 = vpow.pop %v2389
  %v2391 = vsel %vm2378, %v2388, 0.0
  %2392 = vadd.xlane.f32.xlu0 %v2391
  %v2393 = vpop.xlane.xlu0 %2392
  %v2394 = vsel %vm2378, %v2390, 0.0
  %2395 = vadd.xlane.f32.xlu0 %v2394
  %v2396 = vpop.xlane.xlu0 %2395
  %v2397 = vrcp.pop %v2393
  %v2398 = vrcp.pop %v2396
  %v2399 = vmul.f32 %v2388, %v2397
  %v2400 = vmul.f32 %v2390, %v2398
  %v2402 = vsel %vm2378, %v2399, 0
  %v2405 = vsel %vm2378, %v2400, 0
  %2407 = vmatprep.subr.mxu0 0.0
  %2408 = vmatpush1.msra.mxu0 %v2282
  %2409 = vmatprep.subr.mxu0 0.0
  %2410 = vmatpush1.msra.mxu0 %v2283
  %2411 = vmatprep.subr.mxu0 0.0
  %2412 = vmatpush1.msra.mxu0 0.0
  %2413 = vmatprep.subr.mxu0 0.0
  %2414 = vmatpush1.msra.mxu0 0.0
  %2415 = vmatprep.subr.mxu0 0.0
  %2416 = vmatpush1.msra.mxu0 0.0
  %2417 = vmatprep.subr.mxu0 0.0
  %2418 = vmatpush1.msra.mxu0 0.0
  %2419 = vmatprep.subr.mxu0 0.0
  %2420 = vmatpush1.msra.mxu0 0.0
  %2421 = vmatprep.subr.mxu0 0.0
  %2422 = vmatpush1.msra.mxu0 0.0
  %2423 = vmatprep.subr.mxu0 0.0
  %2424 = vmatpush1.msra.mxu0 0.0
  %2425 = vmatprep.subr.mxu0 0.0
  %2426 = vmatpush1.msra.mxu0 0.0
  %2427 = vmatprep.subr.mxu0 0.0
  %2428 = vmatpush1.msra.mxu0 0.0
  %2429 = vmatprep.subr.mxu0 0.0
  %2430 = vmatpush1.msra.mxu0 0.0
  %2431 = vmatprep.subr.mxu0 0.0
  %2432 = vmatpush1.msra.mxu0 0.0
  %2433 = vmatprep.subr.mxu0 0.0
  %2434 = vmatpush1.msra.mxu0 0.0
  %2435 = vmatprep.subr.mxu0 0.0
  %2436 = vmatpush1.msra.mxu0 0.0
  %2437 = vmatprep.subr.mxu0 0.0
  %2438 = vmatpush1.msra.mxu0 0.0
  %2439 = vmatprep.subr.mxu0 0.0
  %2440 = vmatpush1.msra.mxu0 0.0
  %2441 = vmatprep.subr.mxu0 0.0
  %2442 = vmatpush1.msra.mxu0 0.0
  %2443 = vmatprep.subr.mxu0 0.0
  %2444 = vmatpush1.msra.mxu0 0.0
  %2445 = vmatprep.subr.mxu0 0.0
  %2446 = vmatpush1.msra.mxu0 0.0
  %2447 = vmatprep.subr.mxu0 0.0
  %2448 = vmatpush1.msra.mxu0 0.0
  %2449 = vmatprep.subr.mxu0 0.0
  %2450 = vmatpush1.msra.mxu0 0.0
  %2451 = vmatprep.subr.mxu0 0.0
  %2452 = vmatpush1.msra.mxu0 0.0
  %2453 = vmatprep.subr.mxu0 0.0
  %2454 = vmatpush1.msra.mxu0 0.0
  %2455 = vmatprep.subr.mxu0 0.0
  %2456 = vmatpush1.msra.mxu0 0.0
  %2457 = vmatprep.subr.mxu0 0.0
  %2458 = vmatpush1.msra.mxu0 0.0
  %2459 = vmatprep.subr.mxu0 0.0
  %2460 = vmatpush1.msra.mxu0 0.0
  %2461 = vmatprep.subr.mxu0 0.0
  %2462 = vmatpush1.msra.mxu0 0.0
  %2463 = vmatprep.subr.mxu0 0.0
  %2464 = vmatpush1.msra.mxu0 0.0
  %2465 = vmatprep.subr.mxu0 0.0
  %2466 = vmatpush1.msra.mxu0 0.0
  %2467 = vmatprep.subr.mxu0 0.0
  %2468 = vmatpush1.msra.mxu0 0.0
  %2469 = vmatprep.subr.mxu0 0.0
  %2470 = vmatpush1.msra.mxu0 0.0
  %2471 = vmatprep.mubr.f32.mxu0 0.0
  %2472 = vmatmul.mubr.f32.gmra.mrb[0].mxu0 %v2402
  %v2473 = vpop.f32.mrb[0].mxu0
  %v2474 = vadd.f32 0.0, %v2473
  %v2475 = vpop.f32.mrb[0].mxu0
  %2476 = vmatprep.mubr.f32.mxu0 0.0
  %2477 = vmatmul.mubr.f32.gmra.mrb[0].mxu0 %v2405
  %v2478 = vpop.f32.mrb[0].mxu0
  %v2479 = vadd.f32 0.0, %v2478
  %v2480 = vpop.f32.mrb[0].mxu0
  %2481 = vdwg.mxu0
  %2482 = vrot.lane.b32.xlu0 %v2284, 96
  %v2483 = vpop.permute.xlu0 %2482
  %2484 = vrot.lane.b32.xlu0 %v2285, 96
  %v2485 = vpop.permute.xlu0 %2484
  %2486 = vrot.lane.b32.xlu0 %v2280, 32
  %v2487 = vpop.permute.xlu0 %2486
  %2488 = vrot.lane.b32.xlu0 %v2281, 32
  %v2489 = vpop.permute.xlu0 %2488
  %v2490 = vsel %vm2292, %v2483, 0
  %v2492 = vsel %vm2292, %v2485, 0
  %v2494 = vsel %vm2292, %v2487, 0
  %v2496 = vsel %vm2292, %v2489, 0
  %2498 = vmatprep.subr.mxu0 0.0
  %2499 = vmatpush1.xpose.msra.mxu0 %v2494
  %2500 = vmatprep.subr.mxu0 0.0
  %2501 = vmatpush1.xpose.msra.mxu0 %v2496
  %2502 = vmatprep.subr.mxu0 0.0
  %2503 = vmatpush1.xpose.msra.mxu0 0.0
  %2504 = vmatprep.subr.mxu0 0.0
  %2505 = vmatpush1.xpose.msra.mxu0 0.0
  %2506 = vmatprep.subr.mxu0 0.0
  %2507 = vmatpush1.xpose.msra.mxu0 0.0
  %2508 = vmatprep.subr.mxu0 0.0
  %2509 = vmatpush1.xpose.msra.mxu0 0.0
  %2510 = vmatprep.subr.mxu0 0.0
  %2511 = vmatpush1.xpose.msra.mxu0 0.0
  %2512 = vmatprep.subr.mxu0 0.0
  %2513 = vmatpush1.xpose.msra.mxu0 0.0
  %2514 = vmatprep.subr.mxu0 0.0
  %2515 = vmatpush1.xpose.msra.mxu0 0.0
  %2516 = vmatprep.subr.mxu0 0.0
  %2517 = vmatpush1.xpose.msra.mxu0 0.0
  %2518 = vmatprep.subr.mxu0 0.0
  %2519 = vmatpush1.xpose.msra.mxu0 0.0
  %2520 = vmatprep.subr.mxu0 0.0
  %2521 = vmatpush1.xpose.msra.mxu0 0.0
  %2522 = vmatprep.subr.mxu0 0.0
  %2523 = vmatpush1.xpose.msra.mxu0 0.0
  %2524 = vmatprep.subr.mxu0 0.0
  %2525 = vmatpush1.xpose.msra.mxu0 0.0
  %2526 = vmatprep.subr.mxu0 0.0
  %2527 = vmatpush1.xpose.msra.mxu0 0.0
  %2528 = vmatprep.subr.mxu0 0.0
  %2529 = vmatpush1.xpose.msra.mxu0 0.0
  %2530 = vmatprep.subr.mxu0 0.0
  %2531 = vmatpush1.xpose.msra.mxu0 0.0
  %2532 = vmatprep.subr.mxu0 0.0
  %2533 = vmatpush1.xpose.msra.mxu0 0.0
  %2534 = vmatprep.subr.mxu0 0.0
  %2535 = vmatpush1.xpose.msra.mxu0 0.0
  %2536 = vmatprep.subr.mxu0 0.0
  %2537 = vmatpush1.xpose.msra.mxu0 0.0
  %2538 = vmatprep.subr.mxu0 0.0
  %2539 = vmatpush1.xpose.msra.mxu0 0.0
  %2540 = vmatprep.subr.mxu0 0.0
  %2541 = vmatpush1.xpose.msra.mxu0 0.0
  %2542 = vmatprep.subr.mxu0 0.0
  %2543 = vmatpush1.xpose.msra.mxu0 0.0
  %2544 = vmatprep.subr.mxu0 0.0
  %2545 = vmatpush1.xpose.msra.mxu0 0.0
  %2546 = vmatprep.subr.mxu0 0.0
  %2547 = vmatpush1.xpose.msra.mxu0 0.0
  %2548 = vmatprep.subr.mxu0 0.0
  %2549 = vmatpush1.xpose.msra.mxu0 0.0
  %2550 = vmatprep.subr.mxu0 0.0
  %2551 = vmatpush1.xpose.msra.mxu0 0.0
  %2552 = vmatprep.subr.mxu0 0.0
  %2553 = vmatpush1.xpose.msra.mxu0 0.0
  %2554 = vmatprep.subr.mxu0 0.0
  %2555 = vmatpush1.xpose.msra.mxu0 0.0
  %2556 = vmatprep.subr.mxu0 0.0
  %2557 = vmatpush1.xpose.msra.mxu0 0.0
  %2558 = vmatprep.subr.mxu0 0.0
  %2559 = vmatpush1.xpose.msra.mxu0 0.0
  %2560 = vmatprep.subr.mxu0 0.0
  %2561 = vmatpush1.xpose.msra.mxu0 0.0
  %2562 = vmatprep.mubr.f32.mxu0 0.0
  %2563 = vmatmul.mubr.f32.gmra.mrb[0].mxu0 %v2490
  %v2564 = vpop.f32.mrb[0].mxu0
  %v2565 = vadd.f32 %v2111, %v2564
  %v2566 = vpop.f32.mrb[0].mxu0
  %2567 = vmatprep.mubr.f32.mxu0 0.0
  %2568 = vmatmul.mubr.f32.gmra.mrb[0].mxu0 %v2492
  %v2569 = vpop.f32.mrb[0].mxu0
  %v2570 = vadd.f32 %v2112, %v2569
  %v2571 = vpop.f32.mrb[0].mxu0
  %2572 = vdwg.mxu0
  %v2573 = vsel %vm2378, %v2565, -inf
  %2574 = vmax.xlane.f32.xlu0 %v2573
  %v2575 = vpop.xlane.xlu0 %2574
  %v2576 = vsel %vm2378, %v2570, -inf
  %2577 = vmax.xlane.f32.xlu0 %v2576
  %v2578 = vpop.xlane.xlu0 %2577
  %v2579 = vsub.f32 %v2565, %v2575
  %v2580 = vsub.f32 %v2570, %v2578
  %v2581 = vmul.f32 %v2579, 1.442695
  %v2582 = vpow.pop %v2581
  %v2583 = vmul.f32 %v2580, 1.442695
  %v2584 = vpow.pop %v2583
  %v2585 = vsel %vm2378, %v2582, 0.0
  %2586 = vadd.xlane.f32.xlu0 %v2585
  %v2587 = vpop.xlane.xlu0 %2586
  %v2588 = vsel %vm2378, %v2584, 0.0
  %2589 = vadd.xlane.f32.xlu0 %v2588
  %v2590 = vpop.xlane.xlu0 %2589
  %v2591 = vrcp.pop %v2587
  %v2592 = vrcp.pop %v2590
  %v2593 = vmul.f32 %v2582, %v2591
  %v2594 = vmul.f32 %v2584, %v2592
  %2597 = vrot.lane.b32.xlu0 %v2282, 96
  %v2598 = vpop.permute.xlu0 %2597
  %2599 = vrot.lane.b32.xlu0 %v2283, 96
  %v2600 = vpop.permute.xlu0 %2599
  %v2604 = vsel %vm2378, %v2593, 0
  %v2607 = vsel %vm2378, %v2594, 0
  %2609 = vmatprep.subr.mxu0 0.0
  %2610 = vmatpush1.msra.mxu0 %v2598
  %2611 = vmatprep.subr.mxu0 0.0
  %2612 = vmatpush1.msra.mxu0 %v2600
  %2613 = vmatprep.subr.mxu0 0.0
  %2614 = vmatpush1.msra.mxu0 0.0
  %2615 = vmatprep.subr.mxu0 0.0
  %2616 = vmatpush1.msra.mxu0 0.0
  %2617 = vmatprep.subr.mxu0 0.0
  %2618 = vmatpush1.msra.mxu0 0.0
  %2619 = vmatprep.subr.mxu0 0.0
  %2620 = vmatpush1.msra.mxu0 0.0
  %2621 = vmatprep.subr.mxu0 0.0
  %2622 = vmatpush1.msra.mxu0 0.0
  %2623 = vmatprep.subr.mxu0 0.0
  %2624 = vmatpush1.msra.mxu0 0.0
  %2625 = vmatprep.subr.mxu0 0.0
  %2626 = vmatpush1.msra.mxu0 0.0
  %2627 = vmatprep.subr.mxu0 0.0
  %2628 = vmatpush1.msra.mxu0 0.0
  %2629 = vmatprep.subr.mxu0 0.0
  %2630 = vmatpush1.msra.mxu0 0.0
  %2631 = vmatprep.subr.mxu0 0.0
  %2632 = vmatpush1.msra.mxu0 0.0
  %2633 = vmatprep.subr.mxu0 0.0
  %2634 = vmatpush1.msra.mxu0 0.0
  %2635 = vmatprep.subr.mxu0 0.0
  %2636 = vmatpush1.msra.mxu0 0.0
  %2637 = vmatprep.subr.mxu0 0.0
  %2638 = vmatpush1.msra.mxu0 0.0
  %2639 = vmatprep.subr.mxu0 0.0
  %2640 = vmatpush1.msra.mxu0 0.0
  %2641 = vmatprep.subr.mxu0 0.0
  %2642 = vmatpush1.msra.mxu0 0.0
  %2643 = vmatprep.subr.mxu0 0.0
  %2644 = vmatpush1.msra.mxu0 0.0
  %2645 = vmatprep.subr.mxu0 0.0
  %2646 = vmatpush1.msra.mxu0 0.0
  %2647 = vmatprep.subr.mxu0 0.0
  %2648 = vmatpush1.msra.mxu0 0.0
  %2649 = vmatprep.subr.mxu0 0.0
  %2650 = vmatpush1.msra.mxu0 0.0
  %2651 = vmatprep.subr.mxu0 0.0
  %2652 = vmatpush1.msra.mxu0 0.0
  %2653 = vmatprep.subr.mxu0 0.0
  %2654 = vmatpush1.msra.mxu0 0.0
  %2655 = vmatprep.subr.mxu0 0.0
  %2656 = vmatpush1.msra.mxu0 0.0
  %2657 = vmatprep.subr.mxu0 0.0
  %2658 = vmatpush1.msra.mxu0 0.0
  %2659 = vmatprep.subr.mxu0 0.0
  %2660 = vmatpush1.msra.mxu0 0.0
  %2661 = vmatprep.subr.mxu0 0.0
  %2662 = vmatpush1.msra.mxu0 0.0
  %2663 = vmatprep.subr.mxu0 0.0
  %2664 = vmatpush1.msra.mxu0 0.0
  %2665 = vmatprep.subr.mxu0 0.0
  %2666 = vmatpush1.msra.mxu0 0.0
  %2667 = vmatprep.subr.mxu0 0.0
  %2668 = vmatpush1.msra.mxu0 0.0
  %2669 = vmatprep.subr.mxu0 0.0
  %2670 = vmatpush1.msra.mxu0 0.0
  %2671 = vmatprep.subr.mxu0 0.0
  %2672 = vmatpush1.msra.mxu0 0.0
  %2673 = vmatprep.mubr.f32.mxu0 0.0
  %2674 = vmatmul.mubr.f32.gmra.mrb[0].mxu0 %v2604
  %v2675 = vpop.f32.mrb[0].mxu0
  %v2676 = vadd.f32 0.0, %v2675
  %v2677 = vpop.f32.mrb[0].mxu0
  %2678 = vmatprep.mubr.f32.mxu0 0.0
  %2679 = vmatmul.mubr.f32.gmra.mrb[0].mxu0 %v2607
  %v2680 = vpop.f32.mrb[0].mxu0
  %v2681 = vadd.f32 0.0, %v2680
  %v2682 = vpop.f32.mrb[0].mxu0
  %2683 = vdwg.mxu0
  %v2685 = vsel %vm2292, %v2676, 0
  %v2688 = vsel %vm2292, %v2681, 0
  %2690 = vmatprep.subr.mxu0 0.0
  %2691 = vmatpush1.msra.mxu0 %v2276
  %2692 = vmatprep.subr.mxu0 0.0
  %2693 = vmatpush1.msra.mxu0 %v2277
  %2694 = vmatprep.subr.mxu0 0.0
  %2695 = vmatpush1.msra.mxu0 %v2278
  %2696 = vmatprep.subr.mxu0 0.0
  %2697 = vmatpush1.msra.mxu0 %v2279
  %2698 = vmatprep.subr.mxu0 0.0
  %2699 = vmatpush1.msra.mxu0 0.0
  %2700 = vmatprep.subr.mxu0 0.0
  %2701 = vmatpush1.msra.mxu0 0.0
  %2702 = vmatprep.subr.mxu0 0.0
  %2703 = vmatpush1.msra.mxu0 0.0
  %2704 = vmatprep.subr.mxu0 0.0
  %2705 = vmatpush1.msra.mxu0 0.0
  %2706 = vmatprep.subr.mxu0 0.0
  %2707 = vmatpush1.msra.mxu0 0.0
  %2708 = vmatprep.subr.mxu0 0.0
  %2709 = vmatpush1.msra.mxu0 0.0
  %2710 = vmatprep.subr.mxu0 0.0
  %2711 = vmatpush1.msra.mxu0 0.0
  %2712 = vmatprep.subr.mxu0 0.0
  %2713 = vmatpush1.msra.mxu0 0.0
  %2714 = vmatprep.subr.mxu0 0.0
  %2715 = vmatpush1.msra.mxu0 0.0
  %2716 = vmatprep.subr.mxu0 0.0
  %2717 = vmatpush1.msra.mxu0 0.0
  %2718 = vmatprep.subr.mxu0 0.0
  %2719 = vmatpush1.msra.mxu0 0.0
  %2720 = vmatprep.subr.mxu0 0.0
  %2721 = vmatpush1.msra.mxu0 0.0
  %2722 = vmatprep.subr.mxu0 0.0
  %2723 = vmatpush1.msra.mxu0 0.0
  %2724 = vmatprep.subr.mxu0 0.0
  %2725 = vmatpush1.msra.mxu0 0.0
  %2726 = vmatprep.subr.mxu0 0.0
  %2727 = vmatpush1.msra.mxu0 0.0
  %2728 = vmatprep.subr.mxu0 0.0
  %2729 = vmatpush1.msra.mxu0 0.0
  %2730 = vmatprep.subr.mxu0 0.0
  %2731 = vmatpush1.msra.mxu0 0.0
  %2732 = vmatprep.subr.mxu0 0.0
  %2733 = vmatpush1.msra.mxu0 0.0
  %2734 = vmatprep.subr.mxu0 0.0
  %2735 = vmatpush1.msra.mxu0 0.0
  %2736 = vmatprep.subr.mxu0 0.0
  %2737 = vmatpush1.msra.mxu0 0.0
  %2738 = vmatprep.subr.mxu0 0.0
  %2739 = vmatpush1.msra.mxu0 0.0
  %2740 = vmatprep.subr.mxu0 0.0
  %2741 = vmatpush1.msra.mxu0 0.0
  %2742 = vmatprep.subr.mxu0 0.0
  %2743 = vmatpush1.msra.mxu0 0.0
  %2744 = vmatprep.subr.mxu0 0.0
  %2745 = vmatpush1.msra.mxu0 0.0
  %2746 = vmatprep.subr.mxu0 0.0
  %2747 = vmatpush1.msra.mxu0 0.0
  %2748 = vmatprep.subr.mxu0 0.0
  %2749 = vmatpush1.msra.mxu0 0.0
  %2750 = vmatprep.subr.mxu0 0.0
  %2751 = vmatpush1.msra.mxu0 0.0
  %2752 = vmatprep.subr.mxu0 0.0
  %2753 = vmatpush1.msra.mxu0 0.0
  %2754 = vmatprep.mubr.f32.mxu0 0.0
  %2755 = vmatmul.mubr.f32.gmra.mrb[0].mxu0 %v2685
  %v2756 = vpop.f32.mrb[0].mxu0
  %v2757 = vadd.f32 0.0, %v2756
  %v2758 = vpop.f32.mrb[0].mxu0
  %2759 = vmatprep.mubr.f32.mxu0 0.0
  %2760 = vmatmul.mubr.f32.gmra.mrb[0].mxu0 %v2688
  %v2761 = vpop.f32.mrb[0].mxu0
  %v2762 = vadd.f32 0.0, %v2761
  %v2763 = vpop.f32.mrb[0].mxu0
  %2764 = vdwg.mxu0
  %v2766 = vsel %vm2292, %v2474, 0
  %v2769 = vsel %vm2292, %v2479, 0
  %2771 = vmatprep.subr.mxu0 0.0
  %2772 = vmatpush1.msra.mxu0 %v2272
  %2773 = vmatprep.subr.mxu0 0.0
  %2774 = vmatpush1.msra.mxu0 %v2273
  %2775 = vmatprep.subr.mxu0 0.0
  %2776 = vmatpush1.msra.mxu0 %v2274
  %2777 = vmatprep.subr.mxu0 0.0
  %2778 = vmatpush1.msra.mxu0 %v2275
  %2779 = vmatprep.subr.mxu0 0.0
  %2780 = vmatpush1.msra.mxu0 0.0
  %2781 = vmatprep.subr.mxu0 0.0
  %2782 = vmatpush1.msra.mxu0 0.0
  %2783 = vmatprep.subr.mxu0 0.0
  %2784 = vmatpush1.msra.mxu0 0.0
  %2785 = vmatprep.subr.mxu0 0.0
  %2786 = vmatpush1.msra.mxu0 0.0
  %2787 = vmatprep.subr.mxu0 0.0
  %2788 = vmatpush1.msra.mxu0 0.0
  %2789 = vmatprep.subr.mxu0 0.0
  %2790 = vmatpush1.msra.mxu0 0.0
  %2791 = vmatprep.subr.mxu0 0.0
  %2792 = vmatpush1.msra.mxu0 0.0
  %2793 = vmatprep.subr.mxu0 0.0
  %2794 = vmatpush1.msra.mxu0 0.0
  %2795 = vmatprep.subr.mxu0 0.0
  %2796 = vmatpush1.msra.mxu0 0.0
  %2797 = vmatprep.subr.mxu0 0.0
  %2798 = vmatpush1.msra.mxu0 0.0
  %2799 = vmatprep.subr.mxu0 0.0
  %2800 = vmatpush1.msra.mxu0 0.0
  %2801 = vmatprep.subr.mxu0 0.0
  %2802 = vmatpush1.msra.mxu0 0.0
  %2803 = vmatprep.subr.mxu0 0.0
  %2804 = vmatpush1.msra.mxu0 0.0
  %2805 = vmatprep.subr.mxu0 0.0
  %2806 = vmatpush1.msra.mxu0 0.0
  %2807 = vmatprep.subr.mxu0 0.0
  %2808 = vmatpush1.msra.mxu0 0.0
  %2809 = vmatprep.subr.mxu0 0.0
  %2810 = vmatpush1.msra.mxu0 0.0
  %2811 = vmatprep.subr.mxu0 0.0
  %2812 = vmatpush1.msra.mxu0 0.0
  %2813 = vmatprep.subr.mxu0 0.0
  %2814 = vmatpush1.msra.mxu0 0.0
  %2815 = vmatprep.subr.mxu0 0.0
  %2816 = vmatpush1.msra.mxu0 0.0
  %2817 = vmatprep.subr.mxu0 0.0
  %2818 = vmatpush1.msra.mxu0 0.0
  %2819 = vmatprep.subr.mxu0 0.0
  %2820 = vmatpush1.msra.mxu0 0.0
  %2821 = vmatprep.subr.mxu0 0.0
  %2822 = vmatpush1.msra.mxu0 0.0
  %2823 = vmatprep.subr.mxu0 0.0
  %2824 = vmatpush1.msra.mxu0 0.0
  %2825 = vmatprep.subr.mxu0 0.0
  %2826 = vmatpush1.msra.mxu0 0.0
  %2827 = vmatprep.subr.mxu0 0.0
  %2828 = vmatpush1.msra.mxu0 0.0
  %2829 = vmatprep.subr.mxu0 0.0
  %2830 = vmatpush1.msra.mxu0 0.0
  %2831 = vmatprep.subr.mxu0 0.0
  %2832 = vmatpush1.msra.mxu0 0.0
  %2833 = vmatprep.subr.mxu0 0.0
  %2834 = vmatpush1.msra.mxu0 0.0
  %2835 = vmatprep.mubr.f32.mxu0 0.0
  %2836 = vmatmul.mubr.f32.gmra.mrb[0].mxu0 %v2766
  %v2837 = vpop.f32.mrb[0].mxu0
  %v2838 = vadd.f32 %v2757, %v2837
  %v2839 = vpop.f32.mrb[0].mxu0
  %2840 = vmatprep.mubr.f32.mxu0 0.0
  %2841 = vmatmul.mubr.f32.gmra.mrb[0].mxu0 %v2769
  %v2842 = vpop.f32.mrb[0].mxu0
  %v2843 = vadd.f32 %v2762, %v2842
  %v2844 = vpop.f32.mrb[0].mxu0
  %2845 = vdwg.mxu0
  %v2846 = vadd.f32 %v2109, %v2838
  %v2847 = vadd.f32 %v2110, %v2843
  %v2848 = vld [vmem:[%s55] sm:$0x1]
  %v2850 = vlaneseq
  %v2851 = vshrl.u32 %v2850, 7
  %v2852 = vsub.s32 0, %v2851
  %v2853 = vrot.slane %v2848, %v2852
  %v2855 = vadd.f32 %v2846, %v2853
  %v2856 = vadd.f32 %v2847, %v2853
  %v2857 = vld [vmem:[%s57] sm:$0x1]
  %v2858 = vld [vmem:[%s59] sm:$0x1]
  %v2859 = vsel %vm194, %v2855, 0.0
  %2860 = vadd.xlane.f32.xlu0 %v2859
  %v2861 = vpop.xlane.xlu0 %2860
  %v2862 = vsel %vm194, %v2856, 0.0
  %2863 = vadd.xlane.f32.xlu0 %v2862
  %v2864 = vpop.xlane.xlu0 %2863
  %v2865 = vmul.f32 %v2861, %v363
  %v2866 = vmul.f32 %v2864, %v363
  %v2867 = vsub.f32 %v2855, %v2865
  %v2868 = vsub.f32 %v2856, %v2866
  %v2869 = vmul.f32 %v2867, %v2867
  %v2870 = vmul.f32 %v2868, %v2868
  %v2871 = vsel %vm194, %v2869, 0.0
  %2872 = vadd.xlane.f32.xlu0 %v2871
  %v2873 = vpop.xlane.xlu0 %2872
  %v2874 = vsel %vm194, %v2870, 0.0
  %2875 = vadd.xlane.f32.xlu0 %v2874
  %v2876 = vpop.xlane.xlu0 %2875
  %v2877 = vmul.f32 %v2873, %v363
  %v2878 = vmul.f32 %v2876, %v363
  %v2879 = vadd.f32 %v2877, 1e-05
  %v2880 = vadd.f32 %v2878, 1e-05
  %v2881 = vrsqrt.pop %v2879
  %v2882 = vrsqrt.pop %v2880
  %v2883 = vmul.f32 %v2867, %v2881
  %v2884 = vmul.f32 %v2868, %v2882
  %v2886 = vlaneseq
  %v2887 = vshrl.u32 %v2886, 7
  %v2888 = vsub.s32 0, %v2887
  %v2889 = vrot.slane %v2857, %v2888
  %v2891 = vmul.f32 %v2883, %v2889
  %v2892 = vmul.f32 %v2884, %v2889
  %v2894 = vlaneseq
  %v2895 = vshrl.u32 %v2894, 7
  %v2896 = vsub.s32 0, %v2895
  %v2897 = vrot.slane %v2858, %v2896
  %v2899 = vadd.f32 %v2891, %v2897
  %v2900 = vadd.f32 %v2892, %v2897
  %v2901 = vld [vmem:[%s61] sm:$0xff]
  %v2902 = vld [vmem:[%s61 + $0x8] sm:$0xff]
  %v2903 = vld [vmem:[%s61 + $0x10] sm:$0xff]
  %v2904 = vld [vmem:[%s61 + $0x18] sm:$0xff]
  %v2905 = vld [vmem:[%s61 + $0x20] sm:$0xff]
  %v2906 = vld [vmem:[%s61 + $0x28] sm:$0xff]
  %v2907 = vld [vmem:[%s61 + $0x30] sm:$0xff]
  %v2908 = vld [vmem:[%s61 + $0x38] sm:$0xff]
  %v2909 = vld [vmem:[%s61 + $0x40] sm:$0xff]
  %v2910 = vld [vmem:[%s61 + $0x48] sm:$0xff]
  %v2911 = vld [vmem:[%s61 + $0x50] sm:$0xff]
  %v2912 = vld [vmem:[%s61 + $0x58] sm:$0xff]
  %v2913 = vld [vmem:[%s61 + $0x60] sm:$0xff]
  %v2914 = vld [vmem:[%s61 + $0x68] sm:$0xff]
  %v2915 = vld [vmem:[%s61 + $0x70] sm:$0xff]
  %v2916 = vld [vmem:[%s61 + $0x78] sm:$0xff]
  %v2917 = vld [vmem:[%s63] sm:$0x3]
  %v2919 = vlaneseq
  %v2920 = vshrl.u32 %v2919, 7
  %v2921 = vsub.s32 0, %v2920
  %v2922 = vrot.slane %v2917, %v2921
  %v2923 = vlaneseq
  %v2924 = vshrl.u32 %v2923, 7
  %v2925 = vsub.s32 1, %v2924
  %v2926 = vrot.slane %v2917, %v2925
  %v2930 = vsel %vm194, %v2899, 0
  %v2933 = vsel %vm194, %v2900, 0
  %2935 = vmatprep.subr.mxu0 %v2902
  %2936 = vmatpush1.msra.mxu0 %v2901
  %2937 = vmatprep.subr.mxu0 %v2904
  %2938 = vmatpush1.msra.mxu0 %v2903
  %2939 = vmatprep.subr.mxu0 %v2906
  %2940 = vmatpush1.msra.mxu0 %v2905
  %2941 = vmatprep.subr.mxu0 %v2908
  %2942 = vmatpush1.msra.mxu0 %v2907
  %2943 = vmatprep.subr.mxu0 %v2910
  %2944 = vmatpush1.msra.mxu0 %v2909
  %2945 = vmatprep.subr.mxu0 %v2912
  %2946 = vmatpush1.msra.mxu0 %v2911
  %2947 = vmatprep.subr.mxu0 %v2914
  %2948 = vmatpush1.msra.mxu0 %v2913
  %2949 = vmatprep.subr.mxu0 %v2916
  %2950 = vmatpush1.msra.mxu0 %v2915
  %2951 = vmatprep.subr.mxu0 0.0
  %2952 = vmatpush1.msra.mxu0 0.0
  %2953 = vmatprep.subr.mxu0 0.0
  %2954 = vmatpush1.msra.mxu0 0.0
  %2955 = vmatprep.subr.mxu0 0.0
  %2956 = vmatpush1.msra.mxu0 0.0
  %2957 = vmatprep.subr.mxu0 0.0
  %2958 = vmatpush1.msra.mxu0 0.0
  %2959 = vmatprep.subr.mxu0 0.0
  %2960 = vmatpush1.msra.mxu0 0.0
  %2961 = vmatprep.subr.mxu0 0.0
  %2962 = vmatpush1.msra.mxu0 0.0
  %2963 = vmatprep.subr.mxu0 0.0
  %2964 = vmatpush1.msra.mxu0 0.0
  %2965 = vmatprep.subr.mxu0 0.0
  %2966 = vmatpush1.msra.mxu0 0.0
  %2967 = vmatprep.subr.mxu0 0.0
  %2968 = vmatpush1.msra.mxu0 0.0
  %2969 = vmatprep.subr.mxu0 0.0
  %2970 = vmatpush1.msra.mxu0 0.0
  %2971 = vmatprep.subr.mxu0 0.0
  %2972 = vmatpush1.msra.mxu0 0.0
  %2973 = vmatprep.subr.mxu0 0.0
  %2974 = vmatpush1.msra.mxu0 0.0
  %2975 = vmatprep.subr.mxu0 0.0
  %2976 = vmatpush1.msra.mxu0 0.0
  %2977 = vmatprep.subr.mxu0 0.0
  %2978 = vmatpush1.msra.mxu0 0.0
  %2979 = vmatprep.subr.mxu0 0.0
  %2980 = vmatpush1.msra.mxu0 0.0
  %2981 = vmatprep.subr.mxu0 0.0
  %2982 = vmatpush1.msra.mxu0 0.0
  %2983 = vmatprep.subr.mxu0 0.0
  %2984 = vmatpush1.msra.mxu0 0.0
  %2985 = vmatprep.subr.mxu0 0.0
  %2986 = vmatpush1.msra.mxu0 0.0
  %2987 = vmatprep.subr.mxu0 0.0
  %2988 = vmatpush1.msra.mxu0 0.0
  %2989 = vmatprep.subr.mxu0 0.0
  %2990 = vmatpush1.msra.mxu0 0.0
  %2991 = vmatprep.subr.mxu0 0.0
  %2992 = vmatpush1.msra.mxu0 0.0
  %2993 = vmatprep.subr.mxu0 0.0
  %2994 = vmatpush1.msra.mxu0 0.0
  %2995 = vmatprep.subr.mxu0 0.0
  %2996 = vmatpush1.msra.mxu0 0.0
  %2997 = vmatprep.subr.mxu0 0.0
  %2998 = vmatpush1.msra.mxu0 0.0
  %2999 = vmatprep.mubr.f32.mxu0 0.0
  %3000 = vmatmul.mubr.f32.gmra.mrb[0].mxu0 %v2930
  %v3001 = vpop.f32.mrb[0].mxu0
  %v3002 = vadd.f32 %v2922, %v3001
  %v3003 = vpop.f32.mrb[0].mxu0
  %v3004 = vadd.f32 %v2926, %v3003
  %3005 = vmatprep.mubr.f32.mxu0 0.0
  %3006 = vmatmul.mubr.f32.gmra.mrb[0].mxu0 %v2933
  %v3007 = vpop.f32.mrb[0].mxu0
  %v3008 = vadd.f32 %v2922, %v3007
  %v3009 = vpop.f32.mrb[0].mxu0
  %v3010 = vadd.f32 %v2926, %v3009
  %3011 = vdwg.mxu0
  %v3012 = vmul.f32 %v3002, 1.702
  %v3013 = vmul.f32 %v3004, 1.702
  %v3014 = vmul.f32 %v3008, 1.702
  %v3015 = vmul.f32 %v3010, 1.702
  %v3016 = vxor.u32 %v3012, 2147483648
  %v3017 = vxor.u32 %v3013, 2147483648
  %v3018 = vxor.u32 %v3014, 2147483648
  %v3019 = vxor.u32 %v3015, 2147483648
  %v3020 = vmul.f32 %v3016, 1.442695
  %v3021 = vpow.pop %v3020
  %v3022 = vmul.f32 %v3017, 1.442695
  %v3023 = vpow.pop %v3022
  %v3024 = vmul.f32 %v3018, 1.442695
  %v3025 = vpow.pop %v3024
  %v3026 = vmul.f32 %v3019, 1.442695
  %v3027 = vpow.pop %v3026
  %v3028 = vadd.f32 %v3021, 1.0
  %v3029 = vadd.f32 %v3023, 1.0
  %v3030 = vadd.f32 %v3025, 1.0
  %v3031 = vadd.f32 %v3027, 1.0
  %v3032 = vrcp.pop %v3028
  %v3033 = vmul.f32 1.0, %v3032
  %v3034 = vrcp.pop %v3029
  %v3035 = vmul.f32 1.0, %v3034
  %v3036 = vrcp.pop %v3030
  %v3037 = vmul.f32 1.0, %v3036
  %v3038 = vrcp.pop %v3031
  %v3039 = vmul.f32 1.0, %v3038
  %v3040 = vmul.f32 %v3002, %v3033
  %v3041 = vmul.f32 %v3004, %v3035
  %v3042 = vmul.f32 %v3008, %v3037
  %v3043 = vmul.f32 %v3010, %v3039
  %v3044 = vld [vmem:[%s65] sm:$0xff]
  %v3045 = vld [vmem:[%s65 + $0x8] sm:$0xff]
  %v3046 = vld [vmem:[%s65 + $0x10] sm:$0xff]
  %v3047 = vld [vmem:[%s65 + $0x18] sm:$0xff]
  %v3048 = vld [vmem:[%s65 + $0x20] sm:$0xff]
  %v3049 = vld [vmem:[%s65 + $0x28] sm:$0xff]
  %v3050 = vld [vmem:[%s65 + $0x30] sm:$0xff]
  %v3051 = vld [vmem:[%s65 + $0x38] sm:$0xff]
  %v3052 = vld [vmem:[%s65 + $0x40] sm:$0xff]
  %v3053 = vld [vmem:[%s65 + $0x48] sm:$0xff]
  %v3054 = vld [vmem:[%s65 + $0x50] sm:$0xff]
  %v3055 = vld [vmem:[%s65 + $0x58] sm:$0xff]
  %v3056 = vld [vmem:[%s65 + $0x60] sm:$0xff]
  %v3057 = vld [vmem:[%s65 + $0x68] sm:$0xff]
  %v3058 = vld [vmem:[%s65 + $0x70] sm:$0xff]
  %v3059 = vld [vmem:[%s65 + $0x78] sm:$0xff]
  %v3060 = vld [vmem:[%s65 + $0x80] sm:$0xff]
  %v3061 = vld [vmem:[%s65 + $0x88] sm:$0xff]
  %v3062 = vld [vmem:[%s65 + $0x90] sm:$0xff]
  %v3063 = vld [vmem:[%s65 + $0x98] sm:$0xff]
  %v3064 = vld [vmem:[%s65 + $0xa0] sm:$0xff]
  %v3065 = vld [vmem:[%s65 + $0xa8] sm:$0xff]
  %v3066 = vld [vmem:[%s65 + $0xb0] sm:$0xff]
  %v3067 = vld [vmem:[%s65 + $0xb8] sm:$0xff]
  %v3068 = vld [vmem:[%s65 + $0xc0] sm:$0xff]
  %v3069 = vld [vmem:[%s65 + $0xc8] sm:$0xff]
  %v3070 = vld [vmem:[%s65 + $0xd0] sm:$0xff]
  %v3071 = vld [vmem:[%s65 + $0xd8] sm:$0xff]
  %v3072 = vld [vmem:[%s65 + $0xe0] sm:$0xff]
  %v3073 = vld [vmem:[%s65 + $0xe8] sm:$0xff]
  %v3074 = vld [vmem:[%s65 + $0xf0] sm:$0xff]
  %v3075 = vld [vmem:[%s65 + $0xf8] sm:$0xff]
  %3076 = vmatprep.subr.mxu0 0.0
  %3077 = vmatpush1.msra.mxu0 %v3044
  %3078 = vmatprep.subr.mxu0 0.0
  %3079 = vmatpush1.msra.mxu0 %v3045
  %3080 = vmatprep.subr.mxu0 0.0
  %3081 = vmatpush1.msra.mxu0 %v3046
  %3082 = vmatprep.subr.mxu0 0.0
  %3083 = vmatpush1.msra.mxu0 %v3047
  %3084 = vmatprep.subr.mxu0 0.0
  %3085 = vmatpush1.msra.mxu0 %v3048
  %3086 = vmatprep.subr.mxu0 0.0
  %3087 = vmatpush1.msra.mxu0 %v3049
  %3088 = vmatprep.subr.mxu0 0.0
  %3089 = vmatpush1.msra.mxu0 %v3050
  %3090 = vmatprep.subr.mxu0 0.0
  %3091 = vmatpush1.msra.mxu0 %v3051
  %3092 = vmatprep.subr.mxu0 0.0
  %3093 = vmatpush1.msra.mxu0 %v3052
  %3094 = vmatprep.subr.mxu0 0.0
  %3095 = vmatpush1.msra.mxu0 %v3053
  %3096 = vmatprep.subr.mxu0 0.0
  %3097 = vmatpush1.msra.mxu0 %v3054
  %3098 = vmatprep.subr.mxu0 0.0
  %3099 = vmatpush1.msra.mxu0 %v3055
  %3100 = vmatprep.subr.mxu0 0.0
  %3101 = vmatpush1.msra.mxu0 %v3056
  %3102 = vmatprep.subr.mxu0 0.0
  %3103 = vmatpush1.msra.mxu0 %v3057
  %3104 = vmatprep.subr.mxu0 0.0
  %3105 = vmatpush1.msra.mxu0 %v3058
  %3106 = vmatprep.subr.mxu0 0.0
  %3107 = vmatpush1.msra.mxu0 %v3059
  %3108 = vmatprep.subr.mxu0 0.0
  %3109 = vmatpush1.msra.mxu0 %v3060
  %3110 = vmatprep.subr.mxu0 0.0
  %3111 = vmatpush1.msra.mxu0 %v3061
  %3112 = vmatprep.subr.mxu0 0.0
  %3113 = vmatpush1.msra.mxu0 %v3062
  %3114 = vmatprep.subr.mxu0 0.0
  %3115 = vmatpush1.msra.mxu0 %v3063
  %3116 = vmatprep.subr.mxu0 0.0
  %3117 = vmatpush1.msra.mxu0 %v3064
  %3118 = vmatprep.subr.mxu0 0.0
  %3119 = vmatpush1.msra.mxu0 %v3065
  %3120 = vmatprep.subr.mxu0 0.0
  %3121 = vmatpush1.msra.mxu0 %v3066
  %3122 = vmatprep.subr.mxu0 0.0
  %3123 = vmatpush1.msra.mxu0 %v3067
  %3124 = vmatprep.subr.mxu0 0.0
  %3125 = vmatpush1.msra.mxu0 %v3068
  %3126 = vmatprep.subr.mxu0 0.0
  %3127 = vmatpush1.msra.mxu0 %v3069
  %3128 = vmatprep.subr.mxu0 0.0
  %3129 = vmatpush1.msra.mxu0 %v3070
  %3130 = vmatprep.subr.mxu0 0.0
  %3131 = vmatpush1.msra.mxu0 %v3071
  %3132 = vmatprep.subr.mxu0 0.0
  %3133 = vmatpush1.msra.mxu0 %v3072
  %3134 = vmatprep.subr.mxu0 0.0
  %3135 = vmatpush1.msra.mxu0 %v3073
  %3136 = vmatprep.subr.mxu0 0.0
  %3137 = vmatpush1.msra.mxu0 %v3074
  %3138 = vmatprep.subr.mxu0 0.0
  %3139 = vmatpush1.msra.mxu0 %v3075
  %3140 = vmatprep.mubr.f32.mxu0 %v3041
  %3141 = vmatmul.mubr.f32.gmra.mrb[0].mxu0 %v3040
  %v3142 = vpop.f32.mrb[0].mxu0
  %v3143 = vadd.f32 0.0, %v3142
  %v3144 = vpop.f32.mrb[0].mxu0
  %3145 = vmatprep.mubr.f32.mxu0 %v3043
  %3146 = vmatmul.mubr.f32.gmra.mrb[0].mxu0 %v3042
  %v3147 = vpop.f32.mrb[0].mxu0
  %v3148 = vadd.f32 0.0, %v3147
  %v3149 = vpop.f32.mrb[0].mxu0
  %3150 = vdwg.mxu0
  %v3151 = vadd.f32 %v2855, %v3143
  %v3152 = vadd.f32 %v2856, %v3148
  %v3153 = vld [vmem:[%s67] sm:$0x1]
  %v3155 = vlaneseq
  %v3156 = vshrl.u32 %v3155, 7
  %v3157 = vsub.s32 0, %v3156
  %v3158 = vrot.slane %v3153, %v3157
  %v3160 = vadd.f32 %v3151, %v3158
  %v3161 = vadd.f32 %v3152, %v3158
  %s3162 = scalar_lea.vmem %s45, 1
  %v3163 = vld [vmem:[%s3162] sm:$0x1]
  %s3164 = scalar_lea.vmem %s47, 1
  %v3165 = vld [vmem:[%s3164] sm:$0x1]
  %v3166 = vsel %vm194, %v3160, 0.0
  %3167 = vadd.xlane.f32.xlu0 %v3166
  %v3168 = vpop.xlane.xlu0 %3167
  %v3169 = vsel %vm194, %v3161, 0.0
  %3170 = vadd.xlane.f32.xlu0 %v3169
  %v3171 = vpop.xlane.xlu0 %3170
  %v3172 = vmul.f32 %v3168, %v363
  %v3173 = vmul.f32 %v3171, %v363
  %v3174 = vsub.f32 %v3160, %v3172
  %v3175 = vsub.f32 %v3161, %v3173
  %v3176 = vmul.f32 %v3174, %v3174
  %v3177 = vmul.f32 %v3175, %v3175
  %v3178 = vsel %vm194, %v3176, 0.0
  %3179 = vadd.xlane.f32.xlu0 %v3178
  %v3180 = vpop.xlane.xlu0 %3179
  %v3181 = vsel %vm194, %v3177, 0.0
  %3182 = vadd.xlane.f32.xlu0 %v3181
  %v3183 = vpop.xlane.xlu0 %3182
  %v3184 = vmul.f32 %v3180, %v363
  %v3185 = vmul.f32 %v3183, %v363
  %v3186 = vadd.f32 %v3184, 1e-05
  %v3187 = vadd.f32 %v3185, 1e-05
  %v3188 = vrsqrt.pop %v3186
  %v3189 = vrsqrt.pop %v3187
  %v3190 = vmul.f32 %v3174, %v3188
  %v3191 = vmul.f32 %v3175, %v3189
  %v3193 = vlaneseq
  %v3194 = vshrl.u32 %v3193, 7
  %v3195 = vsub.s32 0, %v3194
  %v3196 = vrot.slane %v3163, %v3195
  %v3198 = vmul.f32 %v3190, %v3196
  %v3199 = vmul.f32 %v3191, %v3196
  %v3201 = vlaneseq
  %v3202 = vshrl.u32 %v3201, 7
  %v3203 = vsub.s32 0, %v3202
  %v3204 = vrot.slane %v3165, %v3203
  %v3206 = vadd.f32 %v3198, %v3204
  %v3207 = vadd.f32 %v3199, %v3204
  %s3208 = scalar_lea.vmem %s49, 128
  %v3209 = vld [vmem:[%s3208] sm:$0xff]
  %v3210 = vld [vmem:[%s3208 + $0x8] sm:$0xff]
  %v3211 = vld [vmem:[%s3208 + $0x10] sm:$0xff]
  %v3212 = vld [vmem:[%s3208 + $0x18] sm:$0xff]
  %v3213 = vld [vmem:[%s3208 + $0x20] sm:$0xff]
  %v3214 = vld [vmem:[%s3208 + $0x28] sm:$0xff]
  %v3215 = vld [vmem:[%s3208 + $0x30] sm:$0xff]
  %v3216 = vld [vmem:[%s3208 + $0x38] sm:$0xff]
  %v3217 = vld [vmem:[%s3208 + $0x40] sm:$0xff]
  %v3218 = vld [vmem:[%s3208 + $0x48] sm:$0xff]
  %v3219 = vld [vmem:[%s3208 + $0x50] sm:$0xff]
  %v3220 = vld [vmem:[%s3208 + $0x58] sm:$0xff]
  %v3221 = vld [vmem:[%s3208 + $0x60] sm:$0xff]
  %v3222 = vld [vmem:[%s3208 + $0x68] sm:$0xff]
  %v3223 = vld [vmem:[%s3208 + $0x70] sm:$0xff]
  %v3224 = vld [vmem:[%s3208 + $0x78] sm:$0xff]
  %s3225 = scalar_lea.vmem %s51, 2
  %v3226 = vld [vmem:[%s3225] sm:$0x3]
  %v3228 = vlaneseq
  %v3229 = vshrl.u32 %v3228, 7
  %v3230 = vsub.s32 0, %v3229
  %v3231 = vrot.slane %v3226, %v3230
  %v3232 = vlaneseq
  %v3233 = vshrl.u32 %v3232, 7
  %v3234 = vsub.s32 1, %v3233
  %v3235 = vrot.slane %v3226, %v3234
  %v3239 = vsel %vm194, %v3206, 0
  %v3242 = vsel %vm194, %v3207, 0
  %3244 = vmatprep.subr.mxu0 %v3210
  %3245 = vmatpush1.msra.mxu0 %v3209
  %3246 = vmatprep.subr.mxu0 %v3212
  %3247 = vmatpush1.msra.mxu0 %v3211
  %3248 = vmatprep.subr.mxu0 %v3214
  %3249 = vmatpush1.msra.mxu0 %v3213
  %3250 = vmatprep.subr.mxu0 %v3216
  %3251 = vmatpush1.msra.mxu0 %v3215
  %3252 = vmatprep.subr.mxu0 %v3218
  %3253 = vmatpush1.msra.mxu0 %v3217
  %3254 = vmatprep.subr.mxu0 %v3220
  %3255 = vmatpush1.msra.mxu0 %v3219
  %3256 = vmatprep.subr.mxu0 %v3222
  %3257 = vmatpush1.msra.mxu0 %v3221
  %3258 = vmatprep.subr.mxu0 %v3224
  %3259 = vmatpush1.msra.mxu0 %v3223
  %3260 = vmatprep.subr.mxu0 0.0
  %3261 = vmatpush1.msra.mxu0 0.0
  %3262 = vmatprep.subr.mxu0 0.0
  %3263 = vmatpush1.msra.mxu0 0.0
  %3264 = vmatprep.subr.mxu0 0.0
  %3265 = vmatpush1.msra.mxu0 0.0
  %3266 = vmatprep.subr.mxu0 0.0
  %3267 = vmatpush1.msra.mxu0 0.0
  %3268 = vmatprep.subr.mxu0 0.0
  %3269 = vmatpush1.msra.mxu0 0.0
  %3270 = vmatprep.subr.mxu0 0.0
  %3271 = vmatpush1.msra.mxu0 0.0
  %3272 = vmatprep.subr.mxu0 0.0
  %3273 = vmatpush1.msra.mxu0 0.0
  %3274 = vmatprep.subr.mxu0 0.0
  %3275 = vmatpush1.msra.mxu0 0.0
  %3276 = vmatprep.subr.mxu0 0.0
  %3277 = vmatpush1.msra.mxu0 0.0
  %3278 = vmatprep.subr.mxu0 0.0
  %3279 = vmatpush1.msra.mxu0 0.0
  %3280 = vmatprep.subr.mxu0 0.0
  %3281 = vmatpush1.msra.mxu0 0.0
  %3282 = vmatprep.subr.mxu0 0.0
  %3283 = vmatpush1.msra.mxu0 0.0
  %3284 = vmatprep.subr.mxu0 0.0
  %3285 = vmatpush1.msra.mxu0 0.0
  %3286 = vmatprep.subr.mxu0 0.0
  %3287 = vmatpush1.msra.mxu0 0.0
  %3288 = vmatprep.subr.mxu0 0.0
  %3289 = vmatpush1.msra.mxu0 0.0
  %3290 = vmatprep.subr.mxu0 0.0
  %3291 = vmatpush1.msra.mxu0 0.0
  %3292 = vmatprep.subr.mxu0 0.0
  %3293 = vmatpush1.msra.mxu0 0.0
  %3294 = vmatprep.subr.mxu0 0.0
  %3295 = vmatpush1.msra.mxu0 0.0
  %3296 = vmatprep.subr.mxu0 0.0
  %3297 = vmatpush1.msra.mxu0 0.0
  %3298 = vmatprep.subr.mxu0 0.0
  %3299 = vmatpush1.msra.mxu0 0.0
  %3300 = vmatprep.subr.mxu0 0.0
  %3301 = vmatpush1.msra.mxu0 0.0
  %3302 = vmatprep.subr.mxu0 0.0
  %3303 = vmatpush1.msra.mxu0 0.0
  %3304 = vmatprep.subr.mxu0 0.0
  %3305 = vmatpush1.msra.mxu0 0.0
  %3306 = vmatprep.subr.mxu0 0.0
  %3307 = vmatpush1.msra.mxu0 0.0
  %3308 = vmatprep.mubr.f32.mxu0 0.0
  %3309 = vmatmul.mubr.f32.gmra.mrb[0].mxu0 %v3239
  %v3310 = vpop.f32.mrb[0].mxu0
  %v3311 = vadd.f32 %v3231, %v3310
  %v3312 = vpop.f32.mrb[0].mxu0
  %v3313 = vadd.f32 %v3235, %v3312
  %3314 = vmatprep.mubr.f32.mxu0 0.0
  %3315 = vmatmul.mubr.f32.gmra.mrb[0].mxu0 %v3242
  %v3316 = vpop.f32.mrb[0].mxu0
  %v3317 = vadd.f32 %v3231, %v3316
  %v3318 = vpop.f32.mrb[0].mxu0
  %v3319 = vadd.f32 %v3235, %v3318
  %3320 = vdwg.mxu0
  %3321 = vst [vmem:[#allocation3] sm:$0xff] %v3311
  %3322 = vst.msk [vmem:[#allocation3 + $0x8] sm:$0xff] %vm194, %v3313
  %3323 = vst [vmem:[#allocation3 + $0x10] sm:$0xff] %v3317
  %3324 = vst.msk [vmem:[#allocation3 + $0x18] sm:$0xff] %vm194, %v3319
  %s3325 = scalar_lea.vmem %s53, 64
  %v3326 = vld [vmem:[%s3325] sm:$0xff]
  %v3327 = vld [vmem:[%s3325 + $0x8] sm:$0xff]
  %v3328 = vld [vmem:[%s3325 + $0x10] sm:$0xff]
  %v3329 = vld [vmem:[%s3325 + $0x18] sm:$0xff]
  %v3330 = vld [vmem:[%s3325 + $0x20] sm:$0xff]
  %v3331 = vld [vmem:[%s3325 + $0x28] sm:$0xff]
  %v3332 = vld [vmem:[%s3325 + $0x30] sm:$0xff]
  %v3333 = vld [vmem:[%s3325 + $0x38] sm:$0xff]
  %v3334 = vld [vmem:[#allocation3] sm:$0xff]
  %v3335 = vld [vmem:[#allocation3 + $0x10] sm:$0xff]
  %v3336 = vld [vmem:[#allocation3 + $0x8] sm:$0xff]
  %v3337 = vld [vmem:[#allocation3 + $0x18] sm:$0xff]
  %v3338 = vmul.f32 %v3334, 0.17677669
  %v3339 = vmul.f32 %v3335, 0.17677669
  %3342 = vrot.lane.b32.xlu0 %v3334, 64
  %v3343 = vpop.permute.xlu0 %3342
  %3344 = vrot.lane.b32.xlu0 %v3335, 64
  %v3345 = vpop.permute.xlu0 %3344
  %v3347 = vsel %vm2292, %v3338, 0
  %v3350 = vsel %vm2292, %v3339, 0
  %v3352 = vsel %vm2292, %v3343, 0
  %v3354 = vsel %vm2292, %v3345, 0
  %3356 = vmatprep.subr.mxu0 0.0
  %3357 = vmatpush1.xpose.msra.mxu0 %v3352
  %3358 = vmatprep.subr.mxu0 0.0
  %3359 = vmatpush1.xpose.msra.mxu0 %v3354
  %3360 = vmatprep.subr.mxu0 0.0
  %3361 = vmatpush1.xpose.msra.mxu0 0.0
  %3362 = vmatprep.subr.mxu0 0.0
  %3363 = vmatpush1.xpose.msra.mxu0 0.0
  %3364 = vmatprep.subr.mxu0 0.0
  %3365 = vmatpush1.xpose.msra.mxu0 0.0
  %3366 = vmatprep.subr.mxu0 0.0
  %3367 = vmatpush1.xpose.msra.mxu0 0.0
  %3368 = vmatprep.subr.mxu0 0.0
  %3369 = vmatpush1.xpose.msra.mxu0 0.0
  %3370 = vmatprep.subr.mxu0 0.0
  %3371 = vmatpush1.xpose.msra.mxu0 0.0
  %3372 = vmatprep.subr.mxu0 0.0
  %3373 = vmatpush1.xpose.msra.mxu0 0.0
  %3374 = vmatprep.subr.mxu0 0.0
  %3375 = vmatpush1.xpose.msra.mxu0 0.0
  %3376 = vmatprep.subr.mxu0 0.0
  %3377 = vmatpush1.xpose.msra.mxu0 0.0
  %3378 = vmatprep.subr.mxu0 0.0
  %3379 = vmatpush1.xpose.msra.mxu0 0.0
  %3380 = vmatprep.subr.mxu0 0.0
  %3381 = vmatpush1.xpose.msra.mxu0 0.0
  %3382 = vmatprep.subr.mxu0 0.0
  %3383 = vmatpush1.xpose.msra.mxu0 0.0
  %3384 = vmatprep.subr.mxu0 0.0
  %3385 = vmatpush1.xpose.msra.mxu0 0.0
  %3386 = vmatprep.subr.mxu0 0.0
  %3387 = vmatpush1.xpose.msra.mxu0 0.0
  %3388 = vmatprep.subr.mxu0 0.0
  %3389 = vmatpush1.xpose.msra.mxu0 0.0
  %3390 = vmatprep.subr.mxu0 0.0
  %3391 = vmatpush1.xpose.msra.mxu0 0.0
  %3392 = vmatprep.subr.mxu0 0.0
  %3393 = vmatpush1.xpose.msra.mxu0 0.0
  %3394 = vmatprep.subr.mxu0 0.0
  %3395 = vmatpush1.xpose.msra.mxu0 0.0
  %3396 = vmatprep.subr.mxu0 0.0
  %3397 = vmatpush1.xpose.msra.mxu0 0.0
  %3398 = vmatprep.subr.mxu0 0.0
  %3399 = vmatpush1.xpose.msra.mxu0 0.0
  %3400 = vmatprep.subr.mxu0 0.0
  %3401 = vmatpush1.xpose.msra.mxu0 0.0
  %3402 = vmatprep.subr.mxu0 0.0
  %3403 = vmatpush1.xpose.msra.mxu0 0.0
  %3404 = vmatprep.subr.mxu0 0.0
  %3405 = vmatpush1.xpose.msra.mxu0 0.0
  %3406 = vmatprep.subr.mxu0 0.0
  %3407 = vmatpush1.xpose.msra.mxu0 0.0
  %3408 = vmatprep.subr.mxu0 0.0
  %3409 = vmatpush1.xpose.msra.mxu0 0.0
  %3410 = vmatprep.subr.mxu0 0.0
  %3411 = vmatpush1.xpose.msra.mxu0 0.0
  %3412 = vmatprep.subr.mxu0 0.0
  %3413 = vmatpush1.xpose.msra.mxu0 0.0
  %3414 = vmatprep.subr.mxu0 0.0
  %3415 = vmatpush1.xpose.msra.mxu0 0.0
  %3416 = vmatprep.subr.mxu0 0.0
  %3417 = vmatpush1.xpose.msra.mxu0 0.0
  %3418 = vmatprep.subr.mxu0 0.0
  %3419 = vmatpush1.xpose.msra.mxu0 0.0
  %3420 = vmatprep.mubr.f32.mxu0 0.0
  %3421 = vmatmul.mubr.f32.gmra.mrb[0].mxu0 %v3347
  %v3422 = vpop.f32.mrb[0].mxu0
  %v3423 = vadd.f32 %v2111, %v3422
  %v3424 = vpop.f32.mrb[0].mxu0
  %3425 = vmatprep.mubr.f32.mxu0 0.0
  %3426 = vmatmul.mubr.f32.gmra.mrb[0].mxu0 %v3350
  %v3427 = vpop.f32.mrb[0].mxu0
  %v3428 = vadd.f32 %v2112, %v3427
  %v3429 = vpop.f32.mrb[0].mxu0
  %3430 = vdwg.mxu0
  %v3431 = vsel %vm2378, %v3423, -inf
  %3432 = vmax.xlane.f32.xlu0 %v3431
  %v3433 = vpop.xlane.xlu0 %3432
  %v3434 = vsel %vm2378, %v3428, -inf
  %3435 = vmax.xlane.f32.xlu0 %v3434
  %v3436 = vpop.xlane.xlu0 %3435
  %v3437 = vsub.f32 %v3423, %v3433
  %v3438 = vsub.f32 %v3428, %v3436
  %v3439 = vmul.f32 %v3437, 1.442695
  %v3440 = vpow.pop %v3439
  %v3441 = vmul.f32 %v3438, 1.442695
  %v3442 = vpow.pop %v3441
  %v3443 = vsel %vm2378, %v3440, 0.0
  %3444 = vadd.xlane.f32.xlu0 %v3443
  %v3445 = vpop.xlane.xlu0 %3444
  %v3446 = vsel %vm2378, %v3442, 0.0
  %3447 = vadd.xlane.f32.xlu0 %v3446
  %v3448 = vpop.xlane.xlu0 %3447
  %v3449 = vrcp.pop %v3445
  %v3450 = vrcp.pop %v3448
  %v3451 = vmul.f32 %v3440, %v3449
  %v3452 = vmul.f32 %v3442, %v3450
  %v3454 = vsel %vm2378, %v3451, 0
  %v3457 = vsel %vm2378, %v3452, 0
  %3459 = vmatprep.subr.mxu0 0.0
  %3460 = vmatpush1.msra.mxu0 %v3336
  %3461 = vmatprep.subr.mxu0 0.0
  %3462 = vmatpush1.msra.mxu0 %v3337
  %3463 = vmatprep.subr.mxu0 0.0
  %3464 = vmatpush1.msra.mxu0 0.0
  %3465 = vmatprep.subr.mxu0 0.0
  %3466 = vmatpush1.msra.mxu0 0.0
  %3467 = vmatprep.subr.mxu0 0.0
  %3468 = vmatpush1.msra.mxu0 0.0
  %3469 = vmatprep.subr.mxu0 0.0
  %3470 = vmatpush1.msra.mxu0 0.0
  %3471 = vmatprep.subr.mxu0 0.0
  %3472 = vmatpush1.msra.mxu0 0.0
  %3473 = vmatprep.subr.mxu0 0.0
  %3474 = vmatpush1.msra.mxu0 0.0
  %3475 = vmatprep.subr.mxu0 0.0
  %3476 = vmatpush1.msra.mxu0 0.0
  %3477 = vmatprep.subr.mxu0 0.0
  %3478 = vmatpush1.msra.mxu0 0.0
  %3479 = vmatprep.subr.mxu0 0.0
  %3480 = vmatpush1.msra.mxu0 0.0
  %3481 = vmatprep.subr.mxu0 0.0
  %3482 = vmatpush1.msra.mxu0 0.0
  %3483 = vmatprep.subr.mxu0 0.0
  %3484 = vmatpush1.msra.mxu0 0.0
  %3485 = vmatprep.subr.mxu0 0.0
  %3486 = vmatpush1.msra.mxu0 0.0
  %3487 = vmatprep.subr.mxu0 0.0
  %3488 = vmatpush1.msra.mxu0 0.0
  %3489 = vmatprep.subr.mxu0 0.0
  %3490 = vmatpush1.msra.mxu0 0.0
  %3491 = vmatprep.subr.mxu0 0.0
  %3492 = vmatpush1.msra.mxu0 0.0
  %3493 = vmatprep.subr.mxu0 0.0
  %3494 = vmatpush1.msra.mxu0 0.0
  %3495 = vmatprep.subr.mxu0 0.0
  %3496 = vmatpush1.msra.mxu0 0.0
  %3497 = vmatprep.subr.mxu0 0.0
  %3498 = vmatpush1.msra.mxu0 0.0
  %3499 = vmatprep.subr.mxu0 0.0
  %3500 = vmatpush1.msra.mxu0 0.0
  %3501 = vmatprep.subr.mxu0 0.0
  %3502 = vmatpush1.msra.mxu0 0.0
  %3503 = vmatprep.subr.mxu0 0.0
  %3504 = vmatpush1.msra.mxu0 0.0
  %3505 = vmatprep.subr.mxu0 0.0
  %3506 = vmatpush1.msra.mxu0 0.0
  %3507 = vmatprep.subr.mxu0 0.0
  %3508 = vmatpush1.msra.mxu0 0.0
  %3509 = vmatprep.subr.mxu0 0.0
  %3510 = vmatpush1.msra.mxu0 0.0
  %3511 = vmatprep.subr.mxu0 0.0
  %3512 = vmatpush1.msra.mxu0 0.0
  %3513 = vmatprep.subr.mxu0 0.0
  %3514 = vmatpush1.msra.mxu0 0.0
  %3515 = vmatprep.subr.mxu0 0.0
  %3516 = vmatpush1.msra.mxu0 0.0
  %3517 = vmatprep.subr.mxu0 0.0
  %3518 = vmatpush1.msra.mxu0 0.0
  %3519 = vmatprep.subr.mxu0 0.0
  %3520 = vmatpush1.msra.mxu0 0.0
  %3521 = vmatprep.subr.mxu0 0.0
  %3522 = vmatpush1.msra.mxu0 0.0
  %3523 = vmatprep.mubr.f32.mxu0 0.0
  %3524 = vmatmul.mubr.f32.gmra.mrb[0].mxu0 %v3454
  %v3525 = vpop.f32.mrb[0].mxu0
  %v3526 = vadd.f32 0.0, %v3525
  %v3527 = vpop.f32.mrb[0].mxu0
  %3528 = vmatprep.mubr.f32.mxu0 0.0
  %3529 = vmatmul.mubr.f32.gmra.mrb[0].mxu0 %v3457
  %v3530 = vpop.f32.mrb[0].mxu0
  %v3531 = vadd.f32 0.0, %v3530
  %v3532 = vpop.f32.mrb[0].mxu0
  %3533 = vdwg.mxu0
  %3534 = vrot.lane.b32.xlu0 %v3338, 96
  %v3535 = vpop.permute.xlu0 %3534
  %3536 = vrot.lane.b32.xlu0 %v3339, 96
  %v3537 = vpop.permute.xlu0 %3536
  %3538 = vrot.lane.b32.xlu0 %v3334, 32
  %v3539 = vpop.permute.xlu0 %3538
  %3540 = vrot.lane.b32.xlu0 %v3335, 32
  %v3541 = vpop.permute.xlu0 %3540
  %v3542 = vsel %vm2292, %v3535, 0
  %v3544 = vsel %vm2292, %v3537, 0
  %v3546 = vsel %vm2292, %v3539, 0
  %v3548 = vsel %vm2292, %v3541, 0
  %3550 = vmatprep.subr.mxu0 0.0
  %3551 = vmatpush1.xpose.msra.mxu0 %v3546
  %3552 = vmatprep.subr.mxu0 0.0
  %3553 = vmatpush1.xpose.msra.mxu0 %v3548
  %3554 = vmatprep.subr.mxu0 0.0
  %3555 = vmatpush1.xpose.msra.mxu0 0.0
  %3556 = vmatprep.subr.mxu0 0.0
  %3557 = vmatpush1.xpose.msra.mxu0 0.0
  %3558 = vmatprep.subr.mxu0 0.0
  %3559 = vmatpush1.xpose.msra.mxu0 0.0
  %3560 = vmatprep.subr.mxu0 0.0
  %3561 = vmatpush1.xpose.msra.mxu0 0.0
  %3562 = vmatprep.subr.mxu0 0.0
  %3563 = vmatpush1.xpose.msra.mxu0 0.0
  %3564 = vmatprep.subr.mxu0 0.0
  %3565 = vmatpush1.xpose.msra.mxu0 0.0
  %3566 = vmatprep.subr.mxu0 0.0
  %3567 = vmatpush1.xpose.msra.mxu0 0.0
  %3568 = vmatprep.subr.mxu0 0.0
  %3569 = vmatpush1.xpose.msra.mxu0 0.0
  %3570 = vmatprep.subr.mxu0 0.0
  %3571 = vmatpush1.xpose.msra.mxu0 0.0
  %3572 = vmatprep.subr.mxu0 0.0
  %3573 = vmatpush1.xpose.msra.mxu0 0.0
  %3574 = vmatprep.subr.mxu0 0.0
  %3575 = vmatpush1.xpose.msra.mxu0 0.0
  %3576 = vmatprep.subr.mxu0 0.0
  %3577 = vmatpush1.xpose.msra.mxu0 0.0
  %3578 = vmatprep.subr.mxu0 0.0
  %3579 = vmatpush1.xpose.msra.mxu0 0.0
  %3580 = vmatprep.subr.mxu0 0.0
  %3581 = vmatpush1.xpose.msra.mxu0 0.0
  %3582 = vmatprep.subr.mxu0 0.0
  %3583 = vmatpush1.xpose.msra.mxu0 0.0
  %3584 = vmatprep.subr.mxu0 0.0
  %3585 = vmatpush1.xpose.msra.mxu0 0.0
  %3586 = vmatprep.subr.mxu0 0.0
  %3587 = vmatpush1.xpose.msra.mxu0 0.0
  %3588 = vmatprep.subr.mxu0 0.0
  %3589 = vmatpush1.xpose.msra.mxu0 0.0
  %3590 = vmatprep.subr.mxu0 0.0
  %3591 = vmatpush1.xpose.msra.mxu0 0.0
  %3592 = vmatprep.subr.mxu0 0.0
  %3593 = vmatpush1.xpose.msra.mxu0 0.0
  %3594 = vmatprep.subr.mxu0 0.0
  %3595 = vmatpush1.xpose.msra.mxu0 0.0
  %3596 = vmatprep.subr.mxu0 0.0
  %3597 = vmatpush1.xpose.msra.mxu0 0.0
  %3598 = vmatprep.subr.mxu0 0.0
  %3599 = vmatpush1.xpose.msra.mxu0 0.0
  %3600 = vmatprep.subr.mxu0 0.0
  %3601 = vmatpush1.xpose.msra.mxu0 0.0
  %3602 = vmatprep.subr.mxu0 0.0
  %3603 = vmatpush1.xpose.msra.mxu0 0.0
  %3604 = vmatprep.subr.mxu0 0.0
  %3605 = vmatpush1.xpose.msra.mxu0 0.0
  %3606 = vmatprep.subr.mxu0 0.0
  %3607 = vmatpush1.xpose.msra.mxu0 0.0
  %3608 = vmatprep.subr.mxu0 0.0
  %3609 = vmatpush1.xpose.msra.mxu0 0.0
  %3610 = vmatprep.subr.mxu0 0.0
  %3611 = vmatpush1.xpose.msra.mxu0 0.0
  %3612 = vmatprep.subr.mxu0 0.0
  %3613 = vmatpush1.xpose.msra.mxu0 0.0
  %3614 = vmatprep.mubr.f32.mxu0 0.0
  %3615 = vmatmul.mubr.f32.gmra.mrb[0].mxu0 %v3542
  %v3616 = vpop.f32.mrb[0].mxu0
  %v3617 = vadd.f32 %v2111, %v3616
  %v3618 = vpop.f32.mrb[0].mxu0
  %3619 = vmatprep.mubr.f32.mxu0 0.0
  %3620 = vmatmul.mubr.f32.gmra.mrb[0].mxu0 %v3544
  %v3621 = vpop.f32.mrb[0].mxu0
  %v3622 = vadd.f32 %v2112, %v3621
  %v3623 = vpop.f32.mrb[0].mxu0
  %3624 = vdwg.mxu0
  %v3625 = vsel %vm2378, %v3617, -inf
  %3626 = vmax.xlane.f32.xlu0 %v3625
  %v3627 = vpop.xlane.xlu0 %3626
  %v3628 = vsel %vm2378, %v3622, -inf
  %3629 = vmax.xlane.f32.xlu0 %v3628
  %v3630 = vpop.xlane.xlu0 %3629
  %v3631 = vsub.f32 %v3617, %v3627
  %v3632 = vsub.f32 %v3622, %v3630
  %v3633 = vmul.f32 %v3631, 1.442695
  %v3634 = vpow.pop %v3633
  %v3635 = vmul.f32 %v3632, 1.442695
  %v3636 = vpow.pop %v3635
  %v3637 = vsel %vm2378, %v3634, 0.0
  %3638 = vadd.xlane.f32.xlu0 %v3637
  %v3639 = vpop.xlane.xlu0 %3638
  %v3640 = vsel %vm2378, %v3636, 0.0
  %3641 = vadd.xlane.f32.xlu0 %v3640
  %v3642 = vpop.xlane.xlu0 %3641
  %v3643 = vrcp.pop %v3639
  %v3644 = vrcp.pop %v3642
  %v3645 = vmul.f32 %v3634, %v3643
  %v3646 = vmul.f32 %v3636, %v3644
  %3649 = vrot.lane.b32.xlu0 %v3336, 96
  %v3650 = vpop.permute.xlu0 %3649
  %3651 = vrot.lane.b32.xlu0 %v3337, 96
  %v3652 = vpop.permute.xlu0 %3651
  %v3656 = vsel %vm2378, %v3645, 0
  %v3659 = vsel %vm2378, %v3646, 0
  %3661 = vmatprep.subr.mxu0 0.0
  %3662 = vmatpush1.msra.mxu0 %v3650
  %3663 = vmatprep.subr.mxu0 0.0
  %3664 = vmatpush1.msra.mxu0 %v3652
  %3665 = vmatprep.subr.mxu0 0.0
  %3666 = vmatpush1.msra.mxu0 0.0
  %3667 = vmatprep.subr.mxu0 0.0
  %3668 = vmatpush1.msra.mxu0 0.0
  %3669 = vmatprep.subr.mxu0 0.0
  %3670 = vmatpush1.msra.mxu0 0.0
  %3671 = vmatprep.subr.mxu0 0.0
  %3672 = vmatpush1.msra.mxu0 0.0
  %3673 = vmatprep.subr.mxu0 0.0
  %3674 = vmatpush1.msra.mxu0 0.0
  %3675 = vmatprep.subr.mxu0 0.0
  %3676 = vmatpush1.msra.mxu0 0.0
  %3677 = vmatprep.subr.mxu0 0.0
  %3678 = vmatpush1.msra.mxu0 0.0
  %3679 = vmatprep.subr.mxu0 0.0
  %3680 = vmatpush1.msra.mxu0 0.0
  %3681 = vmatprep.subr.mxu0 0.0
  %3682 = vmatpush1.msra.mxu0 0.0
  %3683 = vmatprep.subr.mxu0 0.0
  %3684 = vmatpush1.msra.mxu0 0.0
  %3685 = vmatprep.subr.mxu0 0.0
  %3686 = vmatpush1.msra.mxu0 0.0
  %3687 = vmatprep.subr.mxu0 0.0
  %3688 = vmatpush1.msra.mxu0 0.0
  %3689 = vmatprep.subr.mxu0 0.0
  %3690 = vmatpush1.msra.mxu0 0.0
  %3691 = vmatprep.subr.mxu0 0.0
  %3692 = vmatpush1.msra.mxu0 0.0
  %3693 = vmatprep.subr.mxu0 0.0
  %3694 = vmatpush1.msra.mxu0 0.0
  %3695 = vmatprep.subr.mxu0 0.0
  %3696 = vmatpush1.msra.mxu0 0.0
  %3697 = vmatprep.subr.mxu0 0.0
  %3698 = vmatpush1.msra.mxu0 0.0
  %3699 = vmatprep.subr.mxu0 0.0
  %3700 = vmatpush1.msra.mxu0 0.0
  %3701 = vmatprep.subr.mxu0 0.0
  %3702 = vmatpush1.msra.mxu0 0.0
  %3703 = vmatprep.subr.mxu0 0.0
  %3704 = vmatpush1.msra.mxu0 0.0
  %3705 = vmatprep.subr.mxu0 0.0
  %3706 = vmatpush1.msra.mxu0 0.0
  %3707 = vmatprep.subr.mxu0 0.0
  %3708 = vmatpush1.msra.mxu0 0.0
  %3709 = vmatprep.subr.mxu0 0.0
  %3710 = vmatpush1.msra.mxu0 0.0
  %3711 = vmatprep.subr.mxu0 0.0
  %3712 = vmatpush1.msra.mxu0 0.0
  %3713 = vmatprep.subr.mxu0 0.0
  %3714 = vmatpush1.msra.mxu0 0.0
  %3715 = vmatprep.subr.mxu0 0.0
  %3716 = vmatpush1.msra.mxu0 0.0
  %3717 = vmatprep.subr.mxu0 0.0
  %3718 = vmatpush1.msra.mxu0 0.0
  %3719 = vmatprep.subr.mxu0 0.0
  %3720 = vmatpush1.msra.mxu0 0.0
  %3721 = vmatprep.subr.mxu0 0.0
  %3722 = vmatpush1.msra.mxu0 0.0
  %3723 = vmatprep.subr.mxu0 0.0
  %3724 = vmatpush1.msra.mxu0 0.0
  %3725 = vmatprep.mubr.f32.mxu0 0.0
  %3726 = vmatmul.mubr.f32.gmra.mrb[0].mxu0 %v3656
  %v3727 = vpop.f32.mrb[0].mxu0
  %v3728 = vadd.f32 0.0, %v3727
  %v3729 = vpop.f32.mrb[0].mxu0
  %3730 = vmatprep.mubr.f32.mxu0 0.0
  %3731 = vmatmul.mubr.f32.gmra.mrb[0].mxu0 %v3659
  %v3732 = vpop.f32.mrb[0].mxu0
  %v3733 = vadd.f32 0.0, %v3732
  %v3734 = vpop.f32.mrb[0].mxu0
  %3735 = vdwg.mxu0
  %v3737 = vsel %vm2292, %v3728, 0
  %v3740 = vsel %vm2292, %v3733, 0
  %3742 = vmatprep.subr.mxu0 0.0
  %3743 = vmatpush1.msra.mxu0 %v3330
  %3744 = vmatprep.subr.mxu0 0.0
  %3745 = vmatpush1.msra.mxu0 %v3331
  %3746 = vmatprep.subr.mxu0 0.0
  %3747 = vmatpush1.msra.mxu0 %v3332
  %3748 = vmatprep.subr.mxu0 0.0
  %3749 = vmatpush1.msra.mxu0 %v3333
  %3750 = vmatprep.subr.mxu0 0.0
  %3751 = vmatpush1.msra.mxu0 0.0
  %3752 = vmatprep.subr.mxu0 0.0
  %3753 = vmatpush1.msra.mxu0 0.0
  %3754 = vmatprep.subr.mxu0 0.0
  %3755 = vmatpush1.msra.mxu0 0.0
  %3756 = vmatprep.subr.mxu0 0.0
  %3757 = vmatpush1.msra.mxu0 0.0
  %3758 = vmatprep.subr.mxu0 0.0
  %3759 = vmatpush1.msra.mxu0 0.0
  %3760 = vmatprep.subr.mxu0 0.0
  %3761 = vmatpush1.msra.mxu0 0.0
  %3762 = vmatprep.subr.mxu0 0.0
  %3763 = vmatpush1.msra.mxu0 0.0
  %3764 = vmatprep.subr.mxu0 0.0
  %3765 = vmatpush1.msra.mxu0 0.0
  %3766 = vmatprep.subr.mxu0 0.0
  %3767 = vmatpush1.msra.mxu0 0.0
  %3768 = vmatprep.subr.mxu0 0.0
  %3769 = vmatpush1.msra.mxu0 0.0
  %3770 = vmatprep.subr.mxu0 0.0
  %3771 = vmatpush1.msra.mxu0 0.0
  %3772 = vmatprep.subr.mxu0 0.0
  %3773 = vmatpush1.msra.mxu0 0.0
  %3774 = vmatprep.subr.mxu0 0.0
  %3775 = vmatpush1.msra.mxu0 0.0
  %3776 = vmatprep.subr.mxu0 0.0
  %3777 = vmatpush1.msra.mxu0 0.0
  %3778 = vmatprep.subr.mxu0 0.0
  %3779 = vmatpush1.msra.mxu0 0.0
  %3780 = vmatprep.subr.mxu0 0.0
  %3781 = vmatpush1.msra.mxu0 0.0
  %3782 = vmatprep.subr.mxu0 0.0
  %3783 = vmatpush1.msra.mxu0 0.0
  %3784 = vmatprep.subr.mxu0 0.0
  %3785 = vmatpush1.msra.mxu0 0.0
  %3786 = vmatprep.subr.mxu0 0.0
  %3787 = vmatpush1.msra.mxu0 0.0
  %3788 = vmatprep.subr.mxu0 0.0
  %3789 = vmatpush1.msra.mxu0 0.0
  %3790 = vmatprep.subr.mxu0 0.0
  %3791 = vmatpush1.msra.mxu0 0.0
  %3792 = vmatprep.subr.mxu0 0.0
  %3793 = vmatpush1.msra.mxu0 0.0
  %3794 = vmatprep.subr.mxu0 0.0
  %3795 = vmatpush1.msra.mxu0 0.0
  %3796 = vmatprep.subr.mxu0 0.0
  %3797 = vmatpush1.msra.mxu0 0.0
  %3798 = vmatprep.subr.mxu0 0.0
  %3799 = vmatpush1.msra.mxu0 0.0
  %3800 = vmatprep.subr.mxu0 0.0
  %3801 = vmatpush1.msra.mxu0 0.0
  %3802 = vmatprep.subr.mxu0 0.0
  %3803 = vmatpush1.msra.mxu0 0.0
  %3804 = vmatprep.subr.mxu0 0.0
  %3805 = vmatpush1.msra.mxu0 0.0
  %3806 = vmatprep.mubr.f32.mxu0 0.0
  %3807 = vmatmul.mubr.f32.gmra.mrb[0].mxu0 %v3737
  %v3808 = vpop.f32.mrb[0].mxu0
  %v3809 = vadd.f32 0.0, %v3808
  %v3810 = vpop.f32.mrb[0].mxu0
  %3811 = vmatprep.mubr.f32.mxu0 0.0
  %3812 = vmatmul.mubr.f32.gmra.mrb[0].mxu0 %v3740
  %v3813 = vpop.f32.mrb[0].mxu0
  %v3814 = vadd.f32 0.0, %v3813
  %v3815 = vpop.f32.mrb[0].mxu0
  %3816 = vdwg.mxu0
  %v3818 = vsel %vm2292, %v3526, 0
  %v3821 = vsel %vm2292, %v3531, 0
  %3823 = vmatprep.subr.mxu0 0.0
  %3824 = vmatpush1.msra.mxu0 %v3326
  %3825 = vmatprep.subr.mxu0 0.0
  %3826 = vmatpush1.msra.mxu0 %v3327
  %3827 = vmatprep.subr.mxu0 0.0
  %3828 = vmatpush1.msra.mxu0 %v3328
  %3829 = vmatprep.subr.mxu0 0.0
  %3830 = vmatpush1.msra.mxu0 %v3329
  %3831 = vmatprep.subr.mxu0 0.0
  %3832 = vmatpush1.msra.mxu0 0.0
  %3833 = vmatprep.subr.mxu0 0.0
  %3834 = vmatpush1.msra.mxu0 0.0
  %3835 = vmatprep.subr.mxu0 0.0
  %3836 = vmatpush1.msra.mxu0 0.0
  %3837 = vmatprep.subr.mxu0 0.0
  %3838 = vmatpush1.msra.mxu0 0.0
  %3839 = vmatprep.subr.mxu0 0.0
  %3840 = vmatpush1.msra.mxu0 0.0
  %3841 = vmatprep.subr.mxu0 0.0
  %3842 = vmatpush1.msra.mxu0 0.0
  %3843 = vmatprep.subr.mxu0 0.0
  %3844 = vmatpush1.msra.mxu0 0.0
  %3845 = vmatprep.subr.mxu0 0.0
  %3846 = vmatpush1.msra.mxu0 0.0
  %3847 = vmatprep.subr.mxu0 0.0
  %3848 = vmatpush1.msra.mxu0 0.0
  %3849 = vmatprep.subr.mxu0 0.0
  %3850 = vmatpush1.msra.mxu0 0.0
  %3851 = vmatprep.subr.mxu0 0.0
  %3852 = vmatpush1.msra.mxu0 0.0
  %3853 = vmatprep.subr.mxu0 0.0
  %3854 = vmatpush1.msra.mxu0 0.0
  %3855 = vmatprep.subr.mxu0 0.0
  %3856 = vmatpush1.msra.mxu0 0.0
  %3857 = vmatprep.subr.mxu0 0.0
  %3858 = vmatpush1.msra.mxu0 0.0
  %3859 = vmatprep.subr.mxu0 0.0
  %3860 = vmatpush1.msra.mxu0 0.0
  %3861 = vmatprep.subr.mxu0 0.0
  %3862 = vmatpush1.msra.mxu0 0.0
  %3863 = vmatprep.subr.mxu0 0.0
  %3864 = vmatpush1.msra.mxu0 0.0
  %3865 = vmatprep.subr.mxu0 0.0
  %3866 = vmatpush1.msra.mxu0 0.0
  %3867 = vmatprep.subr.mxu0 0.0
  %3868 = vmatpush1.msra.mxu0 0.0
  %3869 = vmatprep.subr.mxu0 0.0
  %3870 = vmatpush1.msra.mxu0 0.0
  %3871 = vmatprep.subr.mxu0 0.0
  %3872 = vmatpush1.msra.mxu0 0.0
  %3873 = vmatprep.subr.mxu0 0.0
  %3874 = vmatpush1.msra.mxu0 0.0
  %3875 = vmatprep.subr.mxu0 0.0
  %3876 = vmatpush1.msra.mxu0 0.0
  %3877 = vmatprep.subr.mxu0 0.0
  %3878 = vmatpush1.msra.mxu0 0.0
  %3879 = vmatprep.subr.mxu0 0.0
  %3880 = vmatpush1.msra.mxu0 0.0
  %3881 = vmatprep.subr.mxu0 0.0
  %3882 = vmatpush1.msra.mxu0 0.0
  %3883 = vmatprep.subr.mxu0 0.0
  %3884 = vmatpush1.msra.mxu0 0.0
  %3885 = vmatprep.subr.mxu0 0.0
  %3886 = vmatpush1.msra.mxu0 0.0
  %3887 = vmatprep.mubr.f32.mxu0 0.0
  %3888 = vmatmul.mubr.f32.gmra.mrb[0].mxu0 %v3818
  %v3889 = vpop.f32.mrb[0].mxu0
  %v3890 = vadd.f32 %v3809, %v3889
  %v3891 = vpop.f32.mrb[0].mxu0
  %3892 = vmatprep.mubr.f32.mxu0 0.0
  %3893 = vmatmul.mubr.f32.gmra.mrb[0].mxu0 %v3821
  %v3894 = vpop.f32.mrb[0].mxu0
  %v3895 = vadd.f32 %v3814, %v3894
  %v3896 = vpop.f32.mrb[0].mxu0
  %3897 = vdwg.mxu0
  %v3898 = vadd.f32 %v3160, %v3890
  %v3899 = vadd.f32 %v3161, %v3895
  %s3900 = scalar_lea.vmem %s55, 1
  %v3901 = vld [vmem:[%s3900] sm:$0x1]
  %v3903 = vlaneseq
  %v3904 = vshrl.u32 %v3903, 7
  %v3905 = vsub.s32 0, %v3904
  %v3906 = vrot.slane %v3901, %v3905
  %v3908 = vadd.f32 %v3898, %v3906
  %v3909 = vadd.f32 %v3899, %v3906
  %s3910 = scalar_lea.vmem %s57, 1
  %v3911 = vld [vmem:[%s3910] sm:$0x1]
  %s3912 = scalar_lea.vmem %s59, 1
  %v3913 = vld [vmem:[%s3912] sm:$0x1]
  %v3914 = vsel %vm194, %v3908, 0.0
  %3915 = vadd.xlane.f32.xlu0 %v3914
  %v3916 = vpop.xlane.xlu0 %3915
  %v3917 = vsel %vm194, %v3909, 0.0
  %3918 = vadd.xlane.f32.xlu0 %v3917
  %v3919 = vpop.xlane.xlu0 %3918
  %v3920 = vmul.f32 %v3916, %v363
  %v3921 = vmul.f32 %v3919, %v363
  %v3922 = vsub.f32 %v3908, %v3920
  %v3923 = vsub.f32 %v3909, %v3921
  %v3924 = vmul.f32 %v3922, %v3922
  %v3925 = vmul.f32 %v3923, %v3923
  %v3926 = vsel %vm194, %v3924, 0.0
  %3927 = vadd.xlane.f32.xlu0 %v3926
  %v3928 = vpop.xlane.xlu0 %3927
  %v3929 = vsel %vm194, %v3925, 0.0
  %3930 = vadd.xlane.f32.xlu0 %v3929
  %v3931 = vpop.xlane.xlu0 %3930
  %v3932 = vmul.f32 %v3928, %v363
  %v3933 = vmul.f32 %v3931, %v363
  %v3934 = vadd.f32 %v3932, 1e-05
  %v3935 = vadd.f32 %v3933, 1e-05
  %v3936 = vrsqrt.pop %v3934
  %v3937 = vrsqrt.pop %v3935
  %v3938 = vmul.f32 %v3922, %v3936
  %v3939 = vmul.f32 %v3923, %v3937
  %v3941 = vlaneseq
  %v3942 = vshrl.u32 %v3941, 7
  %v3943 = vsub.s32 0, %v3942
  %v3944 = vrot.slane %v3911, %v3943
  %v3946 = vmul.f32 %v3938, %v3944
  %v3947 = vmul.f32 %v3939, %v3944
  %v3949 = vlaneseq
  %v3950 = vshrl.u32 %v3949, 7
  %v3951 = vsub.s32 0, %v3950
  %v3952 = vrot.slane %v3913, %v3951
  %v3954 = vadd.f32 %v3946, %v3952
  %v3955 = vadd.f32 %v3947, %v3952
  %s3956 = scalar_lea.vmem %s61, 128
  %v3957 = vld [vmem:[%s3956] sm:$0xff]
  %v3958 = vld [vmem:[%s3956 + $0x8] sm:$0xff]
  %v3959 = vld [vmem:[%s3956 + $0x10] sm:$0xff]
  %v3960 = vld [vmem:[%s3956 + $0x18] sm:$0xff]
  %v3961 = vld [vmem:[%s3956 + $0x20] sm:$0xff]
  %v3962 = vld [vmem:[%s3956 + $0x28] sm:$0xff]
  %v3963 = vld [vmem:[%s3956 + $0x30] sm:$0xff]
  %v3964 = vld [vmem:[%s3956 + $0x38] sm:$0xff]
  %v3965 = vld [vmem:[%s3956 + $0x40] sm:$0xff]
  %v3966 = vld [vmem:[%s3956 + $0x48] sm:$0xff]
  %v3967 = vld [vmem:[%s3956 + $0x50] sm:$0xff]
  %v3968 = vld [vmem:[%s3956 + $0x58] sm:$0xff]
  %v3969 = vld [vmem:[%s3956 + $0x60] sm:$0xff]
  %v3970 = vld [vmem:[%s3956 + $0x68] sm:$0xff]
  %v3971 = vld [vmem:[%s3956 + $0x70] sm:$0xff]
  %v3972 = vld [vmem:[%s3956 + $0x78] sm:$0xff]
  %s3973 = scalar_lea.vmem %s63, 2
  %v3974 = vld [vmem:[%s3973] sm:$0x3]
  %v3976 = vlaneseq
  %v3977 = vshrl.u32 %v3976, 7
  %v3978 = vsub.s32 0, %v3977
  %v3979 = vrot.slane %v3974, %v3978
  %v3980 = vlaneseq
  %v3981 = vshrl.u32 %v3980, 7
  %v3982 = vsub.s32 1, %v3981
  %v3983 = vrot.slane %v3974, %v3982
  %v3987 = vsel %vm194, %v3954, 0
  %v3990 = vsel %vm194, %v3955, 0
  %3992 = vmatprep.subr.mxu0 %v3958
  %3993 = vmatpush1.msra.mxu0 %v3957
  %3994 = vmatprep.subr.mxu0 %v3960
  %3995 = vmatpush1.msra.mxu0 %v3959
  %3996 = vmatprep.subr.mxu0 %v3962
  %3997 = vmatpush1.msra.mxu0 %v3961
  %3998 = vmatprep.subr.mxu0 %v3964
  %3999 = vmatpush1.msra.mxu0 %v3963
  %4000 = vmatprep.subr.mxu0 %v3966
  %4001 = vmatpush1.msra.mxu0 %v3965
  %4002 = vmatprep.subr.mxu0 %v3968
  %4003 = vmatpush1.msra.mxu0 %v3967
  %4004 = vmatprep.subr.mxu0 %v3970
  %4005 = vmatpush1.msra.mxu0 %v3969
  %4006 = vmatprep.subr.mxu0 %v3972
  %4007 = vmatpush1.msra.mxu0 %v3971
  %4008 = vmatprep.subr.mxu0 0.0
  %4009 = vmatpush1.msra.mxu0 0.0
  %4010 = vmatprep.subr.mxu0 0.0
  %4011 = vmatpush1.msra.mxu0 0.0
  %4012 = vmatprep.subr.mxu0 0.0
  %4013 = vmatpush1.msra.mxu0 0.0
  %4014 = vmatprep.subr.mxu0 0.0
  %4015 = vmatpush1.msra.mxu0 0.0
  %4016 = vmatprep.subr.mxu0 0.0
  %4017 = vmatpush1.msra.mxu0 0.0
  %4018 = vmatprep.subr.mxu0 0.0
  %4019 = vmatpush1.msra.mxu0 0.0
  %4020 = vmatprep.subr.mxu0 0.0
  %4021 = vmatpush1.msra.mxu0 0.0
  %4022 = vmatprep.subr.mxu0 0.0
  %4023 = vmatpush1.msra.mxu0 0.0
  %4024 = vmatprep.subr.mxu0 0.0
  %4025 = vmatpush1.msra.mxu0 0.0
  %4026 = vmatprep.subr.mxu0 0.0
  %4027 = vmatpush1.msra.mxu0 0.0
  %4028 = vmatprep.subr.mxu0 0.0
  %4029 = vmatpush1.msra.mxu0 0.0
  %4030 = vmatprep.subr.mxu0 0.0
  %4031 = vmatpush1.msra.mxu0 0.0
  %4032 = vmatprep.subr.mxu0 0.0
  %4033 = vmatpush1.msra.mxu0 0.0
  %4034 = vmatprep.subr.mxu0 0.0
  %4035 = vmatpush1.msra.mxu0 0.0
  %4036 = vmatprep.subr.mxu0 0.0
  %4037 = vmatpush1.msra.mxu0 0.0
  %4038 = vmatprep.subr.mxu0 0.0
  %4039 = vmatpush1.msra.mxu0 0.0
  %4040 = vmatprep.subr.mxu0 0.0
  %4041 = vmatpush1.msra.mxu0 0.0
  %4042 = vmatprep.subr.mxu0 0.0
  %4043 = vmatpush1.msra.mxu0 0.0
  %4044 = vmatprep.subr.mxu0 0.0
  %4045 = vmatpush1.msra.mxu0 0.0
  %4046 = vmatprep.subr.mxu0 0.0
  %4047 = vmatpush1.msra.mxu0 0.0
  %4048 = vmatprep.subr.mxu0 0.0
  %4049 = vmatpush1.msra.mxu0 0.0
  %4050 = vmatprep.subr.mxu0 0.0
  %4051 = vmatpush1.msra.mxu0 0.0
  %4052 = vmatprep.subr.mxu0 0.0
  %4053 = vmatpush1.msra.mxu0 0.0
  %4054 = vmatprep.subr.mxu0 0.0
  %4055 = vmatpush1.msra.mxu0 0.0
  %4056 = vmatprep.mubr.f32.mxu0 0.0
  %4057 = vmatmul.mubr.f32.gmra.mrb[0].mxu0 %v3987
  %v4058 = vpop.f32.mrb[0].mxu0
  %v4059 = vadd.f32 %v3979, %v4058
  %v4060 = vpop.f32.mrb[0].mxu0
  %v4061 = vadd.f32 %v3983, %v4060
  %4062 = vmatprep.mubr.f32.mxu0 0.0
  %4063 = vmatmul.mubr.f32.gmra.mrb[0].mxu0 %v3990
  %v4064 = vpop.f32.mrb[0].mxu0
  %v4065 = vadd.f32 %v3979, %v4064
  %v4066 = vpop.f32.mrb[0].mxu0
  %v4067 = vadd.f32 %v3983, %v4066
  %4068 = vdwg.mxu0
  %v4069 = vmul.f32 %v4059, 1.702
  %v4070 = vmul.f32 %v4061, 1.702
  %v4071 = vmul.f32 %v4065, 1.702
  %v4072 = vmul.f32 %v4067, 1.702
  %v4073 = vxor.u32 %v4069, 2147483648
  %v4074 = vxor.u32 %v4070, 2147483648
  %v4075 = vxor.u32 %v4071, 2147483648
  %v4076 = vxor.u32 %v4072, 2147483648
  %v4077 = vmul.f32 %v4073, 1.442695
  %v4078 = vpow.pop %v4077
  %v4079 = vmul.f32 %v4074, 1.442695
  %v4080 = vpow.pop %v4079
  %v4081 = vmul.f32 %v4075, 1.442695
  %v4082 = vpow.pop %v4081
  %v4083 = vmul.f32 %v4076, 1.442695
  %v4084 = vpow.pop %v4083
  %v4085 = vadd.f32 %v4078, 1.0
  %v4086 = vadd.f32 %v4080, 1.0
  %v4087 = vadd.f32 %v4082, 1.0
  %v4088 = vadd.f32 %v4084, 1.0
  %v4089 = vrcp.pop %v4085
  %v4090 = vmul.f32 1.0, %v4089
  %v4091 = vrcp.pop %v4086
  %v4092 = vmul.f32 1.0, %v4091
  %v4093 = vrcp.pop %v4087
  %v4094 = vmul.f32 1.0, %v4093
  %v4095 = vrcp.pop %v4088
  %v4096 = vmul.f32 1.0, %v4095
  %v4097 = vmul.f32 %v4059, %v4090
  %v4098 = vmul.f32 %v4061, %v4092
  %v4099 = vmul.f32 %v4065, %v4094
  %v4100 = vmul.f32 %v4067, %v4096
  %s4101 = scalar_lea.vmem %s65, 256
  %v4102 = vld [vmem:[%s4101] sm:$0xff]
  %v4103 = vld [vmem:[%s4101 + $0x8] sm:$0xff]
  %v4104 = vld [vmem:[%s4101 + $0x10] sm:$0xff]
  %v4105 = vld [vmem:[%s4101 + $0x18] sm:$0xff]
  %v4106 = vld [vmem:[%s4101 + $0x20] sm:$0xff]
  %v4107 = vld [vmem:[%s4101 + $0x28] sm:$0xff]
  %v4108 = vld [vmem:[%s4101 + $0x30] sm:$0xff]
  %v4109 = vld [vmem:[%s4101 + $0x38] sm:$0xff]
  %v4110 = vld [vmem:[%s4101 + $0x40] sm:$0xff]
  %v4111 = vld [vmem:[%s4101 + $0x48] sm:$0xff]
  %v4112 = vld [vmem:[%s4101 + $0x50] sm:$0xff]
  %v4113 = vld [vmem:[%s4101 + $0x58] sm:$0xff]
  %v4114 = vld [vmem:[%s4101 + $0x60] sm:$0xff]
  %v4115 = vld [vmem:[%s4101 + $0x68] sm:$0xff]
  %v4116 = vld [vmem:[%s4101 + $0x70] sm:$0xff]
  %v4117 = vld [vmem:[%s4101 + $0x78] sm:$0xff]
  %v4118 = vld [vmem:[%s4101 + $0x80] sm:$0xff]
  %v4119 = vld [vmem:[%s4101 + $0x88] sm:$0xff]
  %v4120 = vld [vmem:[%s4101 + $0x90] sm:$0xff]
  %v4121 = vld [vmem:[%s4101 + $0x98] sm:$0xff]
  %v4122 = vld [vmem:[%s4101 + $0xa0] sm:$0xff]
  %v4123 = vld [vmem:[%s4101 + $0xa8] sm:$0xff]
  %v4124 = vld [vmem:[%s4101 + $0xb0] sm:$0xff]
  %v4125 = vld [vmem:[%s4101 + $0xb8] sm:$0xff]
  %v4126 = vld [vmem:[%s4101 + $0xc0] sm:$0xff]
  %v4127 = vld [vmem:[%s4101 + $0xc8] sm:$0xff]
  %v4128 = vld [vmem:[%s4101 + $0xd0] sm:$0xff]
  %v4129 = vld [vmem:[%s4101 + $0xd8] sm:$0xff]
  %v4130 = vld [vmem:[%s4101 + $0xe0] sm:$0xff]
  %v4131 = vld [vmem:[%s4101 + $0xe8] sm:$0xff]
  %v4132 = vld [vmem:[%s4101 + $0xf0] sm:$0xff]
  %v4133 = vld [vmem:[%s4101 + $0xf8] sm:$0xff]
  %4134 = vmatprep.subr.mxu0 0.0
  %4135 = vmatpush1.msra.mxu0 %v4102
  %4136 = vmatprep.subr.mxu0 0.0
  %4137 = vmatpush1.msra.mxu0 %v4103
  %4138 = vmatprep.subr.mxu0 0.0
  %4139 = vmatpush1.msra.mxu0 %v4104
  %4140 = vmatprep.subr.mxu0 0.0
  %4141 = vmatpush1.msra.mxu0 %v4105
  %4142 = vmatprep.subr.mxu0 0.0
  %4143 = vmatpush1.msra.mxu0 %v4106
  %4144 = vmatprep.subr.mxu0 0.0
  %4145 = vmatpush1.msra.mxu0 %v4107
  %4146 = vmatprep.subr.mxu0 0.0
  %4147 = vmatpush1.msra.mxu0 %v4108
  %4148 = vmatprep.subr.mxu0 0.0
  %4149 = vmatpush1.msra.mxu0 %v4109
  %4150 = vmatprep.subr.mxu0 0.0
  %4151 = vmatpush1.msra.mxu0 %v4110
  %4152 = vmatprep.subr.mxu0 0.0
  %4153 = vmatpush1.msra.mxu0 %v4111
  %4154 = vmatprep.subr.mxu0 0.0
  %4155 = vmatpush1.msra.mxu0 %v4112
  %4156 = vmatprep.subr.mxu0 0.0
  %4157 = vmatpush1.msra.mxu0 %v4113
  %4158 = vmatprep.subr.mxu0 0.0
  %4159 = vmatpush1.msra.mxu0 %v4114
  %4160 = vmatprep.subr.mxu0 0.0
  %4161 = vmatpush1.msra.mxu0 %v4115
  %4162 = vmatprep.subr.mxu0 0.0
  %4163 = vmatpush1.msra.mxu0 %v4116
  %4164 = vmatprep.subr.mxu0 0.0
  %4165 = vmatpush1.msra.mxu0 %v4117
  %4166 = vmatprep.subr.mxu0 0.0
  %4167 = vmatpush1.msra.mxu0 %v4118
  %4168 = vmatprep.subr.mxu0 0.0
  %4169 = vmatpush1.msra.mxu0 %v4119
  %4170 = vmatprep.subr.mxu0 0.0
  %4171 = vmatpush1.msra.mxu0 %v4120
  %4172 = vmatprep.subr.mxu0 0.0
  %4173 = vmatpush1.msra.mxu0 %v4121
  %4174 = vmatprep.subr.mxu0 0.0
  %4175 = vmatpush1.msra.mxu0 %v4122
  %4176 = vmatprep.subr.mxu0 0.0
  %4177 = vmatpush1.msra.mxu0 %v4123
  %4178 = vmatprep.subr.mxu0 0.0
  %4179 = vmatpush1.msra.mxu0 %v4124
  %4180 = vmatprep.subr.mxu0 0.0
  %4181 = vmatpush1.msra.mxu0 %v4125
  %4182 = vmatprep.subr.mxu0 0.0
  %4183 = vmatpush1.msra.mxu0 %v4126
  %4184 = vmatprep.subr.mxu0 0.0
  %4185 = vmatpush1.msra.mxu0 %v4127
  %4186 = vmatprep.subr.mxu0 0.0
  %4187 = vmatpush1.msra.mxu0 %v4128
  %4188 = vmatprep.subr.mxu0 0.0
  %4189 = vmatpush1.msra.mxu0 %v4129
  %4190 = vmatprep.subr.mxu0 0.0
  %4191 = vmatpush1.msra.mxu0 %v4130
  %4192 = vmatprep.subr.mxu0 0.0
  %4193 = vmatpush1.msra.mxu0 %v4131
  %4194 = vmatprep.subr.mxu0 0.0
  %4195 = vmatpush1.msra.mxu0 %v4132
  %4196 = vmatprep.subr.mxu0 0.0
  %4197 = vmatpush1.msra.mxu0 %v4133
  %4198 = vmatprep.mubr.f32.mxu0 %v4098
  %4199 = vmatmul.mubr.f32.gmra.mrb[0].mxu0 %v4097
  %v4200 = vpop.f32.mrb[0].mxu0
  %v4201 = vadd.f32 0.0, %v4200
  %v4202 = vpop.f32.mrb[0].mxu0
  %4203 = vmatprep.mubr.f32.mxu0 %v4100
  %4204 = vmatmul.mubr.f32.gmra.mrb[0].mxu0 %v4099
  %v4205 = vpop.f32.mrb[0].mxu0
  %v4206 = vadd.f32 0.0, %v4205
  %v4207 = vpop.f32.mrb[0].mxu0
  %4208 = vdwg.mxu0
  %v4209 = vadd.f32 %v3908, %v4201
  %v4210 = vadd.f32 %v3909, %v4206
  %s4211 = scalar_lea.vmem %s67, 1
  %v4212 = vld [vmem:[%s4211] sm:$0x1]
  %v4214 = vlaneseq
  %v4215 = vshrl.u32 %v4214, 7
  %v4216 = vsub.s32 0, %v4215
  %v4217 = vrot.slane %v4212, %v4216
  %v4219 = vadd.f32 %v4209, %v4217
  %v4220 = vadd.f32 %v4210, %v4217
  %v4221 = vld [vmem:[%s71] sm:$0x1]
  %v4222 = vld [vmem:[%s73] sm:$0x1]
  %v4223 = vsel %vm194, %v4219, 0.0
  %4224 = vadd.xlane.f32.xlu0 %v4223
  %v4225 = vpop.xlane.xlu0 %4224
  %v4226 = vsel %vm194, %v4220, 0.0
  %4227 = vadd.xlane.f32.xlu0 %v4226
  %v4228 = vpop.xlane.xlu0 %4227
  %v4229 = vmul.f32 %v4225, %v363
  %v4230 = vmul.f32 %v4228, %v363
  %v4231 = vsub.f32 %v4219, %v4229
  %v4232 = vsub.f32 %v4220, %v4230
  %v4233 = vmul.f32 %v4231, %v4231
  %v4234 = vmul.f32 %v4232, %v4232
  %v4235 = vsel %vm194, %v4233, 0.0
  %4236 = vadd.xlane.f32.xlu0 %v4235
  %v4237 = vpop.xlane.xlu0 %4236
  %v4238 = vsel %vm194, %v4234, 0.0
  %4239 = vadd.xlane.f32.xlu0 %v4238
  %v4240 = vpop.xlane.xlu0 %4239
  %v4241 = vmul.f32 %v4237, %v363
  %v4242 = vmul.f32 %v4240, %v363
  %v4243 = vadd.f32 %v4241, 1e-05
  %v4244 = vadd.f32 %v4242, 1e-05
  %v4245 = vrsqrt.pop %v4243
  %v4246 = vrsqrt.pop %v4244
  %v4247 = vmul.f32 %v4231, %v4245
  %v4248 = vmul.f32 %v4232, %v4246
  %v4250 = vlaneseq
  %v4251 = vshrl.u32 %v4250, 7
  %v4252 = vsub.s32 0, %v4251
  %v4253 = vrot.slane %v4221, %v4252
  %v4255 = vmul.f32 %v4247, %v4253
  %v4256 = vmul.f32 %v4248, %v4253
  %v4258 = vlaneseq
  %v4259 = vshrl.u32 %v4258, 7
  %v4260 = vsub.s32 0, %v4259
  %v4261 = vrot.slane %v4222, %v4260
  %v4263 = vadd.f32 %v4255, %v4261
  %v4264 = vadd.f32 %v4256, %v4261
  %v4265 = vld [vmem:[%s75] sm:$0x3]
  %v4267 = vsel %vm2378, %v4265, 0
  %4269 = vmatprep.subr.mxu0 0.0
  %4270 = vmatpush1.msra.mxu0 %v4263
  %4271 = vmatprep.subr.mxu0 0.0
  %4272 = vmatpush1.msra.mxu0 %v4264
  %4273 = vmatprep.subr.mxu0 0.0
  %4274 = vmatpush1.msra.mxu0 0.0
  %4275 = vmatprep.subr.mxu0 0.0
  %4276 = vmatpush1.msra.mxu0 0.0
  %4277 = vmatprep.subr.mxu0 0.0
  %4278 = vmatpush1.msra.mxu0 0.0
  %4279 = vmatprep.subr.mxu0 0.0
  %4280 = vmatpush1.msra.mxu0 0.0
  %4281 = vmatprep.subr.mxu0 0.0
  %4282 = vmatpush1.msra.mxu0 0.0
  %4283 = vmatprep.subr.mxu0 0.0
  %4284 = vmatpush1.msra.mxu0 0.0
  %4285 = vmatprep.subr.mxu0 0.0
  %4286 = vmatpush1.msra.mxu0 0.0
  %4287 = vmatprep.subr.mxu0 0.0
  %4288 = vmatpush1.msra.mxu0 0.0
  %4289 = vmatprep.subr.mxu0 0.0
  %4290 = vmatpush1.msra.mxu0 0.0
  %4291 = vmatprep.subr.mxu0 0.0
  %4292 = vmatpush1.msra.mxu0 0.0
  %4293 = vmatprep.subr.mxu0 0.0
  %4294 = vmatpush1.msra.mxu0 0.0
  %4295 = vmatprep.subr.mxu0 0.0
  %4296 = vmatpush1.msra.mxu0 0.0
  %4297 = vmatprep.subr.mxu0 0.0
  %4298 = vmatpush1.msra.mxu0 0.0
  %4299 = vmatprep.subr.mxu0 0.0
  %4300 = vmatpush1.msra.mxu0 0.0
  %4301 = vmatprep.subr.mxu0 0.0
  %4302 = vmatpush1.msra.mxu0 0.0
  %4303 = vmatprep.subr.mxu0 0.0
  %4304 = vmatpush1.msra.mxu0 0.0
  %4305 = vmatprep.subr.mxu0 0.0
  %4306 = vmatpush1.msra.mxu0 0.0
  %4307 = vmatprep.subr.mxu0 0.0
  %4308 = vmatpush1.msra.mxu0 0.0
  %4309 = vmatprep.subr.mxu0 0.0
  %4310 = vmatpush1.msra.mxu0 0.0
  %4311 = vmatprep.subr.mxu0 0.0
  %4312 = vmatpush1.msra.mxu0 0.0
  %4313 = vmatprep.subr.mxu0 0.0
  %4314 = vmatpush1.msra.mxu0 0.0
  %4315 = vmatprep.subr.mxu0 0.0
  %4316 = vmatpush1.msra.mxu0 0.0
  %4317 = vmatprep.subr.mxu0 0.0
  %4318 = vmatpush1.msra.mxu0 0.0
  %4319 = vmatprep.subr.mxu0 0.0
  %4320 = vmatpush1.msra.mxu0 0.0
  %4321 = vmatprep.subr.mxu0 0.0
  %4322 = vmatpush1.msra.mxu0 0.0
  %4323 = vmatprep.subr.mxu0 0.0
  %4324 = vmatpush1.msra.mxu0 0.0
  %4325 = vmatprep.subr.mxu0 0.0
  %4326 = vmatpush1.msra.mxu0 0.0
  %4327 = vmatprep.subr.mxu0 0.0
  %4328 = vmatpush1.msra.mxu0 0.0
  %4329 = vmatprep.subr.mxu0 0.0
  %4330 = vmatpush1.msra.mxu0 0.0
  %4331 = vmatprep.subr.mxu0 0.0
  %4332 = vmatpush1.msra.mxu0 0.0
  %4333 = vmatprep.mubr.f32.mxu0 0.0
  %4334 = vmatmul.mubr.f32.gmra.mrb[0].mxu0 %v4267
  %v4335 = vpop.f32.mrb[0].mxu0
  %v4336 = vadd.f32 0.0, %v4335
  %v4337 = vpop.f32.mrb[0].mxu0
  %4338 = vdwg.mxu0
  %v4339 = vld [vmem:[%s77] sm:$0xff]
  %v4340 = vld [vmem:[%s77 + $0x8] sm:$0xff]
  %v4341 = vld [vmem:[%s77 + $0x10] sm:$0xff]
  %v4342 = vld [vmem:[%s77 + $0x18] sm:$0xff]
  %v4343 = vld [vmem:[%s77 + $0x20] sm:$0xff]
  %v4344 = vld [vmem:[%s77 + $0x28] sm:$0xff]
  %v4345 = vld [vmem:[%s77 + $0x30] sm:$0xff]
  %v4346 = vld [vmem:[%s77 + $0x38] sm:$0xff]
  %v4348 = vsel %vm194, %v4336, 0
  %4350 = vmatprep.subr.mxu0 0.0
  %4351 = vmatpush1.msra.mxu0 %v4339
  %4352 = vmatprep.subr.mxu0 0.0
  %4353 = vmatpush1.msra.mxu0 %v4340
  %4354 = vmatprep.subr.mxu0 0.0
  %4355 = vmatpush1.msra.mxu0 %v4341
  %4356 = vmatprep.subr.mxu0 0.0
  %4357 = vmatpush1.msra.mxu0 %v4342
  %4358 = vmatprep.subr.mxu0 0.0
  %4359 = vmatpush1.msra.mxu0 %v4343
  %4360 = vmatprep.subr.mxu0 0.0
  %4361 = vmatpush1.msra.mxu0 %v4344
  %4362 = vmatprep.subr.mxu0 0.0
  %4363 = vmatpush1.msra.mxu0 %v4345
  %4364 = vmatprep.subr.mxu0 0.0
  %4365 = vmatpush1.msra.mxu0 %v4346
  %4366 = vmatprep.subr.mxu0 0.0
  %4367 = vmatpush1.msra.mxu0 0.0
  %4368 = vmatprep.subr.mxu0 0.0
  %4369 = vmatpush1.msra.mxu0 0.0
  %4370 = vmatprep.subr.mxu0 0.0
  %4371 = vmatpush1.msra.mxu0 0.0
  %4372 = vmatprep.subr.mxu0 0.0
  %4373 = vmatpush1.msra.mxu0 0.0
  %4374 = vmatprep.subr.mxu0 0.0
  %4375 = vmatpush1.msra.mxu0 0.0
  %4376 = vmatprep.subr.mxu0 0.0
  %4377 = vmatpush1.msra.mxu0 0.0
  %4378 = vmatprep.subr.mxu0 0.0
  %4379 = vmatpush1.msra.mxu0 0.0
  %4380 = vmatprep.subr.mxu0 0.0
  %4381 = vmatpush1.msra.mxu0 0.0
  %4382 = vmatprep.subr.mxu0 0.0
  %4383 = vmatpush1.msra.mxu0 0.0
  %4384 = vmatprep.subr.mxu0 0.0
  %4385 = vmatpush1.msra.mxu0 0.0
  %4386 = vmatprep.subr.mxu0 0.0
  %4387 = vmatpush1.msra.mxu0 0.0
  %4388 = vmatprep.subr.mxu0 0.0
  %4389 = vmatpush1.msra.mxu0 0.0
  %4390 = vmatprep.subr.mxu0 0.0
  %4391 = vmatpush1.msra.mxu0 0.0
  %4392 = vmatprep.subr.mxu0 0.0
  %4393 = vmatpush1.msra.mxu0 0.0
  %4394 = vmatprep.subr.mxu0 0.0
  %4395 = vmatpush1.msra.mxu0 0.0
  %4396 = vmatprep.subr.mxu0 0.0
  %4397 = vmatpush1.msra.mxu0 0.0
  %4398 = vmatprep.subr.mxu0 0.0
  %4399 = vmatpush1.msra.mxu0 0.0
  %4400 = vmatprep.subr.mxu0 0.0
  %4401 = vmatpush1.msra.mxu0 0.0
  %4402 = vmatprep.subr.mxu0 0.0
  %4403 = vmatpush1.msra.mxu0 0.0
  %4404 = vmatprep.subr.mxu0 0.0
  %4405 = vmatpush1.msra.mxu0 0.0
  %4406 = vmatprep.subr.mxu0 0.0
  %4407 = vmatpush1.msra.mxu0 0.0
  %4408 = vmatprep.subr.mxu0 0.0
  %4409 = vmatpush1.msra.mxu0 0.0
  %4410 = vmatprep.subr.mxu0 0.0
  %4411 = vmatpush1.msra.mxu0 0.0
  %4412 = vmatprep.subr.mxu0 0.0
  %4413 = vmatpush1.msra.mxu0 0.0
  %4414 = vmatprep.mubr.f32.mxu0 0.0
  %4415 = vmatmul.mubr.f32.gmra.mrb[0].mxu0 %v4348
  %v4416 = vpop.f32.mrb[0].mxu0
  %v4417 = vadd.f32 0.0, %v4416
  %v4418 = vpop.f32.mrb[0].mxu0
  %4419 = vdwg.mxu0
  %v4420 = vmul.f32 %v2106, %v2106
  %vm4421 = vcmask 254976
  %v4422 = vsel %vm4421, %v4420, 0.0
  %4423 = vadd.xlane.f32.xlu0 %v4422
  %v4424 = vpop.xlane.xlu0 %4423
  %v4425 = vrsqrt.pop %v4424
  %v4426 = vmul.f32 %v2106, %v4425
  %v4427 = vmul.f32 %v4417, %v4417
  %v4428 = vsel %vm4421, %v4427, 0.0
  %4429 = vadd.xlane.f32.xlu0 %v4428
  %v4430 = vpop.xlane.xlu0 %4429
  %v4431 = vrsqrt.pop %v4430
  %v4432 = vmul.f32 %v4417, %v4431
  %v4434 = vsel %vm2292, %v4426, 0
  %v4437 = vsel %vm2292, %v4432, 0
  %4439 = vmatprep.subr.mxu0 0.0
  %4440 = vmatpush1.xpose.msra.mxu0 %v4437
  %4441 = vmatprep.subr.mxu0 0.0
  %4442 = vmatpush1.xpose.msra.mxu0 0.0
  %4443 = vmatprep.subr.mxu0 0.0
  %4444 = vmatpush1.xpose.msra.mxu0 0.0
  %4445 = vmatprep.subr.mxu0 0.0
  %4446 = vmatpush1.xpose.msra.mxu0 0.0
  %4447 = vmatprep.subr.mxu0 0.0
  %4448 = vmatpush1.xpose.msra.mxu0 0.0
  %4449 = vmatprep.subr.mxu0 0.0
  %4450 = vmatpush1.xpose.msra.mxu0 0.0
  %4451 = vmatprep.subr.mxu0 0.0
  %4452 = vmatpush1.xpose.msra.mxu0 0.0
  %4453 = vmatprep.subr.mxu0 0.0
  %4454 = vmatpush1.xpose.msra.mxu0 0.0
  %4455 = vmatprep.subr.mxu0 0.0
  %4456 = vmatpush1.xpose.msra.mxu0 0.0
  %4457 = vmatprep.subr.mxu0 0.0
  %4458 = vmatpush1.xpose.msra.mxu0 0.0
  %4459 = vmatprep.subr.mxu0 0.0
  %4460 = vmatpush1.xpose.msra.mxu0 0.0
  %4461 = vmatprep.subr.mxu0 0.0
  %4462 = vmatpush1.xpose.msra.mxu0 0.0
  %4463 = vmatprep.subr.mxu0 0.0
  %4464 = vmatpush1.xpose.msra.mxu0 0.0
  %4465 = vmatprep.subr.mxu0 0.0
  %4466 = vmatpush1.xpose.msra.mxu0 0.0
  %4467 = vmatprep.subr.mxu0 0.0
  %4468 = vmatpush1.xpose.msra.mxu0 0.0
  %4469 = vmatprep.subr.mxu0 0.0
  %4470 = vmatpush1.xpose.msra.mxu0 0.0
  %4471 = vmatprep.subr.mxu0 0.0
  %4472 = vmatpush1.xpose.msra.mxu0 0.0
  %4473 = vmatprep.subr.mxu0 0.0
  %4474 = vmatpush1.xpose.msra.mxu0 0.0
  %4475 = vmatprep.subr.mxu0 0.0
  %4476 = vmatpush1.xpose.msra.mxu0 0.0
  %4477 = vmatprep.subr.mxu0 0.0
  %4478 = vmatpush1.xpose.msra.mxu0 0.0
  %4479 = vmatprep.subr.mxu0 0.0
  %4480 = vmatpush1.xpose.msra.mxu0 0.0
  %4481 = vmatprep.subr.mxu0 0.0
  %4482 = vmatpush1.xpose.msra.mxu0 0.0
  %4483 = vmatprep.subr.mxu0 0.0
  %4484 = vmatpush1.xpose.msra.mxu0 0.0
  %4485 = vmatprep.subr.mxu0 0.0
  %4486 = vmatpush1.xpose.msra.mxu0 0.0
  %4487 = vmatprep.subr.mxu0 0.0
  %4488 = vmatpush1.xpose.msra.mxu0 0.0
  %4489 = vmatprep.subr.mxu0 0.0
  %4490 = vmatpush1.xpose.msra.mxu0 0.0
  %4491 = vmatprep.subr.mxu0 0.0
  %4492 = vmatpush1.xpose.msra.mxu0 0.0
  %4493 = vmatprep.subr.mxu0 0.0
  %4494 = vmatpush1.xpose.msra.mxu0 0.0
  %4495 = vmatprep.subr.mxu0 0.0
  %4496 = vmatpush1.xpose.msra.mxu0 0.0
  %4497 = vmatprep.subr.mxu0 0.0
  %4498 = vmatpush1.xpose.msra.mxu0 0.0
  %4499 = vmatprep.subr.mxu0 0.0
  %4500 = vmatpush1.xpose.msra.mxu0 0.0
  %4501 = vmatprep.subr.mxu0 0.0
  %4502 = vmatpush1.xpose.msra.mxu0 0.0
  %4503 = vmatprep.mubr.f32.mxu0 0.0
  %4504 = vmatmul.mubr.f32.gmra.mrb[0].mxu0 %v4434
  %v4505 = vpop.f32.mrb[0].mxu0
  %v4506 = vadd.f32 0.0, %v4505
  %v4507 = vpop.f32.mrb[0].mxu0
  %4508 = vdwg.mxu0
  %v4509 = vld [vmem:[#allocation4] sm:$0x1]
  %v4510 = vmul.f32 %v4509, 1.442695
  %v4511 = vpow.pop %v4510
  %v4513 = vlaneseq
  %v4514 = vshrl.u32 %v4513, 7
  %v4515 = vsub.s32 0, %v4514
  %v4516 = vrot.slane %v4511, %v4515
  %4517 = vset.pattern.permute.xlu0 0
  %4518 = vperm.xlu0 %4517, %v4516
  %v4519 = vpop.permute.xlu0 %4518
  %v4521 = vmul.f32 %v4519, %v4506
  %vm4522 = vcmask 9216
  %4523 = vst.msk [vmem:[%s81] sm:$0x3] %vm4522, %v4521
  // Predicated region
  $region162: #{supfad_forward.1} parent=0 // pred_check
    _
  $region163: #{supfad_forward.1} parent=0 // pred_check_branch
    %4525 = sbr.rel (0) target = $region165
  $region164: #{supfad_forward.1} parent=0 // pred_region
    _
  $region165: #{supfad_forward.1} parent=0 // pred_fallthru
    _
  // Predicated region
  $region166: #{supfad_forward.1} parent=0 // pred_check
    _
  $region167: #{supfad_forward.1} parent=0 // pred_check_branch
    %4527 = sbr.rel (0) target = $region169
  $region168: #{supfad_forward.1} parent=0 // pred_region
    _
  $region169: #{supfad_forward.1} parent=0 // pred_fallthru
    _

</llo_original>
